<compile_context>
chip_gen: v5e
topology: v5e:2x2
jax: 0.10.0
libtpu: 0.0.40
codegen_flags: <defaults>
</compile_context>

<pallas_src>
import functools
import math

import jax
import jax.numpy as jnp
from jax.experimental import pallas as pl
from jax.experimental.pallas import tpu as pltpu


_SQRT_2_OVER_PI = math.sqrt(2.0 / math.pi)


def _layernorm(x, gamma, beta, eps):
    # Single-pass variance: E[x^2] - mean^2 (one fewer dependent VALU/XLU pass).
    mean = jnp.mean(x, axis=-1, keepdims=True)
    mean_sq = jnp.mean(x * x, axis=-1, keepdims=True)
    var = jnp.maximum(mean_sq - mean * mean, 0.0)
    inv = jax.lax.rsqrt(var + eps)
    return (x - mean) * inv * gamma + beta


def _gelu_tanh(x):
    # tanh-approximate GELU: tanh executes in the EUP slot.
    # TODO(synk): torch default is exact erf GELU; tanh approx deviates <1e-3
    # per element (validated against the erf reference below).
    inner = _SQRT_2_OVER_PI * (x + 0.044715 * (x * x * x))
    return 0.5 * x * (1.0 + jnp.tanh(inner))


def _gelu_exact(x):
    # Exact erf GELU (used only by the pure-JAX reference).
    return 0.5 * x * (1.0 + jax.lax.erf(x * (1.0 / math.sqrt(2.0))))


def fused_block_kernel(
    x314_ref, x281_ref,            # row tiles (T, H) f32
    g1_ref, be1_ref,               # layernorm13 params (1, H) f32
    w1_ref, b1_ref,                # linear41 chunk: (H, i_chunk) bf16, (1, i_chunk) f32
    w2_ref, b2_ref,                # linear42 chunk: (i_chunk, H) bf16, (1, H) f32
    g2_ref, be2_ref,               # layernorm14 params (1, H) f32
    w3_ref, b3_ref,                # linear43: (H, H) bf16, (1, H) f32
    out_ref,                       # (T, H) f32
    x317_sc, x317_bf_sc, acc_sc,   # VMEM scratch: LN1 out (f32/bf16), f32 acc
    *, eps,
):
    k = pl.program_id(1)

    @pl.when(k == 0)
    def _():
        # dropout20 (identity at inference) + residual add
        x316 = x314_ref[...] + x281_ref[...]
        # layernorm13 (computed once per row tile, cached across k steps)
        x317 = _layernorm(x316, g1_ref[...], be1_ref[...], eps)
        x317_sc[...] = x317
        x317_bf_sc[...] = x317.astype(jnp.bfloat16)
        acc_sc[...] = jnp.zeros_like(acc_sc)

    # linear41 chunk + GELU + linear42 chunk, f32 accumulation on the MXU.
    h = jnp.dot(x317_bf_sc[...], w1_ref[...], preferred_element_type=jnp.float32)
    h = _gelu_tanh(h + b1_ref[...])
    acc_sc[...] += jnp.dot(h.astype(jnp.bfloat16), w2_ref[...],
                           preferred_element_type=jnp.float32)

    @pl.when(k == pl.num_programs(1) - 1)
    def _():
        x320 = acc_sc[...] + b2_ref[...]          # linear42 bias
        x322 = x320 + x317_sc[...]                # dropout21 (identity) + residual
        x323 = _layernorm(x322, g2_ref[...], be2_ref[...], eps)
        x324 = jnp.dot(x323.astype(jnp.bfloat16), w3_ref[...],
                       preferred_element_type=jnp.float32) + b3_ref[...]
        out_ref[...] = x324.astype(out_ref.dtype)


def fused_block(x314, x281, params, *, tile_rows=192, i_chunk=256, eps=1e-12):
    """x314, x281: (B, S, H) f32. Returns (B, S, H) f32."""
    B, S, H = x314.shape
    I = params["w1"].shape[1]
    rows = B * S

    # Fallbacks so odd shapes still run (single row tile).
    if rows % tile_rows != 0 or tile_rows % 8 != 0:
        tile_rows = rows
    if I % i_chunk != 0:
        i_chunk = I
    assert rows % tile_rows == 0 and tile_rows % 8 == 0
    assert I % i_chunk == 0 and H % 128 == 0

    x314_2d = x314.reshape(rows, H)
    x281_2d = x281.reshape(rows, H)

    # bf16 weights (half the weight DMA, fast MXU path); f32 biases / LN params.
    w1 = params["w1"].astype(jnp.bfloat16)
    w2 = params["w2"].astype(jnp.bfloat16)
    w3 = params["w3"].astype(jnp.bfloat16)

    row_spec = pl.BlockSpec((tile_rows, H), lambda i, k: (i, 0))
    const = lambda shape: pl.BlockSpec(shape, lambda i, k: (0, 0))

    out = pl.pallas_call(
        functools.partial(fused_block_kernel, eps=eps),
        out_shape=jax.ShapeDtypeStruct((rows, H), x314.dtype),
        grid_spec=pltpu.PrefetchScalarGridSpec(
            num_scalar_prefetch=0,
            grid=(rows // tile_rows, I // i_chunk),
            in_specs=[
                row_spec, row_spec,                                   # x314, x281
                const((1, H)), const((1, H)),                         # g1, be1
                pl.BlockSpec((H, i_chunk), lambda i, k: (0, k)),      # w1 chunk
                pl.BlockSpec((1, i_chunk), lambda i, k: (0, k)),      # b1 chunk
                pl.BlockSpec((i_chunk, H), lambda i, k: (k, 0)),      # w2 chunk
                const((1, H)),                                        # b2
                const((1, H)), const((1, H)),                         # g2, be2
                const((H, H)), const((1, H)),                         # w3, b3
            ],
            out_specs=row_spec,
            scratch_shapes=[
                pltpu.VMEM((tile_rows, H), jnp.float32),    # x317 (f32, residual)
                pltpu.VMEM((tile_rows, H), jnp.bfloat16),   # x317 (bf16, MXU LHS)
                pltpu.VMEM((tile_rows, H), jnp.float32),    # linear42 accumulator
            ],
        ),
        compiler_params=pltpu.CompilerParams(
            dimension_semantics=("parallel", "arbitrary"),
        ),
    )(
        x314_2d, x281_2d,
        params["g1"], params["be1"],
        w1, params["b1"],
        w2, params["b2"],
        params["g2"], params["be2"],
        w3, params["b3"],
    )
    return out.reshape(B, S, H)


def reference(x314, x281, params, eps=1e-12):
    """Pure-JAX f32 reference of the PyTorch module (dropout = identity)."""
    def ln(x, g, b):
        m = jnp.mean(x, -1, keepdims=True)
        v = jnp.mean((x - m) ** 2, -1, keepdims=True)
        return (x - m) * jax.lax.rsqrt(v + eps) * g + b

    x316 = x314 + x281
    x317 = ln(x316, params["g1"], params["be1"])
    x318 = x317 @ params["w1"] + params["b1"]
    x319 = _gelu_exact(x318)
    x320 = x319 @ params["w2"] + params["b2"]
    x322 = x320 + x317
    x323 = ln(x322, params["g2"], params["be2"])
    return x323 @ params["w3"] + params["b3"]


def init_params(key, hidden=256, inter=1024):
    ks = jax.random.split(key, 3)

    def lin(k, fan_in, fan_out):
        bound = 1.0 / math.sqrt(fan_in)
        kw, kb = jax.random.split(k)
        w = jax.random.uniform(kw, (fan_in, fan_out), jnp.float32, -bound, bound)
        b = jax.random.uniform(kb, (1, fan_out), jnp.float32, -bound, bound)
        return w, b

    w1, b1 = lin(ks[0], hidden, inter)   # linear41
    w2, b2 = lin(ks[1], inter, hidden)   # linear42
    w3, b3 = lin(ks[2], hidden, hidden)  # linear43
    return {
        "g1": jnp.ones((1, hidden), jnp.float32),
        "be1": jnp.zeros((1, hidden), jnp.float32),
        "w1": w1, "b1": b1,
        "w2": w2, "b2": b2,
        "g2": jnp.ones((1, hidden), jnp.float32),
        "be2": jnp.zeros((1, hidden), jnp.float32),
        "w3": w3, "b3": b3,
    }


if __name__ == "__main__":
    key = jax.random.PRNGKey(0)
    k1, k2, k3 = jax.random.split(key, 3)

    B, S, H, I = 1, 384, 256, 1024       # shapes implied by the module
    x314 = jax.random.normal(k1, (B, S, H), jnp.float32)
    x281 = jax.random.normal(k2, (B, S, H), jnp.float32)
    params = init_params(k3, hidden=H, inter=I)

    out = fused_block(x314, x281, params)
    jax.block_until_ready(out)
    assert out.shape == (B, S, H)
    assert bool(jnp.all(jnp.isfinite(out)))

    # bf16-weight + tanh-GELU path vs. exact-erf f32 reference.
    ref = reference(x314, x281, params)
    max_err = float(jnp.max(jnp.abs(out - ref)))
    assert max_err < 0.25, f"max abs error too large: {max_err}"

    print("KERNEL_OK")
</pallas_src>

<mosaic_0001>
module attributes {stable_mosaic.version = 11 : i64} {
  func.func @fused_block_kernel(%arg0: i32, %arg1: i32, %arg2: memref<192x256xf32, #tpu.memory_space<vmem>>, %arg3: memref<192x256xf32, #tpu.memory_space<vmem>>, %arg4: memref<1x256xf32, #tpu.memory_space<vmem>>, %arg5: memref<1x256xf32, #tpu.memory_space<vmem>>, %arg6: memref<256x256xbf16, #tpu.memory_space<vmem>>, %arg7: memref<1x256xf32, #tpu.memory_space<vmem>>, %arg8: memref<256x256xbf16, #tpu.memory_space<vmem>>, %arg9: memref<1x256xf32, #tpu.memory_space<vmem>>, %arg10: memref<1x256xf32, #tpu.memory_space<vmem>>, %arg11: memref<1x256xf32, #tpu.memory_space<vmem>>, %arg12: memref<256x256xbf16, #tpu.memory_space<vmem>>, %arg13: memref<1x256xf32, #tpu.memory_space<vmem>>, %arg14: memref<192x256xf32, #tpu.memory_space<vmem>>, %arg15: memref<192x256xf32, #tpu.memory_space<vmem>>, %arg16: memref<192x256xbf16, #tpu.memory_space<vmem>>, %arg17: memref<192x256xf32, #tpu.memory_space<vmem>>) attributes {dimension_semantics = [#tpu.dimension_semantics<parallel>, #tpu.dimension_semantics<arbitrary>], iteration_bounds = array<i64: 2, 4>, scalar_prefetch = 0 : i64, scratch_operands = 3 : i64, tpu.core_type = #tpu.core_type<tc>, window_params = [{transform_indices = @transform_0, window_bounds = array<i64: 192, 256>}, {transform_indices = @transform_1, window_bounds = array<i64: 192, 256>}, {pipeline_mode = #tpu.pipeline_mode<synchronous>, transform_indices = @transform_2, window_bounds = array<i64: 1, 256>}, {pipeline_mode = #tpu.pipeline_mode<synchronous>, transform_indices = @transform_3, window_bounds = array<i64: 1, 256>}, {transform_indices = @transform_4, window_bounds = array<i64: 256, 256>}, {transform_indices = @transform_5, window_bounds = array<i64: 1, 256>}, {transform_indices = @transform_6, window_bounds = array<i64: 256, 256>}, {pipeline_mode = #tpu.pipeline_mode<synchronous>, transform_indices = @transform_7, window_bounds = array<i64: 1, 256>}, {pipeline_mode = #tpu.pipeline_mode<synchronous>, transform_indices = @transform_8, window_bounds = array<i64: 1, 256>}, {pipeline_mode = #tpu.pipeline_mode<synchronous>, transform_indices = @transform_9, window_bounds = array<i64: 1, 256>}, {pipeline_mode = #tpu.pipeline_mode<synchronous>, transform_indices = @transform_10, window_bounds = array<i64: 256, 256>}, {pipeline_mode = #tpu.pipeline_mode<synchronous>, transform_indices = @transform_11, window_bounds = array<i64: 1, 256>}, {transform_indices = @transform_12, window_bounds = array<i64: 192, 256>}]} {
    %c0_i32 = arith.constant 0 : i32
    %0 = arith.cmpi eq, %arg1, %c0_i32 : i32
    %1 = arith.extui %0 : i1 to i32
    %c0_i32_0 = arith.constant 0 : i32
    %2 = arith.cmpi ne, %1, %c0_i32_0 : i32
    scf.if %2 {
      %c0_18 = arith.constant 0 : index
      %c0_19 = arith.constant 0 : index
      %31 = vector.load %arg2[%c0_18, %c0_19] : memref<192x256xf32, #tpu.memory_space<vmem>>, vector<192x256xf32>
      %c0_20 = arith.constant 0 : index
      %c0_21 = arith.constant 0 : index
      %32 = vector.load %arg3[%c0_20, %c0_21] : memref<192x256xf32, #tpu.memory_space<vmem>>, vector<192x256xf32>
      %33 = arith.addf %31, %32 : vector<192x256xf32>
      %c0_22 = arith.constant 0 : index
      %c0_23 = arith.constant 0 : index
      %34 = vector.load %arg4[%c0_22, %c0_23] : memref<1x256xf32, #tpu.memory_space<vmem>>, vector<1x256xf32>
      %c0_24 = arith.constant 0 : index
      %c0_25 = arith.constant 0 : index
      %35 = vector.load %arg5[%c0_24, %c0_25] : memref<1x256xf32, #tpu.memory_space<vmem>>, vector<1x256xf32>
      %cst_26 = arith.constant dense<0.000000e+00> : vector<192xf32>
      %36 = vector.multi_reduction <add>, %33, %cst_26 [1] : vector<192x256xf32> to vector<192xf32>
      %37 = vector.shape_cast %36 : vector<192xf32> to vector<192x1xf32>
      %cst_27 = arith.constant 2.560000e+02 : f32
      %38 = vector.broadcast %cst_27 : f32 to vector<192x1xf32>
      %39 = arith.divf %37, %38 : vector<192x1xf32>
      %40 = arith.mulf %33, %33 : vector<192x256xf32>
      %cst_28 = arith.constant dense<0.000000e+00> : vector<192xf32>
      %41 = vector.multi_reduction <add>, %40, %cst_28 [1] : vector<192x256xf32> to vector<192xf32>
      %42 = vector.shape_cast %41 : vector<192xf32> to vector<192x1xf32>
      %cst_29 = arith.constant 2.560000e+02 : f32
      %43 = vector.broadcast %cst_29 : f32 to vector<192x1xf32>
      %44 = arith.divf %42, %43 : vector<192x1xf32>
      %45 = arith.mulf %39, %39 : vector<192x1xf32>
      %46 = arith.subf %44, %45 : vector<192x1xf32>
      %cst_30 = arith.constant 0.000000e+00 : f32
      %47 = vector.broadcast %cst_30 : f32 to vector<192x1xf32>
      %48 = arith.maximumf %46, %47 : vector<192x1xf32>
      %cst_31 = arith.constant 9.99999996E-13 : f32
      %49 = vector.broadcast %cst_31 : f32 to vector<192x1xf32>
      %50 = arith.addf %48, %49 : vector<192x1xf32>
      %51 = math.rsqrt %50 : vector<192x1xf32>
      %52 = vector.broadcast %39 : vector<192x1xf32> to vector<192x256xf32>
      %53 = arith.subf %33, %52 : vector<192x256xf32>
      %54 = vector.broadcast %51 : vector<192x1xf32> to vector<192x256xf32>
      %55 = arith.mulf %53, %54 : vector<192x256xf32>
      %56 = vector.broadcast %34 : vector<1x256xf32> to vector<192x256xf32>
      %57 = arith.mulf %55, %56 : vector<192x256xf32>
      %58 = vector.broadcast %35 : vector<1x256xf32> to vector<192x256xf32>
      %59 = arith.addf %57, %58 : vector<192x256xf32>
      %c0_32 = arith.constant 0 : index
      %c0_33 = arith.constant 0 : index
      %60 = vector.load %arg15[%c0_32, %c0_33] : memref<192x256xf32, #tpu.memory_space<vmem>>, vector<192x256xf32>
      tpu.vector_store %arg15[%c0_32, %c0_33], %59 {strides = array<i32>} : memref<192x256xf32, #tpu.memory_space<vmem>>, vector<192x256xf32>,
      %61 = arith.truncf %59 : vector<192x256xf32> to vector<192x256xbf16>
      %c0_34 = arith.constant 0 : index
      %c0_35 = arith.constant 0 : index
      %62 = vector.load %arg16[%c0_34, %c0_35] : memref<192x256xbf16, #tpu.memory_space<vmem>>, vector<192x256xbf16>
      tpu.vector_store %arg16[%c0_34, %c0_35], %61 {strides = array<i32>} : memref<192x256xbf16, #tpu.memory_space<vmem>>, vector<192x256xbf16>,
      %cst_36 = arith.constant 0.000000e+00 : f32
      %63 = vector.broadcast %cst_36 : f32 to vector<192x256xf32>
      %c0_37 = arith.constant 0 : index
      %c0_38 = arith.constant 0 : index
      %64 = vector.load %arg17[%c0_37, %c0_38] : memref<192x256xf32, #tpu.memory_space<vmem>>, vector<192x256xf32>
      tpu.vector_store %arg17[%c0_37, %c0_38], %63 {strides = array<i32>} : memref<192x256xf32, #tpu.memory_space<vmem>>, vector<192x256xf32>,
    } else {
    }
    %c0 = arith.constant 0 : index
    %c0_1 = arith.constant 0 : index
    %3 = vector.load %arg16[%c0, %c0_1] : memref<192x256xbf16, #tpu.memory_space<vmem>>, vector<192x256xbf16>
    %c0_2 = arith.constant 0 : index
    %c0_3 = arith.constant 0 : index
    %4 = vector.load %arg6[%c0_2, %c0_3] : memref<256x256xbf16, #tpu.memory_space<vmem>>, vector<256x256xbf16>
    %cst = arith.constant dense<0.000000e+00> : vector<192x256xf32>
    %5 = tpu.matmul %3, %4, %cst {dimension_numbers = #tpu.dot_dimension_numbers<[1], [0], [0], [1], [0, 0, 1, 1], [], []>} : vector<192x256xbf16>, vector<256x256xbf16>, vector<192x256xf32> -> vector<192x256xf32>
    %c0_4 = arith.constant 0 : index
    %c0_5 = arith.constant 0 : index
    %6 = vector.load %arg7[%c0_4, %c0_5] : memref<1x256xf32, #tpu.memory_space<vmem>>, vector<1x256xf32>
    %7 = vector.broadcast %6 : vector<1x256xf32> to vector<192x256xf32>
    %8 = arith.addf %5, %7 : vector<192x256xf32>
    %9 = arith.mulf %8, %8 : vector<192x256xf32>
    %10 = arith.mulf %9, %8 : vector<192x256xf32>
    %cst_6 = arith.constant 4.471500e-02 : f32
    %11 = vector.broadcast %cst_6 : f32 to vector<192x256xf32>
    %12 = arith.mulf %11, %10 : vector<192x256xf32>
    %13 = arith.addf %8, %12 : vector<192x256xf32>
    %cst_7 = arith.constant 0.797884583 : f32
    %14 = vector.broadcast %cst_7 : f32 to vector<192x256xf32>
    %15 = arith.mulf %14, %13 : vector<192x256xf32>
    %cst_8 = arith.constant 5.000000e-01 : f32
    %16 = vector.broadcast %cst_8 : f32 to vector<192x256xf32>
    %17 = arith.mulf %16, %8 : vector<192x256xf32>
    %18 = math.tanh %15 : vector<192x256xf32>
    %cst_9 = arith.constant 1.000000e+00 : f32
    %19 = vector.broadcast %cst_9 : f32 to vector<192x256xf32>
    %20 = arith.addf %19, %18 : vector<192x256xf32>
    %21 = arith.mulf %17, %20 : vector<192x256xf32>
    %c0_10 = arith.constant 0 : index
    %c0_11 = arith.constant 0 : index
    %22 = vector.load %arg17[%c0_10, %c0_11] : memref<192x256xf32, #tpu.memory_space<vmem>>, vector<192x256xf32>
    %23 = arith.truncf %21 : vector<192x256xf32> to vector<192x256xbf16>
    %c0_12 = arith.constant 0 : index
    %c0_13 = arith.constant 0 : index
    %24 = vector.load %arg8[%c0_12, %c0_13] : memref<256x256xbf16, #tpu.memory_space<vmem>>, vector<256x256xbf16>
    %cst_14 = arith.constant dense<0.000000e+00> : vector<192x256xf32>
    %25 = tpu.matmul %23, %24, %cst_14 {dimension_numbers = #tpu.dot_dimension_numbers<[1], [0], [0], [1], [0, 0, 1, 1], [], []>} : vector<192x256xbf16>, vector<256x256xbf16>, vector<192x256xf32> -> vector<192x256xf32>
    %26 = arith.addf %22, %25 : vector<192x256xf32>
    %c0_15 = arith.constant 0 : index
    %c0_16 = arith.constant 0 : index
    %27 = vector.load %arg17[%c0_15, %c0_16] : memref<192x256xf32, #tpu.memory_space<vmem>>, vector<192x256xf32>
    tpu.vector_store %arg17[%c0_15, %c0_16], %26 {strides = array<i32>} : memref<192x256xf32, #tpu.memory_space<vmem>>, vector<192x256xf32>,
    %c3_i32 = arith.constant 3 : i32
    %28 = arith.cmpi eq, %arg1, %c3_i32 : i32
    %29 = arith.extui %28 : i1 to i32
    %c0_i32_17 = arith.constant 0 : i32
    %30 = arith.cmpi ne, %29, %c0_i32_17 : i32
    scf.if %30 {
      %c0_18 = arith.constant 0 : index
      %c0_19 = arith.constant 0 : index
      %31 = vector.load %arg17[%c0_18, %c0_19] : memref<192x256xf32, #tpu.memory_space<vmem>>, vector<192x256xf32>
      %c0_20 = arith.constant 0 : index
      %c0_21 = arith.constant 0 : index
      %32 = vector.load %arg9[%c0_20, %c0_21] : memref<1x256xf32, #tpu.memory_space<vmem>>, vector<1x256xf32>
      %33 = vector.broadcast %32 : vector<1x256xf32> to vector<192x256xf32>
      %34 = arith.addf %31, %33 : vector<192x256xf32>
      %c0_22 = arith.constant 0 : index
      %c0_23 = arith.constant 0 : index
      %35 = vector.load %arg15[%c0_22, %c0_23] : memref<192x256xf32, #tpu.memory_space<vmem>>, vector<192x256xf32>
      %36 = arith.addf %34, %35 : vector<192x256xf32>
      %c0_24 = arith.constant 0 : index
      %c0_25 = arith.constant 0 : index
      %37 = vector.load %arg10[%c0_24, %c0_25] : memref<1x256xf32, #tpu.memory_space<vmem>>, vector<1x256xf32>
      %c0_26 = arith.constant 0 : index
      %c0_27 = arith.constant 0 : index
      %38 = vector.load %arg11[%c0_26, %c0_27] : memref<1x256xf32, #tpu.memory_space<vmem>>, vector<1x256xf32>
      %cst_28 = arith.constant dense<0.000000e+00> : vector<192xf32>
      %39 = vector.multi_reduction <add>, %36, %cst_28 [1] : vector<192x256xf32> to vector<192xf32>
      %40 = vector.shape_cast %39 : vector<192xf32> to vector<192x1xf32>
      %cst_29 = arith.constant 2.560000e+02 : f32
      %41 = vector.broadcast %cst_29 : f32 to vector<192x1xf32>
      %42 = arith.divf %40, %41 : vector<192x1xf32>
      %43 = arith.mulf %36, %36 : vector<192x256xf32>
      %cst_30 = arith.constant dense<0.000000e+00> : vector<192xf32>
      %44 = vector.multi_reduction <add>, %43, %cst_30 [1] : vector<192x256xf32> to vector<192xf32>
      %45 = vector.shape_cast %44 : vector<192xf32> to vector<192x1xf32>
      %cst_31 = arith.constant 2.560000e+02 : f32
      %46 = vector.broadcast %cst_31 : f32 to vector<192x1xf32>
      %47 = arith.divf %45, %46 : vector<192x1xf32>
      %48 = arith.mulf %42, %42 : vector<192x1xf32>
      %49 = arith.subf %47, %48 : vector<192x1xf32>
      %cst_32 = arith.constant 0.000000e+00 : f32
      %50 = vector.broadcast %cst_32 : f32 to vector<192x1xf32>
      %51 = arith.maximumf %49, %50 : vector<192x1xf32>
      %cst_33 = arith.constant 9.99999996E-13 : f32
      %52 = vector.broadcast %cst_33 : f32 to vector<192x1xf32>
      %53 = arith.addf %51, %52 : vector<192x1xf32>
      %54 = math.rsqrt %53 : vector<192x1xf32>
      %55 = vector.broadcast %42 : vector<192x1xf32> to vector<192x256xf32>
      %56 = arith.subf %36, %55 : vector<192x256xf32>
      %57 = vector.broadcast %54 : vector<192x1xf32> to vector<192x256xf32>
      %58 = arith.mulf %56, %57 : vector<192x256xf32>
      %59 = vector.broadcast %37 : vector<1x256xf32> to vector<192x256xf32>
      %60 = arith.mulf %58, %59 : vector<192x256xf32>
      %61 = vector.broadcast %38 : vector<1x256xf32> to vector<192x256xf32>
      %62 = arith.addf %60, %61 : vector<192x256xf32>
      %63 = arith.truncf %62 : vector<192x256xf32> to vector<192x256xbf16>
      %c0_34 = arith.constant 0 : index
      %c0_35 = arith.constant 0 : index
      %64 = vector.load %arg12[%c0_34, %c0_35] : memref<256x256xbf16, #tpu.memory_space<vmem>>, vector<256x256xbf16>
      %cst_36 = arith.constant dense<0.000000e+00> : vector<192x256xf32>
      %65 = tpu.matmul %63, %64, %cst_36 {dimension_numbers = #tpu.dot_dimension_numbers<[1], [0], [0], [1], [0, 0, 1, 1], [], []>} : vector<192x256xbf16>, vector<256x256xbf16>, vector<192x256xf32> -> vector<192x256xf32>
      %c0_37 = arith.constant 0 : index
      %c0_38 = arith.constant 0 : index
      %66 = vector.load %arg13[%c0_37, %c0_38] : memref<1x256xf32, #tpu.memory_space<vmem>>, vector<1x256xf32>
      %67 = vector.broadcast %66 : vector<1x256xf32> to vector<192x256xf32>
      %68 = arith.addf %65, %67 : vector<192x256xf32>
      %c0_39 = arith.constant 0 : index
      %c0_40 = arith.constant 0 : index
      %69 = vector.load %arg14[%c0_39, %c0_40] : memref<192x256xf32, #tpu.memory_space<vmem>>, vector<192x256xf32>
      tpu.vector_store %arg14[%c0_39, %c0_40], %68 {strides = array<i32>} : memref<192x256xf32, #tpu.memory_space<vmem>>, vector<192x256xf32>,
    } else {
    }
    return
  }
  func.func @transform_0(%arg0: i32, %arg1: i32) -> (i32, i32) {
    %c0_i32 = arith.constant 0 : i32
    %c0_i32_0 = arith.constant 0 : i32
    return %arg0, %c0_i32 : i32, i32
  }
  func.func @transform_1(%arg0: i32, %arg1: i32) -> (i32, i32) {
    %c0_i32 = arith.constant 0 : i32
    %c0_i32_0 = arith.constant 0 : i32
    return %arg0, %c0_i32 : i32, i32
  }
  func.func @transform_2(%arg0: i32, %arg1: i32) -> (i32, i32) {
    %c0_i32 = arith.constant 0 : i32
    %c0_i32_0 = arith.constant 0 : i32
    %c0_i32_1 = arith.constant 0 : i32
    return %c0_i32, %c0_i32_0 : i32, i32
  }
  func.func @transform_3(%arg0: i32, %arg1: i32) -> (i32, i32) {
    %c0_i32 = arith.constant 0 : i32
    %c0_i32_0 = arith.constant 0 : i32
    %c0_i32_1 = arith.constant 0 : i32
    return %c0_i32, %c0_i32_0 : i32, i32
  }
  func.func @transform_4(%arg0: i32, %arg1: i32) -> (i32, i32) {
    %c0_i32 = arith.constant 0 : i32
    %c0_i32_0 = arith.constant 0 : i32
    return %c0_i32, %arg1 : i32, i32
  }
  func.func @transform_5(%arg0: i32, %arg1: i32) -> (i32, i32) {
    %c0_i32 = arith.constant 0 : i32
    %c0_i32_0 = arith.constant 0 : i32
    return %c0_i32, %arg1 : i32, i32
  }
  func.func @transform_6(%arg0: i32, %arg1: i32) -> (i32, i32) {
    %c0_i32 = arith.constant 0 : i32
    %c0_i32_0 = arith.constant 0 : i32
    return %arg1, %c0_i32 : i32, i32
  }
  func.func @transform_7(%arg0: i32, %arg1: i32) -> (i32, i32) {
    %c0_i32 = arith.constant 0 : i32
    %c0_i32_0 = arith.constant 0 : i32
    %c0_i32_1 = arith.constant 0 : i32
    return %c0_i32, %c0_i32_0 : i32, i32
  }
  func.func @transform_8(%arg0: i32, %arg1: i32) -> (i32, i32) {
    %c0_i32 = arith.constant 0 : i32
    %c0_i32_0 = arith.constant 0 : i32
    %c0_i32_1 = arith.constant 0 : i32
    return %c0_i32, %c0_i32_0 : i32, i32
  }
  func.func @transform_9(%arg0: i32, %arg1: i32) -> (i32, i32) {
    %c0_i32 = arith.constant 0 : i32
    %c0_i32_0 = arith.constant 0 : i32
    %c0_i32_1 = arith.constant 0 : i32
    return %c0_i32, %c0_i32_0 : i32, i32
  }
  func.func @transform_10(%arg0: i32, %arg1: i32) -> (i32, i32) {
    %c0_i32 = arith.constant 0 : i32
    %c0_i32_0 = arith.constant 0 : i32
    %c0_i32_1 = arith.constant 0 : i32
    return %c0_i32, %c0_i32_0 : i32, i32
  }
  func.func @transform_11(%arg0: i32, %arg1: i32) -> (i32, i32) {
    %c0_i32 = arith.constant 0 : i32
    %c0_i32_0 = arith.constant 0 : i32
    %c0_i32_1 = arith.constant 0 : i32
    return %c0_i32, %c0_i32_0 : i32, i32
  }
  func.func @transform_12(%arg0: i32, %arg1: i32) -> (i32, i32) {
    %c0_i32 = arith.constant 0 : i32
    %c0_i32_0 = arith.constant 0 : i32
    return %arg0, %c0_i32 : i32, i32
  }
}

</mosaic_0001>

<llo_original>
// kernel: tpu_custom_call.1
$region0: #{tpu_custom_call.1}
  #allocation0 [shape = 'u32[]', space=smem, size = 0x4, offset = 0x4, fixed_abs, tag = 'smem constant byte address 0x4 - core index']
  #allocation1 [shape = 'u32[72,128]{1,0:T(1,128)}', space=vmem, size = 0x9000, scoped, tag = 'internal scratch']
  #allocation2 [shape = 'f32[192,256]{1,0:T(8,128)}', space=vmem, size = 0x30000, scoped, tag = 'scratch operand']
  #allocation3 [shape = 'bf16[192,256]{1,0:T(8,128)(2,1)}', space=vmem, size = 0x18000, scoped, tag = 'scratch operand']
  #allocation4 [shape = 'f32[192,256]{1,0:T(8,128)}', space=vmem, size = 0x30000, scoped, tag = 'scratch operand']
  %s0 = inlined_call_operand.hbm [shape: f32[384,256], index: 0, kind: input, shape index: {}]
  %s1 = inlined_call_operand.hbm [shape: f32[384,256], index: 1, kind: input, shape index: {}]
  %s2 = inlined_call_operand.hbm [shape: f32[1,256], index: 2, kind: input, shape index: {}]
  %s3 = inlined_call_operand.vmem [shape: f32[1,256], index: 3, kind: input, shape index: {}]
  %s4 = inlined_call_operand.hbm [shape: bf16[256,1024], index: 4, kind: input, shape index: {}]
  %s5 = inlined_call_operand.hbm [shape: f32[1,1024], index: 5, kind: input, shape index: {}]
  %s6 = inlined_call_operand.hbm [shape: bf16[1024,256], index: 6, kind: input, shape index: {}]
  %s7 = inlined_call_operand.vmem [shape: f32[1,256], index: 7, kind: input, shape index: {}]
  %s8 = inlined_call_operand.vmem [shape: f32[1,256], index: 8, kind: input, shape index: {}]
  %s9 = inlined_call_operand.vmem [shape: f32[1,256], index: 9, kind: input, shape index: {}]
  %s10 = inlined_call_operand.hbm [shape: bf16[256,256], index: 10, kind: input, shape index: {}]
  %s11 = inlined_call_operand.vmem [shape: f32[1,256], index: 11, kind: input, shape index: {}]
  %s12 = inlined_call_operand.hbm [shape: f32[384,256], index: 12, kind: output, shape index: {}]
  %s13 = sld [smem:[#allocation0]]
  $region117: #{tpu_custom_call.1} parent=0
    _
  %s15 = ssub.s32 1, %s13
  %s16 = scalar_select 0, %s15, %s13
  $region1: #{tpu_custom_call.1} parent=0
    #allocation5 [shape = 'u8[393216]{0}', space=vmem, size = 0x60000, scoped, tag = 'input window, operand 0']
    #allocation6 [shape = 's32[2]{0}', space=sflag, size = 0x8, scoped, tag = 'scoped memory for tpu_custom_call.1']
    #allocation7 [shape = 's32[2]{0}', space=sflag, size = 0x8, scoped, tag = 'scoped memory for tpu_custom_call.1']
    #allocation8 [shape = 'u8[393216]{0}', space=vmem, size = 0x60000, scoped, tag = 'input window, operand 1']
    #allocation9 [shape = 's32[2]{0}', space=sflag, size = 0x8, scoped, tag = 'scoped memory for tpu_custom_call.1']
    #allocation10 [shape = 'u8[1024]{0}', space=vmem, size = 0x400, scoped, tag = 'input window, operand 2, single buffered']
    #allocation11 [shape = 'u8[262144]{0}', space=vmem, size = 0x40000, scoped, tag = 'input window, operand 4']
    #allocation12 [shape = 's32[2]{0}', space=sflag, size = 0x8, scoped, tag = 'scoped memory for tpu_custom_call.1']
    #allocation13 [shape = 'u8[2048]{0}', space=vmem, size = 0x800, scoped, tag = 'input window, operand 5']
    #allocation14 [shape = 'u8[262144]{0}', space=vmem, size = 0x40000, scoped, tag = 'input window, operand 6']
    #allocation15 [shape = 's32[2]{0}', space=sflag, size = 0x8, scoped, tag = 'scoped memory for tpu_custom_call.1']
    #allocation16 [shape = 'u8[131072]{0}', space=vmem, size = 0x20000, scoped, tag = 'input window, operand 10, single buffered']
    #allocation17 [shape = 'u8[393216]{0}', space=vmem, size = 0x60000, scoped, tag = 'output window, operand 0']
    %17 = vsyncpa [#allocation6], 0
    %s18 = scalar_lea.sflag [#allocation6], 1
    %19 = vsyncpa %s18, 0
    %20 = vsyncpa [#allocation9], 0
    %s21 = scalar_lea.sflag [#allocation9], 1
    %22 = vsyncpa %s21, 0
    %23 = vsyncpa [#allocation12], 0
    %s24 = scalar_lea.sflag [#allocation12], 1
    %25 = vsyncpa %s24, 0
    %26 = vsyncpa [#allocation15], 0
    %s27 = scalar_lea.sflag [#allocation15], 1
    %28 = vsyncpa %s27, 0
    %29 = vsyncpa [#allocation7], 0
    %s30 = scalar_lea.sflag [#allocation7], 1
    %31 = vsyncpa %s30, 0
    loop: start=0, step=1, limit=10
    $region2: #{tpu_custom_call.1} parent=1 // loop_pre_header
      _
    $region3: #{tpu_custom_call.1} parent=1 // loop_header
      %s33 = sphi 0, %s37
      %p34 = scmp.ge.s32.totalorder %s33, 10
      %s40 = sphi 0, %s52
      %s41 = sphi 0, %s48
      %s42 = sphi 0, %s40
      %s43 = sphi 0, %s41
      %s44 = sphi 0, %s42
      %s45 = sphi 0, %s43
      %s55 = sphi 0, %s57
      %s58 = sphi 0, %s55
      %s59 = sphi 0, %s58
      %s75 = sphi 0, %s59
      %s81 = sphi 0, %s83
      %s84 = sphi 0, %s81
      %s85 = sphi 0, %s84
      %s101 = sphi 0, %s85
      %s105 = sphi 0, %s105
      %s107 = sphi 0, %s105
      %s108 = sphi 0, %s107
      %s122 = sphi 0, %s108
      %s126 = sphi 0, %s126
      %s128 = sphi 0, %s126
      %s129 = sphi 0, %s128
      %s143 = sphi 0, %s129
      %s149 = sphi 0, %s151
      %s152 = sphi 0, %s149
      %s153 = sphi 0, %s152
      %s169 = sphi 0, %s153
      %s175 = sphi 0, %s177
      %s178 = sphi 0, %s175
      %s179 = sphi 0, %s178
      %s195 = sphi 0, %s179
      %s201 = sphi 0, %s203
      %s204 = sphi 0, %s201
      %s205 = sphi 0, %s204
      %s221 = sphi 0, %s205
      %s225 = sphi 0, %s225
      %s227 = sphi 0, %s225
      %s228 = sphi 0, %s227
      %s242 = sphi 0, %s228
      %s246 = sphi 0, %s246
      %s248 = sphi 0, %s246
      %s249 = sphi 0, %s248
      %s263 = sphi 0, %s249
      %s267 = sphi 0, %s267
      %s269 = sphi 0, %s267
      %s270 = sphi 0, %s269
      %s284 = sphi 0, %s270
      %s288 = sphi 0, %s288
      %s290 = sphi 0, %s288
      %s291 = sphi 0, %s290
      %s305 = sphi 0, %s291
      %s309 = sphi 0, %s309
      %s311 = sphi 0, %s309
      %s312 = sphi 0, %s311
      %s326 = sphi 0, %s312
      %s332 = sphi 0, %s334
      %s335 = sphi 0, %s332
      %s336 = sphi 0, %s335
      %s352 = sphi 0, %s336
    $region4: #{tpu_custom_call.1} parent=1 // loop_header_branch
      %36 = sbr.rel (%p34) target = $region8
    $region5: #{tpu_custom_call.1} parent=1 // loop_body
      %s38 = ssub.s32 %s33, 1
      %s39 = ssub.s32 %s33, 2
      %s46 = sadd.s32 1, %s41
      %p47 = scmp.ge.s32.totalorder %s46, 4
      %s48 = scalar_select %p47, 0, %s46
      %s49 = sadd.s32 1, %s40
      %s50 = scalar_select %p47, %s49, %s40
      %p51 = scmp.ge.s32.totalorder %s50, 2
      %s52 = scalar_select %p51, 0, %s50
      %s53 = ssub.s32 %s40, %s52
      %p54 = scmp.eq.s32.totalorder %s53, 0
      %s56 = sadd.s32 %s55, 1
      %s57 = scalar_select %p54, %s55, %s56
      %p60 = pneg %p54
      %p61 = scmp.eq.s32.totalorder %s33, 7
      %p62 = por %p60, %p61
      %p63 = scmp.ne.s32.totalorder %s55, %s58
      %p64 = scmp.eq.s32.totalorder %s33, 0
      %p65 = por %p63, %p64
      %p66 = scmp.ne.s32.totalorder %s55, %s58
      %p67 = scmp.eq.s32.totalorder %s38, 7
      %p68 = por %p66, %p67
      %p69 = scmp.ne.s32.totalorder %s58, %s59
      %p70 = scmp.eq.s32.totalorder %s38, 0
      %p71 = por %p69, %p70
      %p72 = scmp.ne.s32.totalorder %s58, %s59
      %p73 = scmp.eq.s32.totalorder %s39, 7
      %p74 = por %p72, %p73
      %p76 = scmp.ne.s32.totalorder %s59, %s75
      %p77 = scmp.eq.s32.totalorder %s39, 0
      %p78 = por %p76, %p77
      %s79 = ssub.s32 %s40, %s52
      %p80 = scmp.eq.s32.totalorder %s79, 0
      %s82 = sadd.s32 %s81, 1
      %s83 = scalar_select %p80, %s81, %s82
      %p86 = pneg %p80
      %p87 = scmp.eq.s32.totalorder %s33, 7
      %p88 = por %p86, %p87
      %p89 = scmp.ne.s32.totalorder %s81, %s84
      %p90 = scmp.eq.s32.totalorder %s33, 0
      %p91 = por %p89, %p90
      %p92 = scmp.ne.s32.totalorder %s81, %s84
      %p93 = scmp.eq.s32.totalorder %s38, 7
      %p94 = por %p92, %p93
      %p95 = scmp.ne.s32.totalorder %s84, %s85
      %p96 = scmp.eq.s32.totalorder %s38, 0
      %p97 = por %p95, %p96
      %p98 = scmp.ne.s32.totalorder %s84, %s85
      %p99 = scmp.eq.s32.totalorder %s39, 7
      %p100 = por %p98, %p99
      %p102 = scmp.ne.s32.totalorder %s85, %s101
      %p103 = scmp.eq.s32.totalorder %s39, 0
      %p104 = por %p102, %p103
      %s106 = sadd.s32 %s105, 1
      %p109 = scmp.eq.s32.totalorder %s33, 7
      %p110 = scmp.ne.s32.totalorder %s105, %s107
      %p111 = scmp.eq.s32.totalorder %s33, 0
      %p112 = por %p110, %p111
      %p113 = scmp.ne.s32.totalorder %s105, %s107
      %p114 = scmp.eq.s32.totalorder %s38, 7
      %p115 = por %p113, %p114
      %p116 = scmp.ne.s32.totalorder %s107, %s108
      %p117 = scmp.eq.s32.totalorder %s38, 0
      %p118 = por %p116, %p117
      %p119 = scmp.ne.s32.totalorder %s107, %s108
      %p120 = scmp.eq.s32.totalorder %s39, 7
      %p121 = por %p119, %p120
      %p123 = scmp.ne.s32.totalorder %s108, %s122
      %p124 = scmp.eq.s32.totalorder %s39, 0
      %p125 = por %p123, %p124
      %s127 = sadd.s32 %s126, 1
      %p130 = scmp.eq.s32.totalorder %s33, 7
      %p131 = scmp.ne.s32.totalorder %s126, %s128
      %p132 = scmp.eq.s32.totalorder %s33, 0
      %p133 = por %p131, %p132
      %p134 = scmp.ne.s32.totalorder %s126, %s128
      %p135 = scmp.eq.s32.totalorder %s38, 7
      %p136 = por %p134, %p135
      %p137 = scmp.ne.s32.totalorder %s128, %s129
      %p138 = scmp.eq.s32.totalorder %s38, 0
      %p139 = por %p137, %p138
      %p140 = scmp.ne.s32.totalorder %s128, %s129
      %p141 = scmp.eq.s32.totalorder %s39, 7
      %p142 = por %p140, %p141
      %p144 = scmp.ne.s32.totalorder %s129, %s143
      %p145 = scmp.eq.s32.totalorder %s39, 0
      %p146 = por %p144, %p145
      %s147 = ssub.s32 %s41, %s48
      %p148 = scmp.eq.s32.totalorder %s147, 0
      %s150 = sadd.s32 %s149, 1
      %s151 = scalar_select %p148, %s149, %s150
      %p154 = pneg %p148
      %p155 = scmp.eq.s32.totalorder %s33, 7
      %p156 = por %p154, %p155
      %p157 = scmp.ne.s32.totalorder %s149, %s152
      %p158 = scmp.eq.s32.totalorder %s33, 0
      %p159 = por %p157, %p158
      %p160 = scmp.ne.s32.totalorder %s149, %s152
      %p161 = scmp.eq.s32.totalorder %s38, 7
      %p162 = por %p160, %p161
      %p163 = scmp.ne.s32.totalorder %s152, %s153
      %p164 = scmp.eq.s32.totalorder %s38, 0
      %p165 = por %p163, %p164
      %p166 = scmp.ne.s32.totalorder %s152, %s153
      %p167 = scmp.eq.s32.totalorder %s39, 7
      %p168 = por %p166, %p167
      %p170 = scmp.ne.s32.totalorder %s153, %s169
      %p171 = scmp.eq.s32.totalorder %s39, 0
      %p172 = por %p170, %p171
      %s173 = ssub.s32 %s41, %s48
      %p174 = scmp.eq.s32.totalorder %s173, 0
      %s176 = sadd.s32 %s175, 1
      %s177 = scalar_select %p174, %s175, %s176
      %p180 = pneg %p174
      %p181 = scmp.eq.s32.totalorder %s33, 7
      %p182 = por %p180, %p181
      %p183 = scmp.ne.s32.totalorder %s175, %s178
      %p184 = scmp.eq.s32.totalorder %s33, 0
      %p185 = por %p183, %p184
      %p186 = scmp.ne.s32.totalorder %s175, %s178
      %p187 = scmp.eq.s32.totalorder %s38, 7
      %p188 = por %p186, %p187
      %p189 = scmp.ne.s32.totalorder %s178, %s179
      %p190 = scmp.eq.s32.totalorder %s38, 0
      %p191 = por %p189, %p190
      %p192 = scmp.ne.s32.totalorder %s178, %s179
      %p193 = scmp.eq.s32.totalorder %s39, 7
      %p194 = por %p192, %p193
      %p196 = scmp.ne.s32.totalorder %s179, %s195
      %p197 = scmp.eq.s32.totalorder %s39, 0
      %p198 = por %p196, %p197
      %s199 = ssub.s32 %s41, %s48
      %p200 = scmp.eq.s32.totalorder %s199, 0
      %s202 = sadd.s32 %s201, 1
      %s203 = scalar_select %p200, %s201, %s202
      %p206 = pneg %p200
      %p207 = scmp.eq.s32.totalorder %s33, 7
      %p208 = por %p206, %p207
      %p209 = scmp.ne.s32.totalorder %s201, %s204
      %p210 = scmp.eq.s32.totalorder %s33, 0
      %p211 = por %p209, %p210
      %p212 = scmp.ne.s32.totalorder %s201, %s204
      %p213 = scmp.eq.s32.totalorder %s38, 7
      %p214 = por %p212, %p213
      %p215 = scmp.ne.s32.totalorder %s204, %s205
      %p216 = scmp.eq.s32.totalorder %s38, 0
      %p217 = por %p215, %p216
      %p218 = scmp.ne.s32.totalorder %s204, %s205
      %p219 = scmp.eq.s32.totalorder %s39, 7
      %p220 = por %p218, %p219
      %p222 = scmp.ne.s32.totalorder %s205, %s221
      %p223 = scmp.eq.s32.totalorder %s39, 0
      %p224 = por %p222, %p223
      %s226 = sadd.s32 %s225, 1
      %p229 = scmp.eq.s32.totalorder %s33, 7
      %p230 = scmp.ne.s32.totalorder %s225, %s227
      %p231 = scmp.eq.s32.totalorder %s33, 0
      %p232 = por %p230, %p231
      %p233 = scmp.ne.s32.totalorder %s225, %s227
      %p234 = scmp.eq.s32.totalorder %s38, 7
      %p235 = por %p233, %p234
      %p236 = scmp.ne.s32.totalorder %s227, %s228
      %p237 = scmp.eq.s32.totalorder %s38, 0
      %p238 = por %p236, %p237
      %p239 = scmp.ne.s32.totalorder %s227, %s228
      %p240 = scmp.eq.s32.totalorder %s39, 7
      %p241 = por %p239, %p240
      %p243 = scmp.ne.s32.totalorder %s228, %s242
      %p244 = scmp.eq.s32.totalorder %s39, 0
      %p245 = por %p243, %p244
      %s247 = sadd.s32 %s246, 1
      %p250 = scmp.eq.s32.totalorder %s33, 7
      %p251 = scmp.ne.s32.totalorder %s246, %s248
      %p252 = scmp.eq.s32.totalorder %s33, 0
      %p253 = por %p251, %p252
      %p254 = scmp.ne.s32.totalorder %s246, %s248
      %p255 = scmp.eq.s32.totalorder %s38, 7
      %p256 = por %p254, %p255
      %p257 = scmp.ne.s32.totalorder %s248, %s249
      %p258 = scmp.eq.s32.totalorder %s38, 0
      %p259 = por %p257, %p258
      %p260 = scmp.ne.s32.totalorder %s248, %s249
      %p261 = scmp.eq.s32.totalorder %s39, 7
      %p262 = por %p260, %p261
      %p264 = scmp.ne.s32.totalorder %s249, %s263
      %p265 = scmp.eq.s32.totalorder %s39, 0
      %p266 = por %p264, %p265
      %s268 = sadd.s32 %s267, 1
      %p271 = scmp.eq.s32.totalorder %s33, 7
      %p272 = scmp.ne.s32.totalorder %s267, %s269
      %p273 = scmp.eq.s32.totalorder %s33, 0
      %p274 = por %p272, %p273
      %p275 = scmp.ne.s32.totalorder %s267, %s269
      %p276 = scmp.eq.s32.totalorder %s38, 7
      %p277 = por %p275, %p276
      %p278 = scmp.ne.s32.totalorder %s269, %s270
      %p279 = scmp.eq.s32.totalorder %s38, 0
      %p280 = por %p278, %p279
      %p281 = scmp.ne.s32.totalorder %s269, %s270
      %p282 = scmp.eq.s32.totalorder %s39, 7
      %p283 = por %p281, %p282
      %p285 = scmp.ne.s32.totalorder %s270, %s284
      %p286 = scmp.eq.s32.totalorder %s39, 0
      %p287 = por %p285, %p286
      %s289 = sadd.s32 %s288, 1
      %p292 = scmp.eq.s32.totalorder %s33, 7
      %p293 = scmp.ne.s32.totalorder %s288, %s290
      %p294 = scmp.eq.s32.totalorder %s33, 0
      %p295 = por %p293, %p294
      %p296 = scmp.ne.s32.totalorder %s288, %s290
      %p297 = scmp.eq.s32.totalorder %s38, 7
      %p298 = por %p296, %p297
      %p299 = scmp.ne.s32.totalorder %s290, %s291
      %p300 = scmp.eq.s32.totalorder %s38, 0
      %p301 = por %p299, %p300
      %p302 = scmp.ne.s32.totalorder %s290, %s291
      %p303 = scmp.eq.s32.totalorder %s39, 7
      %p304 = por %p302, %p303
      %p306 = scmp.ne.s32.totalorder %s291, %s305
      %p307 = scmp.eq.s32.totalorder %s39, 0
      %p308 = por %p306, %p307
      %s310 = sadd.s32 %s309, 1
      %p313 = scmp.eq.s32.totalorder %s33, 7
      %p314 = scmp.ne.s32.totalorder %s309, %s311
      %p315 = scmp.eq.s32.totalorder %s33, 0
      %p316 = por %p314, %p315
      %p317 = scmp.ne.s32.totalorder %s309, %s311
      %p318 = scmp.eq.s32.totalorder %s38, 7
      %p319 = por %p317, %p318
      %p320 = scmp.ne.s32.totalorder %s311, %s312
      %p321 = scmp.eq.s32.totalorder %s38, 0
      %p322 = por %p320, %p321
      %p323 = scmp.ne.s32.totalorder %s311, %s312
      %p324 = scmp.eq.s32.totalorder %s39, 7
      %p325 = por %p323, %p324
      %p327 = scmp.ne.s32.totalorder %s312, %s326
      %p328 = scmp.eq.s32.totalorder %s39, 0
      %p329 = por %p327, %p328
      %s330 = ssub.s32 %s40, %s52
      %p331 = scmp.eq.s32.totalorder %s330, 0
      %s333 = sadd.s32 %s332, 1
      %s334 = scalar_select %p331, %s332, %s333
      %p337 = pneg %p331
      %p338 = scmp.eq.s32.totalorder %s33, 7
      %p339 = por %p337, %p338
      %p340 = scmp.ne.s32.totalorder %s332, %s335
      %p341 = scmp.eq.s32.totalorder %s33, 0
      %p342 = por %p340, %p341
      %p343 = scmp.ne.s32.totalorder %s332, %s335
      %p344 = scmp.eq.s32.totalorder %s38, 7
      %p345 = por %p343, %p344
      %p346 = scmp.ne.s32.totalorder %s335, %s336
      %p347 = scmp.eq.s32.totalorder %s38, 0
      %p348 = por %p346, %p347
      %p349 = scmp.ne.s32.totalorder %s335, %s336
      %p350 = scmp.eq.s32.totalorder %s39, 7
      %p351 = por %p349, %p350
      %p353 = scmp.ne.s32.totalorder %s336, %s352
      %p354 = scmp.eq.s32.totalorder %s39, 0
      %p355 = por %p353, %p354
      %p356 = scmp.le.s32.totalorder 1, %s33
      %p357 = scmp.lt.s32.totalorder %s33, 9
      %p358 = pnand %p356, %p357
      %p359 = pneg %p358
      // Predicated region
      $region9: #{tpu_custom_call.1} parent=5 // pred_check
        _
      $region10: #{tpu_custom_call.1} parent=5 // pred_check_branch
        %361 = sbr.rel (%p358) target = $region12
      $region11: #{tpu_custom_call.1} parent=5 // pred_region
        %s362 = ssub.s32 %s33, 1
        // Predicated region
        $region13: #{tpu_custom_call.1} parent=11 // pred_check
          %p363 = pneg %p118
        $region14: #{tpu_custom_call.1} parent=11 // pred_check_branch
          %365 = sbr.rel (%p363) target = $region16
        $region15: #{tpu_custom_call.1} parent=11 // pred_region
          %367 = vsyncadd [#allocation9], 0
          %s369 = sshll.u32 %s2, 4
          %s370 = int_to_ptr.hbm [resolvable:$true] %s369
          %s371 = sshll.u32 [#allocation10], 4
          %s372 = int_to_ptr.vmem [resolvable:$true] %s371
          %374 = dma.hbm_to_vmem [thread:$0]  %s370, 32, %s372, [#allocation9]
        $region16: #{tpu_custom_call.1} parent=11 // pred_fallthru
          _
        // Predicated region
        $region17: #{tpu_custom_call.1} parent=11 // pred_check
          %p375 = pneg %p139
        $region18: #{tpu_custom_call.1} parent=11 // pred_check_branch
          %377 = sbr.rel (%p375) target = $region20
        $region19: #{tpu_custom_call.1} parent=11 // pred_region
          _
        $region20: #{tpu_custom_call.1} parent=11 // pred_fallthru
          _
        // Predicated region
        $region21: #{tpu_custom_call.1} parent=11 // pred_check
          %p378 = pneg %p238
        $region22: #{tpu_custom_call.1} parent=11 // pred_check_branch
          %380 = sbr.rel (%p378) target = $region24
        $region23: #{tpu_custom_call.1} parent=11 // pred_region
          _
        $region24: #{tpu_custom_call.1} parent=11 // pred_fallthru
          _
        // Predicated region
        $region25: #{tpu_custom_call.1} parent=11 // pred_check
          %p381 = pneg %p259
        $region26: #{tpu_custom_call.1} parent=11 // pred_check_branch
          %383 = sbr.rel (%p381) target = $region28
        $region27: #{tpu_custom_call.1} parent=11 // pred_region
          _
        $region28: #{tpu_custom_call.1} parent=11 // pred_fallthru
          _
        // Predicated region
        $region29: #{tpu_custom_call.1} parent=11 // pred_check
          %p384 = pneg %p280
        $region30: #{tpu_custom_call.1} parent=11 // pred_check_branch
          %386 = sbr.rel (%p384) target = $region32
        $region31: #{tpu_custom_call.1} parent=11 // pred_region
          _
        $region32: #{tpu_custom_call.1} parent=11 // pred_fallthru
          _
        // Predicated region
        $region33: #{tpu_custom_call.1} parent=11 // pred_check
          %p387 = pneg %p301
        $region34: #{tpu_custom_call.1} parent=11 // pred_check_branch
          %389 = sbr.rel (%p387) target = $region36
        $region35: #{tpu_custom_call.1} parent=11 // pred_region
          %391 = vsyncadd [#allocation15], 0
          %s392 = sshll.u32 %s10, 4
          %s393 = int_to_ptr.hbm [resolvable:$true] %s392
          %s394 = sshll.u32 [#allocation16], 4
          %s395 = int_to_ptr.vmem [resolvable:$true] %s394
          %400 = dma.hbm_to_vmem [thread:$0]  %s393, 4096, %s395, [#allocation15], 128, 128, 8
        $region36: #{tpu_custom_call.1} parent=11 // pred_fallthru
          _
        // Predicated region
        $region37: #{tpu_custom_call.1} parent=11 // pred_check
          %p401 = pneg %p322
        $region38: #{tpu_custom_call.1} parent=11 // pred_check_branch
          %403 = sbr.rel (%p401) target = $region40
        $region39: #{tpu_custom_call.1} parent=11 // pred_region
          _
        $region40: #{tpu_custom_call.1} parent=11 // pred_fallthru
          _
      $region12: #{tpu_custom_call.1} parent=5 // pred_fallthru
        _
      %p404 = scmp.lt.s32.totalorder %s33, 8
      // Predicated region
      $region41: #{tpu_custom_call.1} parent=5 // pred_check
        %p405 = pneg %p404
      $region42: #{tpu_custom_call.1} parent=5 // pred_check_branch
        %407 = sbr.rel (%p405) target = $region44
      $region43: #{tpu_custom_call.1} parent=5 // pred_region
        // Predicated region
        $region45: #{tpu_custom_call.1} parent=43 // pred_check
          %p408 = pneg %p65
        $region46: #{tpu_custom_call.1} parent=43 // pred_check_branch
          %410 = sbr.rel (%p408) target = $region48
        $region47: #{tpu_custom_call.1} parent=43 // pred_region
          %s411 = sand.u32 %s55, 1
          %s412 = scalar_lea.sflag [#allocation6], %s411
          %s413 = sand.u32 %s55, 1
          %s414 = smul.addr %s413, 384
          %s415 = scalar_lea.vmem [#allocation5], %s414
          %s416 = smul.u32 24, %s40
          %418 = vsyncadd %s412, 0
          %s419 = smul.addr %s416, 2
          %s420 = smul.addr %s419, 8
          %s421 = scalar_lea.hbm %s0, %s420
          %s422 = sshll.u32 %s421, 4
          %s423 = int_to_ptr.hbm [resolvable:$true] %s422
          %s424 = sshll.u32 %s415, 4
          %s425 = int_to_ptr.vmem [resolvable:$true] %s424
          %430 = dma.hbm_to_vmem [thread:$0]  %s423, 6144, %s425, %s412, 256, 256, 16
        $region48: #{tpu_custom_call.1} parent=43 // pred_fallthru
          _
        // Predicated region
        $region49: #{tpu_custom_call.1} parent=43 // pred_check
          %p431 = pneg %p91
        $region50: #{tpu_custom_call.1} parent=43 // pred_check_branch
          %433 = sbr.rel (%p431) target = $region52
        $region51: #{tpu_custom_call.1} parent=43 // pred_region
          %s434 = sand.u32 %s33, 1
          %s435 = scalar_lea.sflag [#allocation9], %s434
          %s436 = sand.u32 %s81, 1
          %s437 = smul.addr %s436, 384
          %s438 = scalar_lea.vmem [#allocation8], %s437
          %s439 = smul.u32 24, %s40
          %441 = vsyncadd %s435, 0
          %s442 = smul.addr %s439, 2
          %s443 = smul.addr %s442, 8
          %s444 = scalar_lea.hbm %s1, %s443
          %s445 = sshll.u32 %s444, 4
          %s446 = int_to_ptr.hbm [resolvable:$true] %s445
          %s447 = sshll.u32 %s438, 4
          %s448 = int_to_ptr.vmem [resolvable:$true] %s447
          %453 = dma.hbm_to_vmem [thread:$0]  %s446, 6144, %s448, %s435, 256, 256, 16
        $region52: #{tpu_custom_call.1} parent=43 // pred_fallthru
          _
        // Predicated region
        $region53: #{tpu_custom_call.1} parent=43 // pred_check
          %p454 = pneg %p159
        $region54: #{tpu_custom_call.1} parent=43 // pred_check_branch
          %456 = sbr.rel (%p454) target = $region56
        $region55: #{tpu_custom_call.1} parent=43 // pred_region
          %s457 = sand.u32 %s33, 1
          %s458 = scalar_lea.sflag [#allocation12], %s457
          %s459 = sand.u32 %s149, 1
          %s460 = smul.addr %s459, 256
          %s461 = scalar_lea.vmem [#allocation11], %s460
          %s462 = smul.u32 2, %s41
          %464 = vsyncadd %s458, 0
          %s465 = smul.addr %s462, 4
          %s466 = scalar_lea.hbm %s4, %s465
          %s467 = sshll.u32 %s466, 4
          %s468 = int_to_ptr.hbm [resolvable:$true] %s467
          %s469 = sshll.u32 %s461, 4
          %s470 = int_to_ptr.vmem [resolvable:$true] %s469
          %475 = dma.hbm_to_vmem [thread:$0]  %s468, 4096, %s470, %s458, 512, 128, 8
        $region56: #{tpu_custom_call.1} parent=43 // pred_fallthru
          _
        // Predicated region
        $region57: #{tpu_custom_call.1} parent=43 // pred_check
          %p476 = pneg %p185
        $region58: #{tpu_custom_call.1} parent=43 // pred_check_branch
          %478 = sbr.rel (%p476) target = $region60
        $region59: #{tpu_custom_call.1} parent=43 // pred_region
          %s479 = sand.u32 %s33, 1
          %s480 = scalar_lea.sflag [#allocation12], %s479
          %s481 = sand.u32 %s175, 1
          %s482 = smul.addr %s481, 2
          %s483 = scalar_lea.vmem [#allocation13], %s482
          %s484 = smul.u32 2, %s41
          %486 = vsyncadd %s480, 0
          %s487 = scalar_lea.hbm %s5, %s484
          %s489 = sshll.u32 %s487, 4
          %s490 = int_to_ptr.hbm [resolvable:$true] %s489
          %s491 = sshll.u32 %s483, 4
          %s492 = int_to_ptr.vmem [resolvable:$true] %s491
          %494 = dma.hbm_to_vmem [thread:$0]  %s490, 32, %s492, %s480
        $region60: #{tpu_custom_call.1} parent=43 // pred_fallthru
          _
        // Predicated region
        $region61: #{tpu_custom_call.1} parent=43 // pred_check
          %p495 = pneg %p211
        $region62: #{tpu_custom_call.1} parent=43 // pred_check_branch
          %497 = sbr.rel (%p495) target = $region64
        $region63: #{tpu_custom_call.1} parent=43 // pred_region
          %s498 = sand.u32 %s33, 1
          %s499 = scalar_lea.sflag [#allocation15], %s498
          %s500 = sand.u32 %s201, 1
          %s501 = smul.addr %s500, 256
          %s502 = scalar_lea.vmem [#allocation14], %s501
          %s503 = smul.u32 32, %s41
          %505 = vsyncadd %s499, 0
          %s506 = smul.addr %s503, 2
          %s507 = smul.addr %s506, 4
          %s508 = scalar_lea.hbm %s6, %s507
          %s509 = sshll.u32 %s508, 4
          %s510 = int_to_ptr.hbm [resolvable:$true] %s509
          %s511 = sshll.u32 %s502, 4
          %s512 = int_to_ptr.vmem [resolvable:$true] %s511
          %517 = dma.hbm_to_vmem [thread:$0]  %s510, 4096, %s512, %s499, 128, 128, 8
        $region64: #{tpu_custom_call.1} parent=43 // pred_fallthru
          _
      $region44: #{tpu_custom_call.1} parent=5 // pred_fallthru
        _
      %p518 = scmp.le.s32.totalorder 1, %s33
      %p519 = scmp.lt.s32.totalorder %s33, 9
      %p520 = pnand %p518, %p519
      %p521 = pneg %p520
      // Predicated region
      $region65: #{tpu_custom_call.1} parent=5 // pred_check
        _
      $region66: #{tpu_custom_call.1} parent=5 // pred_check_branch
        %523 = sbr.rel (%p520) target = $region68
      $region67: #{tpu_custom_call.1} parent=5 // pred_region
        %s524 = ssub.s32 %s33, 1
        %s525 = sand.u32 %s58, 1
        %s526 = scalar_lea.sflag [#allocation6], %s525
        %s527 = sand.u32 %s58, 1
        %s528 = smul.addr %s527, 384
        %s529 = scalar_lea.vmem [#allocation5], %s528
        // Predicated region
        $region69: #{tpu_custom_call.1} parent=67 // pred_check
          %p530 = pneg %p71
        $region70: #{tpu_custom_call.1} parent=67 // pred_check_branch
          %532 = sbr.rel (%p530) target = $region72
        $region71: #{tpu_custom_call.1} parent=67 // pred_region
          %534 = dma.done %s526, 6144
        $region72: #{tpu_custom_call.1} parent=67 // pred_fallthru
          _
        %s535 = sand.u32 %s38, 1
        %s536 = scalar_lea.sflag [#allocation9], %s535
        %s537 = sand.u32 %s84, 1
        %s538 = smul.addr %s537, 384
        %s539 = scalar_lea.vmem [#allocation8], %s538
        // Predicated region
        $region73: #{tpu_custom_call.1} parent=67 // pred_check
          %p540 = pneg %p97
        $region74: #{tpu_custom_call.1} parent=67 // pred_check_branch
          %542 = sbr.rel (%p540) target = $region76
        $region75: #{tpu_custom_call.1} parent=67 // pred_region
          %544 = dma.done %s536, 6144
        $region76: #{tpu_custom_call.1} parent=67 // pred_fallthru
          _
        // Predicated region
        $region77: #{tpu_custom_call.1} parent=67 // pred_check
          %p545 = pneg %p118
        $region78: #{tpu_custom_call.1} parent=67 // pred_check_branch
          %547 = sbr.rel (%p545) target = $region80
        $region79: #{tpu_custom_call.1} parent=67 // pred_region
          %549 = dma.done [#allocation9], 32
        $region80: #{tpu_custom_call.1} parent=67 // pred_fallthru
          _
        %s550 = sand.u32 %s38, 1
        %s551 = scalar_lea.sflag [#allocation12], %s550
        %s552 = sand.u32 %s152, 1
        %s553 = smul.addr %s552, 256
        %s554 = scalar_lea.vmem [#allocation11], %s553
        // Predicated region
        $region81: #{tpu_custom_call.1} parent=67 // pred_check
          %p555 = pneg %p165
        $region82: #{tpu_custom_call.1} parent=67 // pred_check_branch
          %557 = sbr.rel (%p555) target = $region84
        $region83: #{tpu_custom_call.1} parent=67 // pred_region
          %559 = dma.done %s551, 4096
        $region84: #{tpu_custom_call.1} parent=67 // pred_fallthru
          _
        %s560 = sand.u32 %s38, 1
        %s561 = scalar_lea.sflag [#allocation12], %s560
        %s562 = sand.u32 %s178, 1
        %s563 = smul.addr %s562, 2
        %s564 = scalar_lea.vmem [#allocation13], %s563
        // Predicated region
        $region85: #{tpu_custom_call.1} parent=67 // pred_check
          %p565 = pneg %p191
        $region86: #{tpu_custom_call.1} parent=67 // pred_check_branch
          %567 = sbr.rel (%p565) target = $region88
        $region87: #{tpu_custom_call.1} parent=67 // pred_region
          %569 = dma.done %s561, 32
        $region88: #{tpu_custom_call.1} parent=67 // pred_fallthru
          _
        %s570 = sand.u32 %s38, 1
        %s571 = scalar_lea.sflag [#allocation15], %s570
        %s572 = sand.u32 %s204, 1
        %s573 = smul.addr %s572, 256
        %s574 = scalar_lea.vmem [#allocation14], %s573
        // Predicated region
        $region89: #{tpu_custom_call.1} parent=67 // pred_check
          %p575 = pneg %p217
        $region90: #{tpu_custom_call.1} parent=67 // pred_check_branch
          %577 = sbr.rel (%p575) target = $region92
        $region91: #{tpu_custom_call.1} parent=67 // pred_region
          %579 = dma.done %s571, 4096
        $region92: #{tpu_custom_call.1} parent=67 // pred_fallthru
          _
        // Predicated region
        $region93: #{tpu_custom_call.1} parent=67 // pred_check
          %p580 = pneg %p301
        $region94: #{tpu_custom_call.1} parent=67 // pred_check_branch
          %582 = sbr.rel (%p580) target = $region96
        $region95: #{tpu_custom_call.1} parent=67 // pred_region
          %584 = dma.done [#allocation15], 4096
        $region96: #{tpu_custom_call.1} parent=67 // pred_fallthru
          _
        %s585 = sand.u32 %s58, 1
        %s586 = scalar_lea.sflag [#allocation6], %s585
        %s587 = sand.u32 %s58, 1
        %s588 = smul.addr %s587, 384
        %s589 = scalar_lea.vmem [#allocation5], %s588
        %p590 = pneg %p71
        %p591 = pneg %p68
        %s592 = sand.u32 %s38, 1
        %s593 = scalar_lea.sflag [#allocation9], %s592
        %s594 = sand.u32 %s84, 1
        %s595 = smul.addr %s594, 384
        %s596 = scalar_lea.vmem [#allocation8], %s595
        %p597 = pneg %p97
        %p598 = pneg %p94
        %p599 = pneg %p118
        %p600 = pneg %p115
        %p601 = pneg %p139
        %p602 = pneg %p136
        %s603 = sand.u32 %s38, 1
        %s604 = scalar_lea.sflag [#allocation12], %s603
        %s605 = sand.u32 %s152, 1
        %s606 = smul.addr %s605, 256
        %s607 = scalar_lea.vmem [#allocation11], %s606
        %p608 = pneg %p165
        %p609 = pneg %p162
        %s610 = sand.u32 %s38, 1
        %s611 = scalar_lea.sflag [#allocation12], %s610
        %s612 = sand.u32 %s178, 1
        %s613 = smul.addr %s612, 2
        %s614 = scalar_lea.vmem [#allocation13], %s613
        %p615 = pneg %p191
        %p616 = pneg %p188
        %s617 = sand.u32 %s38, 1
        %s618 = scalar_lea.sflag [#allocation15], %s617
        %s619 = sand.u32 %s204, 1
        %s620 = smul.addr %s619, 256
        %s621 = scalar_lea.vmem [#allocation14], %s620
        %p622 = pneg %p217
        %p623 = pneg %p214
        %p624 = pneg %p238
        %p625 = pneg %p235
        %p626 = pneg %p259
        %p627 = pneg %p256
        %p628 = pneg %p280
        %p629 = pneg %p277
        %p630 = pneg %p301
        %p631 = pneg %p298
        %p632 = pneg %p322
        %p633 = pneg %p319
        %p634 = pneg %p348
        %p635 = pneg %p345
        %s636 = sand.u32 %s335, 1
        %s637 = scalar_lea.sflag [#allocation7], %s636
        %s638 = sand.u32 %s335, 1
        %s639 = smul.addr %s638, 384
        %s640 = scalar_lea.vmem [#allocation17], %s639
        %s641 = smul.u32 24, %s42
        %s642 = smul.u32 24, %s42
        %s643 = smul.u32 2, %s43
        %s644 = smul.u32 2, %s43
        %s645 = smul.u32 32, %s43
        %s646 = smul.u32 24, %s42
        %p647 = scmp.eq.s32.totalorder %s43, 0
        // Predicated region
        $region97: #{tpu_custom_call.1} parent=67 // pred_check
          %p648 = pneg %p647
        $region98: #{tpu_custom_call.1} parent=67 // pred_check_branch
          %650 = sbr.rel (%p648) target = $region100
        $region99: #{tpu_custom_call.1} parent=67 // pred_region
          %v651 = vld [vmem:[%s529] sm:$0xff]
          %v652 = vld [vmem:[%s529 + $0x8] sm:$0xff]
          %v653 = vld [vmem:[%s529 + $0x10] sm:$0xff]
          %v654 = vld [vmem:[%s529 + $0x18] sm:$0xff]
          %v655 = vld [vmem:[%s529 + $0x20] sm:$0xff]
          %v656 = vld [vmem:[%s529 + $0x28] sm:$0xff]
          %v657 = vld [vmem:[%s529 + $0x30] sm:$0xff]
          %v658 = vld [vmem:[%s529 + $0x38] sm:$0xff]
          %v659 = vld [vmem:[%s529 + $0x40] sm:$0xff]
          %v660 = vld [vmem:[%s529 + $0x48] sm:$0xff]
          %v661 = vld [vmem:[%s529 + $0x50] sm:$0xff]
          %v662 = vld [vmem:[%s529 + $0x58] sm:$0xff]
          %v663 = vld [vmem:[%s529 + $0x60] sm:$0xff]
          %v664 = vld [vmem:[%s529 + $0x68] sm:$0xff]
          %v665 = vld [vmem:[%s529 + $0x70] sm:$0xff]
          %v666 = vld [vmem:[%s529 + $0x78] sm:$0xff]
          %v667 = vld [vmem:[%s529 + $0x80] sm:$0xff]
          %v668 = vld [vmem:[%s529 + $0x88] sm:$0xff]
          %v669 = vld [vmem:[%s529 + $0x90] sm:$0xff]
          %v670 = vld [vmem:[%s529 + $0x98] sm:$0xff]
          %v671 = vld [vmem:[%s529 + $0xa0] sm:$0xff]
          %v672 = vld [vmem:[%s529 + $0xa8] sm:$0xff]
          %v673 = vld [vmem:[%s529 + $0xb0] sm:$0xff]
          %v674 = vld [vmem:[%s529 + $0xb8] sm:$0xff]
          %v675 = vld [vmem:[%s529 + $0xc0] sm:$0xff]
          %v676 = vld [vmem:[%s529 + $0xc8] sm:$0xff]
          %v677 = vld [vmem:[%s529 + $0xd0] sm:$0xff]
          %v678 = vld [vmem:[%s529 + $0xd8] sm:$0xff]
          %v679 = vld [vmem:[%s529 + $0xe0] sm:$0xff]
          %v680 = vld [vmem:[%s529 + $0xe8] sm:$0xff]
          %v681 = vld [vmem:[%s529 + $0xf0] sm:$0xff]
          %v682 = vld [vmem:[%s529 + $0xf8] sm:$0xff]
          %v683 = vld [vmem:[%s529 + $0x100] sm:$0xff]
          %v684 = vld [vmem:[%s529 + $0x108] sm:$0xff]
          %v685 = vld [vmem:[%s529 + $0x110] sm:$0xff]
          %v686 = vld [vmem:[%s529 + $0x118] sm:$0xff]
          %v687 = vld [vmem:[%s529 + $0x120] sm:$0xff]
          %v688 = vld [vmem:[%s529 + $0x128] sm:$0xff]
          %v689 = vld [vmem:[%s529 + $0x130] sm:$0xff]
          %v690 = vld [vmem:[%s529 + $0x138] sm:$0xff]
          %v691 = vld [vmem:[%s529 + $0x140] sm:$0xff]
          %v692 = vld [vmem:[%s529 + $0x148] sm:$0xff]
          %v693 = vld [vmem:[%s529 + $0x150] sm:$0xff]
          %v694 = vld [vmem:[%s529 + $0x158] sm:$0xff]
          %v695 = vld [vmem:[%s529 + $0x160] sm:$0xff]
          %v696 = vld [vmem:[%s529 + $0x168] sm:$0xff]
          %v697 = vld [vmem:[%s529 + $0x170] sm:$0xff]
          %v698 = vld [vmem:[%s529 + $0x178] sm:$0xff]
          %v699 = vld [vmem:[%s539] sm:$0xff]
          %v700 = vld [vmem:[%s539 + $0x8] sm:$0xff]
          %v701 = vld [vmem:[%s539 + $0x10] sm:$0xff]
          %v702 = vld [vmem:[%s539 + $0x18] sm:$0xff]
          %v703 = vld [vmem:[%s539 + $0x20] sm:$0xff]
          %v704 = vld [vmem:[%s539 + $0x28] sm:$0xff]
          %v705 = vld [vmem:[%s539 + $0x30] sm:$0xff]
          %v706 = vld [vmem:[%s539 + $0x38] sm:$0xff]
          %v707 = vld [vmem:[%s539 + $0x40] sm:$0xff]
          %v708 = vld [vmem:[%s539 + $0x48] sm:$0xff]
          %v709 = vld [vmem:[%s539 + $0x50] sm:$0xff]
          %v710 = vld [vmem:[%s539 + $0x58] sm:$0xff]
          %v711 = vld [vmem:[%s539 + $0x60] sm:$0xff]
          %v712 = vld [vmem:[%s539 + $0x68] sm:$0xff]
          %v713 = vld [vmem:[%s539 + $0x70] sm:$0xff]
          %v714 = vld [vmem:[%s539 + $0x78] sm:$0xff]
          %v715 = vld [vmem:[%s539 + $0x80] sm:$0xff]
          %v716 = vld [vmem:[%s539 + $0x88] sm:$0xff]
          %v717 = vld [vmem:[%s539 + $0x90] sm:$0xff]
          %v718 = vld [vmem:[%s539 + $0x98] sm:$0xff]
          %v719 = vld [vmem:[%s539 + $0xa0] sm:$0xff]
          %v720 = vld [vmem:[%s539 + $0xa8] sm:$0xff]
          %v721 = vld [vmem:[%s539 + $0xb0] sm:$0xff]
          %v722 = vld [vmem:[%s539 + $0xb8] sm:$0xff]
          %v723 = vld [vmem:[%s539 + $0xc0] sm:$0xff]
          %v724 = vld [vmem:[%s539 + $0xc8] sm:$0xff]
          %v725 = vld [vmem:[%s539 + $0xd0] sm:$0xff]
          %v726 = vld [vmem:[%s539 + $0xd8] sm:$0xff]
          %v727 = vld [vmem:[%s539 + $0xe0] sm:$0xff]
          %v728 = vld [vmem:[%s539 + $0xe8] sm:$0xff]
          %v729 = vld [vmem:[%s539 + $0xf0] sm:$0xff]
          %v730 = vld [vmem:[%s539 + $0xf8] sm:$0xff]
          %v731 = vld [vmem:[%s539 + $0x100] sm:$0xff]
          %v732 = vld [vmem:[%s539 + $0x108] sm:$0xff]
          %v733 = vld [vmem:[%s539 + $0x110] sm:$0xff]
          %v734 = vld [vmem:[%s539 + $0x118] sm:$0xff]
          %v735 = vld [vmem:[%s539 + $0x120] sm:$0xff]
          %v736 = vld [vmem:[%s539 + $0x128] sm:$0xff]
          %v737 = vld [vmem:[%s539 + $0x130] sm:$0xff]
          %v738 = vld [vmem:[%s539 + $0x138] sm:$0xff]
          %v739 = vld [vmem:[%s539 + $0x140] sm:$0xff]
          %v740 = vld [vmem:[%s539 + $0x148] sm:$0xff]
          %v741 = vld [vmem:[%s539 + $0x150] sm:$0xff]
          %v742 = vld [vmem:[%s539 + $0x158] sm:$0xff]
          %v743 = vld [vmem:[%s539 + $0x160] sm:$0xff]
          %v744 = vld [vmem:[%s539 + $0x168] sm:$0xff]
          %v745 = vld [vmem:[%s539 + $0x170] sm:$0xff]
          %v746 = vld [vmem:[%s539 + $0x178] sm:$0xff]
          %v747 = vadd.f32 %v651, %v699
          %v748 = vadd.f32 %v652, %v700
          %v749 = vadd.f32 %v653, %v701
          %v750 = vadd.f32 %v654, %v702
          %v751 = vadd.f32 %v655, %v703
          %v752 = vadd.f32 %v656, %v704
          %v753 = vadd.f32 %v657, %v705
          %v754 = vadd.f32 %v658, %v706
          %v755 = vadd.f32 %v659, %v707
          %v756 = vadd.f32 %v660, %v708
          %v757 = vadd.f32 %v661, %v709
          %v758 = vadd.f32 %v662, %v710
          %v759 = vadd.f32 %v663, %v711
          %v760 = vadd.f32 %v664, %v712
          %v761 = vadd.f32 %v665, %v713
          %v762 = vadd.f32 %v666, %v714
          %v763 = vadd.f32 %v667, %v715
          %v764 = vadd.f32 %v668, %v716
          %v765 = vadd.f32 %v669, %v717
          %v766 = vadd.f32 %v670, %v718
          %v767 = vadd.f32 %v671, %v719
          %v768 = vadd.f32 %v672, %v720
          %v769 = vadd.f32 %v673, %v721
          %v770 = vadd.f32 %v674, %v722
          %v771 = vadd.f32 %v675, %v723
          %v772 = vadd.f32 %v676, %v724
          %v773 = vadd.f32 %v677, %v725
          %v774 = vadd.f32 %v678, %v726
          %v775 = vadd.f32 %v679, %v727
          %v776 = vadd.f32 %v680, %v728
          %v777 = vadd.f32 %v681, %v729
          %v778 = vadd.f32 %v682, %v730
          %v779 = vadd.f32 %v683, %v731
          %v780 = vadd.f32 %v684, %v732
          %v781 = vadd.f32 %v685, %v733
          %v782 = vadd.f32 %v686, %v734
          %v783 = vadd.f32 %v687, %v735
          %v784 = vadd.f32 %v688, %v736
          %v785 = vadd.f32 %v689, %v737
          %v786 = vadd.f32 %v690, %v738
          %v787 = vadd.f32 %v691, %v739
          %v788 = vadd.f32 %v692, %v740
          %v789 = vadd.f32 %v693, %v741
          %v790 = vadd.f32 %v694, %v742
          %v791 = vadd.f32 %v695, %v743
          %v792 = vadd.f32 %v696, %v744
          %v793 = vadd.f32 %v697, %v745
          %v794 = vadd.f32 %v698, %v746
          %v795 = vld [vmem:[#allocation10] sm:$0x3]
          %v796 = vld [vmem:[%s3] sm:$0x3]
          %v797 = vadd.f32 %v747, %v748
          %798 = vadd.xlane.f32.xlu0 %v797
          %v799 = vpop.xlane.xlu0 %798
          %v800 = vadd.f32 %v749, %v750
          %801 = vadd.xlane.f32.xlu0 %v800
          %v802 = vpop.xlane.xlu0 %801
          %v803 = vadd.f32 %v751, %v752
          %804 = vadd.xlane.f32.xlu0 %v803
          %v805 = vpop.xlane.xlu0 %804
          %v806 = vadd.f32 %v753, %v754
          %807 = vadd.xlane.f32.xlu0 %v806
          %v808 = vpop.xlane.xlu0 %807
          %v809 = vadd.f32 %v755, %v756
          %810 = vadd.xlane.f32.xlu0 %v809
          %v811 = vpop.xlane.xlu0 %810
          %v812 = vadd.f32 %v757, %v758
          %813 = vadd.xlane.f32.xlu0 %v812
          %v814 = vpop.xlane.xlu0 %813
          %v815 = vadd.f32 %v759, %v760
          %816 = vadd.xlane.f32.xlu0 %v815
          %v817 = vpop.xlane.xlu0 %816
          %v818 = vadd.f32 %v761, %v762
          %819 = vadd.xlane.f32.xlu0 %v818
          %v820 = vpop.xlane.xlu0 %819
          %v821 = vadd.f32 %v763, %v764
          %822 = vadd.xlane.f32.xlu0 %v821
          %v823 = vpop.xlane.xlu0 %822
          %v824 = vadd.f32 %v765, %v766
          %825 = vadd.xlane.f32.xlu0 %v824
          %v826 = vpop.xlane.xlu0 %825
          %v827 = vadd.f32 %v767, %v768
          %828 = vadd.xlane.f32.xlu0 %v827
          %v829 = vpop.xlane.xlu0 %828
          %v830 = vadd.f32 %v769, %v770
          %831 = vadd.xlane.f32.xlu0 %v830
          %v832 = vpop.xlane.xlu0 %831
          %v833 = vadd.f32 %v771, %v772
          %834 = vadd.xlane.f32.xlu0 %v833
          %v835 = vpop.xlane.xlu0 %834
          %v836 = vadd.f32 %v773, %v774
          %837 = vadd.xlane.f32.xlu0 %v836
          %v838 = vpop.xlane.xlu0 %837
          %v839 = vadd.f32 %v775, %v776
          %840 = vadd.xlane.f32.xlu0 %v839
          %v841 = vpop.xlane.xlu0 %840
          %v842 = vadd.f32 %v777, %v778
          %843 = vadd.xlane.f32.xlu0 %v842
          %v844 = vpop.xlane.xlu0 %843
          %v845 = vadd.f32 %v779, %v780
          %846 = vadd.xlane.f32.xlu0 %v845
          %v847 = vpop.xlane.xlu0 %846
          %v848 = vadd.f32 %v781, %v782
          %849 = vadd.xlane.f32.xlu0 %v848
          %v850 = vpop.xlane.xlu0 %849
          %v851 = vadd.f32 %v783, %v784
          %852 = vadd.xlane.f32.xlu0 %v851
          %v853 = vpop.xlane.xlu0 %852
          %v854 = vadd.f32 %v785, %v786
          %855 = vadd.xlane.f32.xlu0 %v854
          %v856 = vpop.xlane.xlu0 %855
          %v857 = vadd.f32 %v787, %v788
          %858 = vadd.xlane.f32.xlu0 %v857
          %v859 = vpop.xlane.xlu0 %858
          %v860 = vadd.f32 %v789, %v790
          %861 = vadd.xlane.f32.xlu0 %v860
          %v862 = vpop.xlane.xlu0 %861
          %v863 = vadd.f32 %v791, %v792
          %864 = vadd.xlane.f32.xlu0 %v863
          %v865 = vpop.xlane.xlu0 %864
          %v866 = vadd.f32 %v793, %v794
          %867 = vadd.xlane.f32.xlu0 %v866
          %v868 = vpop.xlane.xlu0 %867
          %v869 = vrcp.pop 256.0
          %v870 = vmul.f32 256.0, %v869
          %v871 = vsub.f32 1.0, %v870
          %v872 = vmul.f32 %v869, %v871
          %v873 = vadd.f32 %v869, %v872
          %vm874 = vweird.f32 %v869
          %v875 = vsel %vm874, %v869, %v873
          %v876 = vmul.f32 %v799, %v875
          %v877 = vmul.f32 %v802, %v875
          %v878 = vmul.f32 %v805, %v875
          %v879 = vmul.f32 %v808, %v875
          %v880 = vmul.f32 %v811, %v875
          %v881 = vmul.f32 %v814, %v875
          %v882 = vmul.f32 %v817, %v875
          %v883 = vmul.f32 %v820, %v875
          %v884 = vmul.f32 %v823, %v875
          %v885 = vmul.f32 %v826, %v875
          %v886 = vmul.f32 %v829, %v875
          %v887 = vmul.f32 %v832, %v875
          %v888 = vmul.f32 %v835, %v875
          %v889 = vmul.f32 %v838, %v875
          %v890 = vmul.f32 %v841, %v875
          %v891 = vmul.f32 %v844, %v875
          %v892 = vmul.f32 %v847, %v875
          %v893 = vmul.f32 %v850, %v875
          %v894 = vmul.f32 %v853, %v875
          %v895 = vmul.f32 %v856, %v875
          %v896 = vmul.f32 %v859, %v875
          %v897 = vmul.f32 %v862, %v875
          %v898 = vmul.f32 %v865, %v875
          %v899 = vmul.f32 %v868, %v875
          %v900 = vmul.f32 %v747, %v747
          %v901 = vmul.f32 %v748, %v748
          %v902 = vmul.f32 %v749, %v749
          %v903 = vmul.f32 %v750, %v750
          %v904 = vmul.f32 %v751, %v751
          %v905 = vmul.f32 %v752, %v752
          %v906 = vmul.f32 %v753, %v753
          %v907 = vmul.f32 %v754, %v754
          %v908 = vmul.f32 %v755, %v755
          %v909 = vmul.f32 %v756, %v756
          %v910 = vmul.f32 %v757, %v757
          %v911 = vmul.f32 %v758, %v758
          %v912 = vmul.f32 %v759, %v759
          %v913 = vmul.f32 %v760, %v760
          %v914 = vmul.f32 %v761, %v761
          %v915 = vmul.f32 %v762, %v762
          %v916 = vmul.f32 %v763, %v763
          %v917 = vmul.f32 %v764, %v764
          %v918 = vmul.f32 %v765, %v765
          %v919 = vmul.f32 %v766, %v766
          %v920 = vmul.f32 %v767, %v767
          %v921 = vmul.f32 %v768, %v768
          %v922 = vmul.f32 %v769, %v769
          %v923 = vmul.f32 %v770, %v770
          %v924 = vmul.f32 %v771, %v771
          %v925 = vmul.f32 %v772, %v772
          %v926 = vmul.f32 %v773, %v773
          %v927 = vmul.f32 %v774, %v774
          %v928 = vmul.f32 %v775, %v775
          %v929 = vmul.f32 %v776, %v776
          %v930 = vmul.f32 %v777, %v777
          %v931 = vmul.f32 %v778, %v778
          %v932 = vmul.f32 %v779, %v779
          %v933 = vmul.f32 %v780, %v780
          %v934 = vmul.f32 %v781, %v781
          %v935 = vmul.f32 %v782, %v782
          %v936 = vmul.f32 %v783, %v783
          %v937 = vmul.f32 %v784, %v784
          %v938 = vmul.f32 %v785, %v785
          %v939 = vmul.f32 %v786, %v786
          %v940 = vmul.f32 %v787, %v787
          %v941 = vmul.f32 %v788, %v788
          %v942 = vmul.f32 %v789, %v789
          %v943 = vmul.f32 %v790, %v790
          %v944 = vmul.f32 %v791, %v791
          %v945 = vmul.f32 %v792, %v792
          %v946 = vmul.f32 %v793, %v793
          %v947 = vmul.f32 %v794, %v794
          %v948 = vadd.f32 %v900, %v901
          %949 = vadd.xlane.f32.xlu0 %v948
          %v950 = vpop.xlane.xlu0 %949
          %v951 = vadd.f32 %v902, %v903
          %952 = vadd.xlane.f32.xlu0 %v951
          %v953 = vpop.xlane.xlu0 %952
          %v954 = vadd.f32 %v904, %v905
          %955 = vadd.xlane.f32.xlu0 %v954
          %v956 = vpop.xlane.xlu0 %955
          %v957 = vadd.f32 %v906, %v907
          %958 = vadd.xlane.f32.xlu0 %v957
          %v959 = vpop.xlane.xlu0 %958
          %v960 = vadd.f32 %v908, %v909
          %961 = vadd.xlane.f32.xlu0 %v960
          %v962 = vpop.xlane.xlu0 %961
          %v963 = vadd.f32 %v910, %v911
          %964 = vadd.xlane.f32.xlu0 %v963
          %v965 = vpop.xlane.xlu0 %964
          %v966 = vadd.f32 %v912, %v913
          %967 = vadd.xlane.f32.xlu0 %v966
          %v968 = vpop.xlane.xlu0 %967
          %v969 = vadd.f32 %v914, %v915
          %970 = vadd.xlane.f32.xlu0 %v969
          %v971 = vpop.xlane.xlu0 %970
          %v972 = vadd.f32 %v916, %v917
          %973 = vadd.xlane.f32.xlu0 %v972
          %v974 = vpop.xlane.xlu0 %973
          %v975 = vadd.f32 %v918, %v919
          %976 = vadd.xlane.f32.xlu0 %v975
          %v977 = vpop.xlane.xlu0 %976
          %v978 = vadd.f32 %v920, %v921
          %979 = vadd.xlane.f32.xlu0 %v978
          %v980 = vpop.xlane.xlu0 %979
          %v981 = vadd.f32 %v922, %v923
          %982 = vadd.xlane.f32.xlu0 %v981
          %v983 = vpop.xlane.xlu0 %982
          %v984 = vadd.f32 %v924, %v925
          %985 = vadd.xlane.f32.xlu0 %v984
          %v986 = vpop.xlane.xlu0 %985
          %v987 = vadd.f32 %v926, %v927
          %988 = vadd.xlane.f32.xlu0 %v987
          %v989 = vpop.xlane.xlu0 %988
          %v990 = vadd.f32 %v928, %v929
          %991 = vadd.xlane.f32.xlu0 %v990
          %v992 = vpop.xlane.xlu0 %991
          %v993 = vadd.f32 %v930, %v931
          %994 = vadd.xlane.f32.xlu0 %v993
          %v995 = vpop.xlane.xlu0 %994
          %v996 = vadd.f32 %v932, %v933
          %997 = vadd.xlane.f32.xlu0 %v996
          %v998 = vpop.xlane.xlu0 %997
          %v999 = vadd.f32 %v934, %v935
          %1000 = vadd.xlane.f32.xlu0 %v999
          %v1001 = vpop.xlane.xlu0 %1000
          %v1002 = vadd.f32 %v936, %v937
          %1003 = vadd.xlane.f32.xlu0 %v1002
          %v1004 = vpop.xlane.xlu0 %1003
          %v1005 = vadd.f32 %v938, %v939
          %1006 = vadd.xlane.f32.xlu0 %v1005
          %v1007 = vpop.xlane.xlu0 %1006
          %v1008 = vadd.f32 %v940, %v941
          %1009 = vadd.xlane.f32.xlu0 %v1008
          %v1010 = vpop.xlane.xlu0 %1009
          %v1011 = vadd.f32 %v942, %v943
          %1012 = vadd.xlane.f32.xlu0 %v1011
          %v1013 = vpop.xlane.xlu0 %1012
          %v1014 = vadd.f32 %v944, %v945
          %1015 = vadd.xlane.f32.xlu0 %v1014
          %v1016 = vpop.xlane.xlu0 %1015
          %v1017 = vadd.f32 %v946, %v947
          %1018 = vadd.xlane.f32.xlu0 %v1017
          %v1019 = vpop.xlane.xlu0 %1018
          %v1020 = vmul.f32 %v950, %v875
          %v1021 = vmul.f32 %v953, %v875
          %v1022 = vmul.f32 %v956, %v875
          %v1023 = vmul.f32 %v959, %v875
          %v1024 = vmul.f32 %v962, %v875
          %v1025 = vmul.f32 %v965, %v875
          %v1026 = vmul.f32 %v968, %v875
          %v1027 = vmul.f32 %v971, %v875
          %v1028 = vmul.f32 %v974, %v875
          %v1029 = vmul.f32 %v977, %v875
          %v1030 = vmul.f32 %v980, %v875
          %v1031 = vmul.f32 %v983, %v875
          %v1032 = vmul.f32 %v986, %v875
          %v1033 = vmul.f32 %v989, %v875
          %v1034 = vmul.f32 %v992, %v875
          %v1035 = vmul.f32 %v995, %v875
          %v1036 = vmul.f32 %v998, %v875
          %v1037 = vmul.f32 %v1001, %v875
          %v1038 = vmul.f32 %v1004, %v875
          %v1039 = vmul.f32 %v1007, %v875
          %v1040 = vmul.f32 %v1010, %v875
          %v1041 = vmul.f32 %v1013, %v875
          %v1042 = vmul.f32 %v1016, %v875
          %v1043 = vmul.f32 %v1019, %v875
          %v1044 = vmul.f32 %v876, %v876
          %v1045 = vmul.f32 %v877, %v877
          %v1046 = vmul.f32 %v878, %v878
          %v1047 = vmul.f32 %v879, %v879
          %v1048 = vmul.f32 %v880, %v880
          %v1049 = vmul.f32 %v881, %v881
          %v1050 = vmul.f32 %v882, %v882
          %v1051 = vmul.f32 %v883, %v883
          %v1052 = vmul.f32 %v884, %v884
          %v1053 = vmul.f32 %v885, %v885
          %v1054 = vmul.f32 %v886, %v886
          %v1055 = vmul.f32 %v887, %v887
          %v1056 = vmul.f32 %v888, %v888
          %v1057 = vmul.f32 %v889, %v889
          %v1058 = vmul.f32 %v890, %v890
          %v1059 = vmul.f32 %v891, %v891
          %v1060 = vmul.f32 %v892, %v892
          %v1061 = vmul.f32 %v893, %v893
          %v1062 = vmul.f32 %v894, %v894
          %v1063 = vmul.f32 %v895, %v895
          %v1064 = vmul.f32 %v896, %v896
          %v1065 = vmul.f32 %v897, %v897
          %v1066 = vmul.f32 %v898, %v898
          %v1067 = vmul.f32 %v899, %v899
          %v1068 = vsub.f32 %v1020, %v1044
          %v1069 = vsub.f32 %v1021, %v1045
          %v1070 = vsub.f32 %v1022, %v1046
          %v1071 = vsub.f32 %v1023, %v1047
          %v1072 = vsub.f32 %v1024, %v1048
          %v1073 = vsub.f32 %v1025, %v1049
          %v1074 = vsub.f32 %v1026, %v1050
          %v1075 = vsub.f32 %v1027, %v1051
          %v1076 = vsub.f32 %v1028, %v1052
          %v1077 = vsub.f32 %v1029, %v1053
          %v1078 = vsub.f32 %v1030, %v1054
          %v1079 = vsub.f32 %v1031, %v1055
          %v1080 = vsub.f32 %v1032, %v1056
          %v1081 = vsub.f32 %v1033, %v1057
          %v1082 = vsub.f32 %v1034, %v1058
          %v1083 = vsub.f32 %v1035, %v1059
          %v1084 = vsub.f32 %v1036, %v1060
          %v1085 = vsub.f32 %v1037, %v1061
          %v1086 = vsub.f32 %v1038, %v1062
          %v1087 = vsub.f32 %v1039, %v1063
          %v1088 = vsub.f32 %v1040, %v1064
          %v1089 = vsub.f32 %v1041, %v1065
          %v1090 = vsub.f32 %v1042, %v1066
          %v1091 = vsub.f32 %v1043, %v1067
          %v1092 = vmax.f32 %v1068, 0.0
          %v1093 = vmax.f32 %v1069, 0.0
          %v1094 = vmax.f32 %v1070, 0.0
          %v1095 = vmax.f32 %v1071, 0.0
          %v1096 = vmax.f32 %v1072, 0.0
          %v1097 = vmax.f32 %v1073, 0.0
          %v1098 = vmax.f32 %v1074, 0.0
          %v1099 = vmax.f32 %v1075, 0.0
          %v1100 = vmax.f32 %v1076, 0.0
          %v1101 = vmax.f32 %v1077, 0.0
          %v1102 = vmax.f32 %v1078, 0.0
          %v1103 = vmax.f32 %v1079, 0.0
          %v1104 = vmax.f32 %v1080, 0.0
          %v1105 = vmax.f32 %v1081, 0.0
          %v1106 = vmax.f32 %v1082, 0.0
          %v1107 = vmax.f32 %v1083, 0.0
          %v1108 = vmax.f32 %v1084, 0.0
          %v1109 = vmax.f32 %v1085, 0.0
          %v1110 = vmax.f32 %v1086, 0.0
          %v1111 = vmax.f32 %v1087, 0.0
          %v1112 = vmax.f32 %v1088, 0.0
          %v1113 = vmax.f32 %v1089, 0.0
          %v1114 = vmax.f32 %v1090, 0.0
          %v1115 = vmax.f32 %v1091, 0.0
          %v1116 = vadd.f32 %v1092, 1e-12
          %v1117 = vadd.f32 %v1093, 1e-12
          %v1118 = vadd.f32 %v1094, 1e-12
          %v1119 = vadd.f32 %v1095, 1e-12
          %v1120 = vadd.f32 %v1096, 1e-12
          %v1121 = vadd.f32 %v1097, 1e-12
          %v1122 = vadd.f32 %v1098, 1e-12
          %v1123 = vadd.f32 %v1099, 1e-12
          %v1124 = vadd.f32 %v1100, 1e-12
          %v1125 = vadd.f32 %v1101, 1e-12
          %v1126 = vadd.f32 %v1102, 1e-12
          %v1127 = vadd.f32 %v1103, 1e-12
          %v1128 = vadd.f32 %v1104, 1e-12
          %v1129 = vadd.f32 %v1105, 1e-12
          %v1130 = vadd.f32 %v1106, 1e-12
          %v1131 = vadd.f32 %v1107, 1e-12
          %v1132 = vadd.f32 %v1108, 1e-12
          %v1133 = vadd.f32 %v1109, 1e-12
          %v1134 = vadd.f32 %v1110, 1e-12
          %v1135 = vadd.f32 %v1111, 1e-12
          %v1136 = vadd.f32 %v1112, 1e-12
          %v1137 = vadd.f32 %v1113, 1e-12
          %v1138 = vadd.f32 %v1114, 1e-12
          %v1139 = vadd.f32 %v1115, 1e-12
          %v1140 = vrsqrt.pop %v1116
          %v1141 = vmul.f32 %v1140, %v1116
          %v1142 = vmul.f32 %v1141, %v1140
          %v1143 = vmul.f32 0.5, %v1142
          %v1144 = vsub.f32 1.5, %v1143
          %v1145 = vmul.f32 %v1140, %v1144
          %vm1146 = vweird.f32 %v1116
          %vm1147 = vweird.f32 %v1140
          %vm1148 = vmor %vm1146, %vm1147
          %v1149 = vsel %vm1148, %v1140, %v1145
          %v1150 = vrsqrt.pop %v1117
          %v1151 = vmul.f32 %v1150, %v1117
          %v1152 = vmul.f32 %v1151, %v1150
          %v1153 = vmul.f32 0.5, %v1152
          %v1154 = vsub.f32 1.5, %v1153
          %v1155 = vmul.f32 %v1150, %v1154
          %vm1156 = vweird.f32 %v1117
          %vm1157 = vweird.f32 %v1150
          %vm1158 = vmor %vm1156, %vm1157
          %v1159 = vsel %vm1158, %v1150, %v1155
          %v1160 = vrsqrt.pop %v1118
          %v1161 = vmul.f32 %v1160, %v1118
          %v1162 = vmul.f32 %v1161, %v1160
          %v1163 = vmul.f32 0.5, %v1162
          %v1164 = vsub.f32 1.5, %v1163
          %v1165 = vmul.f32 %v1160, %v1164
          %vm1166 = vweird.f32 %v1118
          %vm1167 = vweird.f32 %v1160
          %vm1168 = vmor %vm1166, %vm1167
          %v1169 = vsel %vm1168, %v1160, %v1165
          %v1170 = vrsqrt.pop %v1119
          %v1171 = vmul.f32 %v1170, %v1119
          %v1172 = vmul.f32 %v1171, %v1170
          %v1173 = vmul.f32 0.5, %v1172
          %v1174 = vsub.f32 1.5, %v1173
          %v1175 = vmul.f32 %v1170, %v1174
          %vm1176 = vweird.f32 %v1119
          %vm1177 = vweird.f32 %v1170
          %vm1178 = vmor %vm1176, %vm1177
          %v1179 = vsel %vm1178, %v1170, %v1175
          %v1180 = vrsqrt.pop %v1120
          %v1181 = vmul.f32 %v1180, %v1120
          %v1182 = vmul.f32 %v1181, %v1180
          %v1183 = vmul.f32 0.5, %v1182
          %v1184 = vsub.f32 1.5, %v1183
          %v1185 = vmul.f32 %v1180, %v1184
          %vm1186 = vweird.f32 %v1120
          %vm1187 = vweird.f32 %v1180
          %vm1188 = vmor %vm1186, %vm1187
          %v1189 = vsel %vm1188, %v1180, %v1185
          %v1190 = vrsqrt.pop %v1121
          %v1191 = vmul.f32 %v1190, %v1121
          %v1192 = vmul.f32 %v1191, %v1190
          %v1193 = vmul.f32 0.5, %v1192
          %v1194 = vsub.f32 1.5, %v1193
          %v1195 = vmul.f32 %v1190, %v1194
          %vm1196 = vweird.f32 %v1121
          %vm1197 = vweird.f32 %v1190
          %vm1198 = vmor %vm1196, %vm1197
          %v1199 = vsel %vm1198, %v1190, %v1195
          %v1200 = vrsqrt.pop %v1122
          %v1201 = vmul.f32 %v1200, %v1122
          %v1202 = vmul.f32 %v1201, %v1200
          %v1203 = vmul.f32 0.5, %v1202
          %v1204 = vsub.f32 1.5, %v1203
          %v1205 = vmul.f32 %v1200, %v1204
          %vm1206 = vweird.f32 %v1122
          %vm1207 = vweird.f32 %v1200
          %vm1208 = vmor %vm1206, %vm1207
          %v1209 = vsel %vm1208, %v1200, %v1205
          %v1210 = vrsqrt.pop %v1123
          %v1211 = vmul.f32 %v1210, %v1123
          %v1212 = vmul.f32 %v1211, %v1210
          %v1213 = vmul.f32 0.5, %v1212
          %v1214 = vsub.f32 1.5, %v1213
          %v1215 = vmul.f32 %v1210, %v1214
          %vm1216 = vweird.f32 %v1123
          %vm1217 = vweird.f32 %v1210
          %vm1218 = vmor %vm1216, %vm1217
          %v1219 = vsel %vm1218, %v1210, %v1215
          %v1220 = vrsqrt.pop %v1124
          %v1221 = vmul.f32 %v1220, %v1124
          %v1222 = vmul.f32 %v1221, %v1220
          %v1223 = vmul.f32 0.5, %v1222
          %v1224 = vsub.f32 1.5, %v1223
          %v1225 = vmul.f32 %v1220, %v1224
          %vm1226 = vweird.f32 %v1124
          %vm1227 = vweird.f32 %v1220
          %vm1228 = vmor %vm1226, %vm1227
          %v1229 = vsel %vm1228, %v1220, %v1225
          %v1230 = vrsqrt.pop %v1125
          %v1231 = vmul.f32 %v1230, %v1125
          %v1232 = vmul.f32 %v1231, %v1230
          %v1233 = vmul.f32 0.5, %v1232
          %v1234 = vsub.f32 1.5, %v1233
          %v1235 = vmul.f32 %v1230, %v1234
          %vm1236 = vweird.f32 %v1125
          %vm1237 = vweird.f32 %v1230
          %vm1238 = vmor %vm1236, %vm1237
          %v1239 = vsel %vm1238, %v1230, %v1235
          %v1240 = vrsqrt.pop %v1126
          %v1241 = vmul.f32 %v1240, %v1126
          %v1242 = vmul.f32 %v1241, %v1240
          %v1243 = vmul.f32 0.5, %v1242
          %v1244 = vsub.f32 1.5, %v1243
          %v1245 = vmul.f32 %v1240, %v1244
          %vm1246 = vweird.f32 %v1126
          %vm1247 = vweird.f32 %v1240
          %vm1248 = vmor %vm1246, %vm1247
          %v1249 = vsel %vm1248, %v1240, %v1245
          %v1250 = vrsqrt.pop %v1127
          %v1251 = vmul.f32 %v1250, %v1127
          %v1252 = vmul.f32 %v1251, %v1250
          %v1253 = vmul.f32 0.5, %v1252
          %v1254 = vsub.f32 1.5, %v1253
          %v1255 = vmul.f32 %v1250, %v1254
          %vm1256 = vweird.f32 %v1127
          %vm1257 = vweird.f32 %v1250
          %vm1258 = vmor %vm1256, %vm1257
          %v1259 = vsel %vm1258, %v1250, %v1255
          %v1260 = vrsqrt.pop %v1128
          %v1261 = vmul.f32 %v1260, %v1128
          %v1262 = vmul.f32 %v1261, %v1260
          %v1263 = vmul.f32 0.5, %v1262
          %v1264 = vsub.f32 1.5, %v1263
          %v1265 = vmul.f32 %v1260, %v1264
          %vm1266 = vweird.f32 %v1128
          %vm1267 = vweird.f32 %v1260
          %vm1268 = vmor %vm1266, %vm1267
          %v1269 = vsel %vm1268, %v1260, %v1265
          %v1270 = vrsqrt.pop %v1129
          %v1271 = vmul.f32 %v1270, %v1129
          %v1272 = vmul.f32 %v1271, %v1270
          %v1273 = vmul.f32 0.5, %v1272
          %v1274 = vsub.f32 1.5, %v1273
          %v1275 = vmul.f32 %v1270, %v1274
          %vm1276 = vweird.f32 %v1129
          %vm1277 = vweird.f32 %v1270
          %vm1278 = vmor %vm1276, %vm1277
          %v1279 = vsel %vm1278, %v1270, %v1275
          %v1280 = vrsqrt.pop %v1130
          %v1281 = vmul.f32 %v1280, %v1130
          %v1282 = vmul.f32 %v1281, %v1280
          %v1283 = vmul.f32 0.5, %v1282
          %v1284 = vsub.f32 1.5, %v1283
          %v1285 = vmul.f32 %v1280, %v1284
          %vm1286 = vweird.f32 %v1130
          %vm1287 = vweird.f32 %v1280
          %vm1288 = vmor %vm1286, %vm1287
          %v1289 = vsel %vm1288, %v1280, %v1285
          %v1290 = vrsqrt.pop %v1131
          %v1291 = vmul.f32 %v1290, %v1131
          %v1292 = vmul.f32 %v1291, %v1290
          %v1293 = vmul.f32 0.5, %v1292
          %v1294 = vsub.f32 1.5, %v1293
          %v1295 = vmul.f32 %v1290, %v1294
          %vm1296 = vweird.f32 %v1131
          %vm1297 = vweird.f32 %v1290
          %vm1298 = vmor %vm1296, %vm1297
          %v1299 = vsel %vm1298, %v1290, %v1295
          %v1300 = vrsqrt.pop %v1132
          %v1301 = vmul.f32 %v1300, %v1132
          %v1302 = vmul.f32 %v1301, %v1300
          %v1303 = vmul.f32 0.5, %v1302
          %v1304 = vsub.f32 1.5, %v1303
          %v1305 = vmul.f32 %v1300, %v1304
          %vm1306 = vweird.f32 %v1132
          %vm1307 = vweird.f32 %v1300
          %vm1308 = vmor %vm1306, %vm1307
          %v1309 = vsel %vm1308, %v1300, %v1305
          %v1310 = vrsqrt.pop %v1133
          %v1311 = vmul.f32 %v1310, %v1133
          %v1312 = vmul.f32 %v1311, %v1310
          %v1313 = vmul.f32 0.5, %v1312
          %v1314 = vsub.f32 1.5, %v1313
          %v1315 = vmul.f32 %v1310, %v1314
          %vm1316 = vweird.f32 %v1133
          %vm1317 = vweird.f32 %v1310
          %vm1318 = vmor %vm1316, %vm1317
          %v1319 = vsel %vm1318, %v1310, %v1315
          %v1320 = vrsqrt.pop %v1134
          %v1321 = vmul.f32 %v1320, %v1134
          %v1322 = vmul.f32 %v1321, %v1320
          %v1323 = vmul.f32 0.5, %v1322
          %v1324 = vsub.f32 1.5, %v1323
          %v1325 = vmul.f32 %v1320, %v1324
          %vm1326 = vweird.f32 %v1134
          %vm1327 = vweird.f32 %v1320
          %vm1328 = vmor %vm1326, %vm1327
          %v1329 = vsel %vm1328, %v1320, %v1325
          %v1330 = vrsqrt.pop %v1135
          %v1331 = vmul.f32 %v1330, %v1135
          %v1332 = vmul.f32 %v1331, %v1330
          %v1333 = vmul.f32 0.5, %v1332
          %v1334 = vsub.f32 1.5, %v1333
          %v1335 = vmul.f32 %v1330, %v1334
          %vm1336 = vweird.f32 %v1135
          %vm1337 = vweird.f32 %v1330
          %vm1338 = vmor %vm1336, %vm1337
          %v1339 = vsel %vm1338, %v1330, %v1335
          %v1340 = vrsqrt.pop %v1136
          %v1341 = vmul.f32 %v1340, %v1136
          %v1342 = vmul.f32 %v1341, %v1340
          %v1343 = vmul.f32 0.5, %v1342
          %v1344 = vsub.f32 1.5, %v1343
          %v1345 = vmul.f32 %v1340, %v1344
          %vm1346 = vweird.f32 %v1136
          %vm1347 = vweird.f32 %v1340
          %vm1348 = vmor %vm1346, %vm1347
          %v1349 = vsel %vm1348, %v1340, %v1345
          %v1350 = vrsqrt.pop %v1137
          %v1351 = vmul.f32 %v1350, %v1137
          %v1352 = vmul.f32 %v1351, %v1350
          %v1353 = vmul.f32 0.5, %v1352
          %v1354 = vsub.f32 1.5, %v1353
          %v1355 = vmul.f32 %v1350, %v1354
          %vm1356 = vweird.f32 %v1137
          %vm1357 = vweird.f32 %v1350
          %vm1358 = vmor %vm1356, %vm1357
          %v1359 = vsel %vm1358, %v1350, %v1355
          %v1360 = vrsqrt.pop %v1138
          %v1361 = vmul.f32 %v1360, %v1138
          %v1362 = vmul.f32 %v1361, %v1360
          %v1363 = vmul.f32 0.5, %v1362
          %v1364 = vsub.f32 1.5, %v1363
          %v1365 = vmul.f32 %v1360, %v1364
          %vm1366 = vweird.f32 %v1138
          %vm1367 = vweird.f32 %v1360
          %vm1368 = vmor %vm1366, %vm1367
          %v1369 = vsel %vm1368, %v1360, %v1365
          %v1370 = vrsqrt.pop %v1139
          %v1371 = vmul.f32 %v1370, %v1139
          %v1372 = vmul.f32 %v1371, %v1370
          %v1373 = vmul.f32 0.5, %v1372
          %v1374 = vsub.f32 1.5, %v1373
          %v1375 = vmul.f32 %v1370, %v1374
          %vm1376 = vweird.f32 %v1139
          %vm1377 = vweird.f32 %v1370
          %vm1378 = vmor %vm1376, %vm1377
          %v1379 = vsel %vm1378, %v1370, %v1375
          %v1380 = vsub.f32 %v747, %v876
          %v1381 = vsub.f32 %v748, %v876
          %v1382 = vsub.f32 %v749, %v877
          %v1383 = vsub.f32 %v750, %v877
          %v1384 = vsub.f32 %v751, %v878
          %v1385 = vsub.f32 %v752, %v878
          %v1386 = vsub.f32 %v753, %v879
          %v1387 = vsub.f32 %v754, %v879
          %v1388 = vsub.f32 %v755, %v880
          %v1389 = vsub.f32 %v756, %v880
          %v1390 = vsub.f32 %v757, %v881
          %v1391 = vsub.f32 %v758, %v881
          %v1392 = vsub.f32 %v759, %v882
          %v1393 = vsub.f32 %v760, %v882
          %v1394 = vsub.f32 %v761, %v883
          %v1395 = vsub.f32 %v762, %v883
          %v1396 = vsub.f32 %v763, %v884
          %v1397 = vsub.f32 %v764, %v884
          %v1398 = vsub.f32 %v765, %v885
          %v1399 = vsub.f32 %v766, %v885
          %v1400 = vsub.f32 %v767, %v886
          %v1401 = vsub.f32 %v768, %v886
          %v1402 = vsub.f32 %v769, %v887
          %v1403 = vsub.f32 %v770, %v887
          %v1404 = vsub.f32 %v771, %v888
          %v1405 = vsub.f32 %v772, %v888
          %v1406 = vsub.f32 %v773, %v889
          %v1407 = vsub.f32 %v774, %v889
          %v1408 = vsub.f32 %v775, %v890
          %v1409 = vsub.f32 %v776, %v890
          %v1410 = vsub.f32 %v777, %v891
          %v1411 = vsub.f32 %v778, %v891
          %v1412 = vsub.f32 %v779, %v892
          %v1413 = vsub.f32 %v780, %v892
          %v1414 = vsub.f32 %v781, %v893
          %v1415 = vsub.f32 %v782, %v893
          %v1416 = vsub.f32 %v783, %v894
          %v1417 = vsub.f32 %v784, %v894
          %v1418 = vsub.f32 %v785, %v895
          %v1419 = vsub.f32 %v786, %v895
          %v1420 = vsub.f32 %v787, %v896
          %v1421 = vsub.f32 %v788, %v896
          %v1422 = vsub.f32 %v789, %v897
          %v1423 = vsub.f32 %v790, %v897
          %v1424 = vsub.f32 %v791, %v898
          %v1425 = vsub.f32 %v792, %v898
          %v1426 = vsub.f32 %v793, %v899
          %v1427 = vsub.f32 %v794, %v899
          %v1428 = vmul.f32 %v1380, %v1149
          %v1429 = vmul.f32 %v1381, %v1149
          %v1430 = vmul.f32 %v1382, %v1159
          %v1431 = vmul.f32 %v1383, %v1159
          %v1432 = vmul.f32 %v1384, %v1169
          %v1433 = vmul.f32 %v1385, %v1169
          %v1434 = vmul.f32 %v1386, %v1179
          %v1435 = vmul.f32 %v1387, %v1179
          %v1436 = vmul.f32 %v1388, %v1189
          %v1437 = vmul.f32 %v1389, %v1189
          %v1438 = vmul.f32 %v1390, %v1199
          %v1439 = vmul.f32 %v1391, %v1199
          %v1440 = vmul.f32 %v1392, %v1209
          %v1441 = vmul.f32 %v1393, %v1209
          %v1442 = vmul.f32 %v1394, %v1219
          %v1443 = vmul.f32 %v1395, %v1219
          %v1444 = vmul.f32 %v1396, %v1229
          %v1445 = vmul.f32 %v1397, %v1229
          %v1446 = vmul.f32 %v1398, %v1239
          %v1447 = vmul.f32 %v1399, %v1239
          %v1448 = vmul.f32 %v1400, %v1249
          %v1449 = vmul.f32 %v1401, %v1249
          %v1450 = vmul.f32 %v1402, %v1259
          %v1451 = vmul.f32 %v1403, %v1259
          %v1452 = vmul.f32 %v1404, %v1269
          %v1453 = vmul.f32 %v1405, %v1269
          %v1454 = vmul.f32 %v1406, %v1279
          %v1455 = vmul.f32 %v1407, %v1279
          %v1456 = vmul.f32 %v1408, %v1289
          %v1457 = vmul.f32 %v1409, %v1289
          %v1458 = vmul.f32 %v1410, %v1299
          %v1459 = vmul.f32 %v1411, %v1299
          %v1460 = vmul.f32 %v1412, %v1309
          %v1461 = vmul.f32 %v1413, %v1309
          %v1462 = vmul.f32 %v1414, %v1319
          %v1463 = vmul.f32 %v1415, %v1319
          %v1464 = vmul.f32 %v1416, %v1329
          %v1465 = vmul.f32 %v1417, %v1329
          %v1466 = vmul.f32 %v1418, %v1339
          %v1467 = vmul.f32 %v1419, %v1339
          %v1468 = vmul.f32 %v1420, %v1349
          %v1469 = vmul.f32 %v1421, %v1349
          %v1470 = vmul.f32 %v1422, %v1359
          %v1471 = vmul.f32 %v1423, %v1359
          %v1472 = vmul.f32 %v1424, %v1369
          %v1473 = vmul.f32 %v1425, %v1369
          %v1474 = vmul.f32 %v1426, %v1379
          %v1475 = vmul.f32 %v1427, %v1379
          %v1477 = vperm.slane %v795, 0
          %v1478 = vperm.slane %v795, 1
          %v1481 = vmul.f32 %v1428, %v1477
          %v1482 = vmul.f32 %v1429, %v1478
          %v1483 = vmul.f32 %v1430, %v1477
          %v1484 = vmul.f32 %v1431, %v1478
          %v1485 = vmul.f32 %v1432, %v1477
          %v1486 = vmul.f32 %v1433, %v1478
          %v1487 = vmul.f32 %v1434, %v1477
          %v1488 = vmul.f32 %v1435, %v1478
          %v1489 = vmul.f32 %v1436, %v1477
          %v1490 = vmul.f32 %v1437, %v1478
          %v1491 = vmul.f32 %v1438, %v1477
          %v1492 = vmul.f32 %v1439, %v1478
          %v1493 = vmul.f32 %v1440, %v1477
          %v1494 = vmul.f32 %v1441, %v1478
          %v1495 = vmul.f32 %v1442, %v1477
          %v1496 = vmul.f32 %v1443, %v1478
          %v1497 = vmul.f32 %v1444, %v1477
          %v1498 = vmul.f32 %v1445, %v1478
          %v1499 = vmul.f32 %v1446, %v1477
          %v1500 = vmul.f32 %v1447, %v1478
          %v1501 = vmul.f32 %v1448, %v1477
          %v1502 = vmul.f32 %v1449, %v1478
          %v1503 = vmul.f32 %v1450, %v1477
          %v1504 = vmul.f32 %v1451, %v1478
          %v1505 = vmul.f32 %v1452, %v1477
          %v1506 = vmul.f32 %v1453, %v1478
          %v1507 = vmul.f32 %v1454, %v1477
          %v1508 = vmul.f32 %v1455, %v1478
          %v1509 = vmul.f32 %v1456, %v1477
          %v1510 = vmul.f32 %v1457, %v1478
          %v1511 = vmul.f32 %v1458, %v1477
          %v1512 = vmul.f32 %v1459, %v1478
          %v1513 = vmul.f32 %v1460, %v1477
          %v1514 = vmul.f32 %v1461, %v1478
          %v1515 = vmul.f32 %v1462, %v1477
          %v1516 = vmul.f32 %v1463, %v1478
          %v1517 = vmul.f32 %v1464, %v1477
          %v1518 = vmul.f32 %v1465, %v1478
          %v1519 = vmul.f32 %v1466, %v1477
          %v1520 = vmul.f32 %v1467, %v1478
          %v1521 = vmul.f32 %v1468, %v1477
          %v1522 = vmul.f32 %v1469, %v1478
          %v1523 = vmul.f32 %v1470, %v1477
          %v1524 = vmul.f32 %v1471, %v1478
          %v1525 = vmul.f32 %v1472, %v1477
          %v1526 = vmul.f32 %v1473, %v1478
          %v1527 = vmul.f32 %v1474, %v1477
          %v1528 = vmul.f32 %v1475, %v1478
          %v1530 = vperm.slane %v796, 0
          %v1531 = vperm.slane %v796, 1
          %v1534 = vadd.f32 %v1481, %v1530
          %v1535 = vadd.f32 %v1482, %v1531
          %v1536 = vadd.f32 %v1483, %v1530
          %v1537 = vadd.f32 %v1484, %v1531
          %v1538 = vadd.f32 %v1485, %v1530
          %v1539 = vadd.f32 %v1486, %v1531
          %v1540 = vadd.f32 %v1487, %v1530
          %v1541 = vadd.f32 %v1488, %v1531
          %v1542 = vadd.f32 %v1489, %v1530
          %v1543 = vadd.f32 %v1490, %v1531
          %v1544 = vadd.f32 %v1491, %v1530
          %v1545 = vadd.f32 %v1492, %v1531
          %v1546 = vadd.f32 %v1493, %v1530
          %v1547 = vadd.f32 %v1494, %v1531
          %v1548 = vadd.f32 %v1495, %v1530
          %v1549 = vadd.f32 %v1496, %v1531
          %v1550 = vadd.f32 %v1497, %v1530
          %v1551 = vadd.f32 %v1498, %v1531
          %v1552 = vadd.f32 %v1499, %v1530
          %v1553 = vadd.f32 %v1500, %v1531
          %v1554 = vadd.f32 %v1501, %v1530
          %v1555 = vadd.f32 %v1502, %v1531
          %v1556 = vadd.f32 %v1503, %v1530
          %v1557 = vadd.f32 %v1504, %v1531
          %v1558 = vadd.f32 %v1505, %v1530
          %v1559 = vadd.f32 %v1506, %v1531
          %v1560 = vadd.f32 %v1507, %v1530
          %v1561 = vadd.f32 %v1508, %v1531
          %v1562 = vadd.f32 %v1509, %v1530
          %v1563 = vadd.f32 %v1510, %v1531
          %v1564 = vadd.f32 %v1511, %v1530
          %v1565 = vadd.f32 %v1512, %v1531
          %v1566 = vadd.f32 %v1513, %v1530
          %v1567 = vadd.f32 %v1514, %v1531
          %v1568 = vadd.f32 %v1515, %v1530
          %v1569 = vadd.f32 %v1516, %v1531
          %v1570 = vadd.f32 %v1517, %v1530
          %v1571 = vadd.f32 %v1518, %v1531
          %v1572 = vadd.f32 %v1519, %v1530
          %v1573 = vadd.f32 %v1520, %v1531
          %v1574 = vadd.f32 %v1521, %v1530
          %v1575 = vadd.f32 %v1522, %v1531
          %v1576 = vadd.f32 %v1523, %v1530
          %v1577 = vadd.f32 %v1524, %v1531
          %v1578 = vadd.f32 %v1525, %v1530
          %v1579 = vadd.f32 %v1526, %v1531
          %v1580 = vadd.f32 %v1527, %v1530
          %v1581 = vadd.f32 %v1528, %v1531
          %1582 = vst [vmem:[#allocation2] sm:$0xff] %v1534
          %1583 = vst [vmem:[#allocation2 + $0x8] sm:$0xff] %v1535
          %1584 = vst [vmem:[#allocation2 + $0x10] sm:$0xff] %v1536
          %1585 = vst [vmem:[#allocation2 + $0x18] sm:$0xff] %v1537
          %1586 = vst [vmem:[#allocation2 + $0x20] sm:$0xff] %v1538
          %1587 = vst [vmem:[#allocation2 + $0x28] sm:$0xff] %v1539
          %1588 = vst [vmem:[#allocation2 + $0x30] sm:$0xff] %v1540
          %1589 = vst [vmem:[#allocation2 + $0x38] sm:$0xff] %v1541
          %1590 = vst [vmem:[#allocation2 + $0x40] sm:$0xff] %v1542
          %1591 = vst [vmem:[#allocation2 + $0x48] sm:$0xff] %v1543
          %1592 = vst [vmem:[#allocation2 + $0x50] sm:$0xff] %v1544
          %1593 = vst [vmem:[#allocation2 + $0x58] sm:$0xff] %v1545
          %1594 = vst [vmem:[#allocation2 + $0x60] sm:$0xff] %v1546
          %1595 = vst [vmem:[#allocation2 + $0x68] sm:$0xff] %v1547
          %1596 = vst [vmem:[#allocation2 + $0x70] sm:$0xff] %v1548
          %1597 = vst [vmem:[#allocation2 + $0x78] sm:$0xff] %v1549
          %1598 = vst [vmem:[#allocation2 + $0x80] sm:$0xff] %v1550
          %1599 = vst [vmem:[#allocation2 + $0x88] sm:$0xff] %v1551
          %1600 = vst [vmem:[#allocation2 + $0x90] sm:$0xff] %v1552
          %1601 = vst [vmem:[#allocation2 + $0x98] sm:$0xff] %v1553
          %1602 = vst [vmem:[#allocation2 + $0xa0] sm:$0xff] %v1554
          %1603 = vst [vmem:[#allocation2 + $0xa8] sm:$0xff] %v1555
          %1604 = vst [vmem:[#allocation2 + $0xb0] sm:$0xff] %v1556
          %1605 = vst [vmem:[#allocation2 + $0xb8] sm:$0xff] %v1557
          %1606 = vst [vmem:[#allocation2 + $0xc0] sm:$0xff] %v1558
          %1607 = vst [vmem:[#allocation2 + $0xc8] sm:$0xff] %v1559
          %1608 = vst [vmem:[#allocation2 + $0xd0] sm:$0xff] %v1560
          %1609 = vst [vmem:[#allocation2 + $0xd8] sm:$0xff] %v1561
          %1610 = vst [vmem:[#allocation2 + $0xe0] sm:$0xff] %v1562
          %1611 = vst [vmem:[#allocation2 + $0xe8] sm:$0xff] %v1563
          %1612 = vst [vmem:[#allocation2 + $0xf0] sm:$0xff] %v1564
          %1613 = vst [vmem:[#allocation2 + $0xf8] sm:$0xff] %v1565
          %1614 = vst [vmem:[#allocation2 + $0x100] sm:$0xff] %v1566
          %1615 = vst [vmem:[#allocation2 + $0x108] sm:$0xff] %v1567
          %1616 = vst [vmem:[#allocation2 + $0x110] sm:$0xff] %v1568
          %1617 = vst [vmem:[#allocation2 + $0x118] sm:$0xff] %v1569
          %1618 = vst [vmem:[#allocation2 + $0x120] sm:$0xff] %v1570
          %1619 = vst [vmem:[#allocation2 + $0x128] sm:$0xff] %v1571
          %1620 = vst [vmem:[#allocation2 + $0x130] sm:$0xff] %v1572
          %1621 = vst [vmem:[#allocation2 + $0x138] sm:$0xff] %v1573
          %1622 = vst [vmem:[#allocation2 + $0x140] sm:$0xff] %v1574
          %1623 = vst [vmem:[#allocation2 + $0x148] sm:$0xff] %v1575
          %1624 = vst [vmem:[#allocation2 + $0x150] sm:$0xff] %v1576
          %1625 = vst [vmem:[#allocation2 + $0x158] sm:$0xff] %v1577
          %1626 = vst [vmem:[#allocation2 + $0x160] sm:$0xff] %v1578
          %1627 = vst [vmem:[#allocation2 + $0x168] sm:$0xff] %v1579
          %1628 = vst [vmem:[#allocation2 + $0x170] sm:$0xff] %v1580
          %1629 = vst [vmem:[#allocation2 + $0x178] sm:$0xff] %v1581
          %v1630 = vpack.c.bf16 %v1535, %v1534
          %v1631 = vpack.c.bf16 %v1537, %v1536
          %v1632 = vpack.c.bf16 %v1539, %v1538
          %v1633 = vpack.c.bf16 %v1541, %v1540
          %v1634 = vpack.c.bf16 %v1543, %v1542
          %v1635 = vpack.c.bf16 %v1545, %v1544
          %v1636 = vpack.c.bf16 %v1547, %v1546
          %v1637 = vpack.c.bf16 %v1549, %v1548
          %v1638 = vpack.c.bf16 %v1551, %v1550
          %v1639 = vpack.c.bf16 %v1553, %v1552
          %v1640 = vpack.c.bf16 %v1555, %v1554
          %v1641 = vpack.c.bf16 %v1557, %v1556
          %v1642 = vpack.c.bf16 %v1559, %v1558
          %v1643 = vpack.c.bf16 %v1561, %v1560
          %v1644 = vpack.c.bf16 %v1563, %v1562
          %v1645 = vpack.c.bf16 %v1565, %v1564
          %v1646 = vpack.c.bf16 %v1567, %v1566
          %v1647 = vpack.c.bf16 %v1569, %v1568
          %v1648 = vpack.c.bf16 %v1571, %v1570
          %v1649 = vpack.c.bf16 %v1573, %v1572
          %v1650 = vpack.c.bf16 %v1575, %v1574
          %v1651 = vpack.c.bf16 %v1577, %v1576
          %v1652 = vpack.c.bf16 %v1579, %v1578
          %v1653 = vpack.c.bf16 %v1581, %v1580
          %1654 = vst [vmem:[#allocation3] sm:$0xff] %v1630
          %1655 = vst [vmem:[#allocation3 + $0x8] sm:$0xff] %v1631
          %1656 = vst [vmem:[#allocation3 + $0x10] sm:$0xff] %v1632
          %1657 = vst [vmem:[#allocation3 + $0x18] sm:$0xff] %v1633
          %1658 = vst [vmem:[#allocation3 + $0x20] sm:$0xff] %v1634
          %1659 = vst [vmem:[#allocation3 + $0x28] sm:$0xff] %v1635
          %1660 = vst [vmem:[#allocation3 + $0x30] sm:$0xff] %v1636
          %1661 = vst [vmem:[#allocation3 + $0x38] sm:$0xff] %v1637
          %1662 = vst [vmem:[#allocation3 + $0x40] sm:$0xff] %v1638
          %1663 = vst [vmem:[#allocation3 + $0x48] sm:$0xff] %v1639
          %1664 = vst [vmem:[#allocation3 + $0x50] sm:$0xff] %v1640
          %1665 = vst [vmem:[#allocation3 + $0x58] sm:$0xff] %v1641
          %1666 = vst [vmem:[#allocation3 + $0x60] sm:$0xff] %v1642
          %1667 = vst [vmem:[#allocation3 + $0x68] sm:$0xff] %v1643
          %1668 = vst [vmem:[#allocation3 + $0x70] sm:$0xff] %v1644
          %1669 = vst [vmem:[#allocation3 + $0x78] sm:$0xff] %v1645
          %1670 = vst [vmem:[#allocation3 + $0x80] sm:$0xff] %v1646
          %1671 = vst [vmem:[#allocation3 + $0x88] sm:$0xff] %v1647
          %1672 = vst [vmem:[#allocation3 + $0x90] sm:$0xff] %v1648
          %1673 = vst [vmem:[#allocation3 + $0x98] sm:$0xff] %v1649
          %1674 = vst [vmem:[#allocation3 + $0xa0] sm:$0xff] %v1650
          %1675 = vst [vmem:[#allocation3 + $0xa8] sm:$0xff] %v1651
          %1676 = vst [vmem:[#allocation3 + $0xb0] sm:$0xff] %v1652
          %1677 = vst [vmem:[#allocation3 + $0xb8] sm:$0xff] %v1653
          %1678 = vst [vmem:[#allocation4] sm:$0xff] 0.0
          %1679 = vst [vmem:[#allocation4 + $0x8] sm:$0xff] 0.0
          %1680 = vst [vmem:[#allocation4 + $0x10] sm:$0xff] 0.0
          %1681 = vst [vmem:[#allocation4 + $0x18] sm:$0xff] 0.0
          %1682 = vst [vmem:[#allocation4 + $0x20] sm:$0xff] 0.0
          %1683 = vst [vmem:[#allocation4 + $0x28] sm:$0xff] 0.0
          %1684 = vst [vmem:[#allocation4 + $0x30] sm:$0xff] 0.0
          %1685 = vst [vmem:[#allocation4 + $0x38] sm:$0xff] 0.0
          %1686 = vst [vmem:[#allocation4 + $0x40] sm:$0xff] 0.0
          %1687 = vst [vmem:[#allocation4 + $0x48] sm:$0xff] 0.0
          %1688 = vst [vmem:[#allocation4 + $0x50] sm:$0xff] 0.0
          %1689 = vst [vmem:[#allocation4 + $0x58] sm:$0xff] 0.0
          %1690 = vst [vmem:[#allocation4 + $0x60] sm:$0xff] 0.0
          %1691 = vst [vmem:[#allocation4 + $0x68] sm:$0xff] 0.0
          %1692 = vst [vmem:[#allocation4 + $0x70] sm:$0xff] 0.0
          %1693 = vst [vmem:[#allocation4 + $0x78] sm:$0xff] 0.0
          %1694 = vst [vmem:[#allocation4 + $0x80] sm:$0xff] 0.0
          %1695 = vst [vmem:[#allocation4 + $0x88] sm:$0xff] 0.0
          %1696 = vst [vmem:[#allocation4 + $0x90] sm:$0xff] 0.0
          %1697 = vst [vmem:[#allocation4 + $0x98] sm:$0xff] 0.0
          %1698 = vst [vmem:[#allocation4 + $0xa0] sm:$0xff] 0.0
          %1699 = vst [vmem:[#allocation4 + $0xa8] sm:$0xff] 0.0
          %1700 = vst [vmem:[#allocation4 + $0xb0] sm:$0xff] 0.0
          %1701 = vst [vmem:[#allocation4 + $0xb8] sm:$0xff] 0.0
          %1702 = vst [vmem:[#allocation4 + $0xc0] sm:$0xff] 0.0
          %1703 = vst [vmem:[#allocation4 + $0xc8] sm:$0xff] 0.0
          %1704 = vst [vmem:[#allocation4 + $0xd0] sm:$0xff] 0.0
          %1705 = vst [vmem:[#allocation4 + $0xd8] sm:$0xff] 0.0
          %1706 = vst [vmem:[#allocation4 + $0xe0] sm:$0xff] 0.0
          %1707 = vst [vmem:[#allocation4 + $0xe8] sm:$0xff] 0.0
          %1708 = vst [vmem:[#allocation4 + $0xf0] sm:$0xff] 0.0
          %1709 = vst [vmem:[#allocation4 + $0xf8] sm:$0xff] 0.0
          %1710 = vst [vmem:[#allocation4 + $0x100] sm:$0xff] 0.0
          %1711 = vst [vmem:[#allocation4 + $0x108] sm:$0xff] 0.0
          %1712 = vst [vmem:[#allocation4 + $0x110] sm:$0xff] 0.0
          %1713 = vst [vmem:[#allocation4 + $0x118] sm:$0xff] 0.0
          %1714 = vst [vmem:[#allocation4 + $0x120] sm:$0xff] 0.0
          %1715 = vst [vmem:[#allocation4 + $0x128] sm:$0xff] 0.0
          %1716 = vst [vmem:[#allocation4 + $0x130] sm:$0xff] 0.0
          %1717 = vst [vmem:[#allocation4 + $0x138] sm:$0xff] 0.0
          %1718 = vst [vmem:[#allocation4 + $0x140] sm:$0xff] 0.0
          %1719 = vst [vmem:[#allocation4 + $0x148] sm:$0xff] 0.0
          %1720 = vst [vmem:[#allocation4 + $0x150] sm:$0xff] 0.0
          %1721 = vst [vmem:[#allocation4 + $0x158] sm:$0xff] 0.0
          %1722 = vst [vmem:[#allocation4 + $0x160] sm:$0xff] 0.0
          %1723 = vst [vmem:[#allocation4 + $0x168] sm:$0xff] 0.0
          %1724 = vst [vmem:[#allocation4 + $0x170] sm:$0xff] 0.0
          %1725 = vst [vmem:[#allocation4 + $0x178] sm:$0xff] 0.0
        $region100: #{tpu_custom_call.1} parent=67 // pred_fallthru
          _
        %v1726 = vld [vmem:[#allocation3] sm:$0xff]
        %v1727 = vld [vmem:[#allocation3 + $0x8] sm:$0xff]
        %v1728 = vld [vmem:[#allocation3 + $0x10] sm:$0xff]
        %v1729 = vld [vmem:[#allocation3 + $0x18] sm:$0xff]
        %v1730 = vld [vmem:[#allocation3 + $0x20] sm:$0xff]
        %v1731 = vld [vmem:[#allocation3 + $0x28] sm:$0xff]
        %v1732 = vld [vmem:[#allocation3 + $0x30] sm:$0xff]
        %v1733 = vld [vmem:[#allocation3 + $0x38] sm:$0xff]
        %v1734 = vld [vmem:[#allocation3 + $0x40] sm:$0xff]
        %v1735 = vld [vmem:[#allocation3 + $0x48] sm:$0xff]
        %v1736 = vld [vmem:[#allocation3 + $0x50] sm:$0xff]
        %v1737 = vld [vmem:[#allocation3 + $0x58] sm:$0xff]
        %v1738 = vld [vmem:[#allocation3 + $0x60] sm:$0xff]
        %v1739 = vld [vmem:[#allocation3 + $0x68] sm:$0xff]
        %v1740 = vld [vmem:[#allocation3 + $0x70] sm:$0xff]
        %v1741 = vld [vmem:[#allocation3 + $0x78] sm:$0xff]
        %v1742 = vld [vmem:[#allocation3 + $0x80] sm:$0xff]
        %v1743 = vld [vmem:[#allocation3 + $0x88] sm:$0xff]
        %v1744 = vld [vmem:[#allocation3 + $0x90] sm:$0xff]
        %v1745 = vld [vmem:[#allocation3 + $0x98] sm:$0xff]
        %v1746 = vld [vmem:[#allocation3 + $0xa0] sm:$0xff]
        %v1747 = vld [vmem:[#allocation3 + $0xa8] sm:$0xff]
        %v1748 = vld [vmem:[#allocation3 + $0xb0] sm:$0xff]
        %v1749 = vld [vmem:[#allocation3 + $0xb8] sm:$0xff]
        %v1750 = vld [vmem:[%s554] sm:$0xff]
        %v1751 = vld [vmem:[%s554 + $0x8] sm:$0xff]
        %v1752 = vld [vmem:[%s554 + $0x10] sm:$0xff]
        %v1753 = vld [vmem:[%s554 + $0x18] sm:$0xff]
        %v1754 = vld [vmem:[%s554 + $0x20] sm:$0xff]
        %v1755 = vld [vmem:[%s554 + $0x28] sm:$0xff]
        %v1756 = vld [vmem:[%s554 + $0x30] sm:$0xff]
        %v1757 = vld [vmem:[%s554 + $0x38] sm:$0xff]
        %v1758 = vld [vmem:[%s554 + $0x40] sm:$0xff]
        %v1759 = vld [vmem:[%s554 + $0x48] sm:$0xff]
        %v1760 = vld [vmem:[%s554 + $0x50] sm:$0xff]
        %v1761 = vld [vmem:[%s554 + $0x58] sm:$0xff]
        %v1762 = vld [vmem:[%s554 + $0x60] sm:$0xff]
        %v1763 = vld [vmem:[%s554 + $0x68] sm:$0xff]
        %v1764 = vld [vmem:[%s554 + $0x70] sm:$0xff]
        %v1765 = vld [vmem:[%s554 + $0x78] sm:$0xff]
        %v1766 = vld [vmem:[%s554 + $0x80] sm:$0xff]
        %v1767 = vld [vmem:[%s554 + $0x88] sm:$0xff]
        %v1768 = vld [vmem:[%s554 + $0x90] sm:$0xff]
        %v1769 = vld [vmem:[%s554 + $0x98] sm:$0xff]
        %v1770 = vld [vmem:[%s554 + $0xa0] sm:$0xff]
        %v1771 = vld [vmem:[%s554 + $0xa8] sm:$0xff]
        %v1772 = vld [vmem:[%s554 + $0xb0] sm:$0xff]
        %v1773 = vld [vmem:[%s554 + $0xb8] sm:$0xff]
        %v1774 = vld [vmem:[%s554 + $0xc0] sm:$0xff]
        %v1775 = vld [vmem:[%s554 + $0xc8] sm:$0xff]
        %v1776 = vld [vmem:[%s554 + $0xd0] sm:$0xff]
        %v1777 = vld [vmem:[%s554 + $0xd8] sm:$0xff]
        %v1778 = vld [vmem:[%s554 + $0xe0] sm:$0xff]
        %v1779 = vld [vmem:[%s554 + $0xe8] sm:$0xff]
        %v1780 = vld [vmem:[%s554 + $0xf0] sm:$0xff]
        %v1781 = vld [vmem:[%s554 + $0xf8] sm:$0xff]
        %v1782 = vld [vmem:[%s564] sm:$0x3]
        %v1784 = vperm.slane %v1782, 0
        %v1785 = vperm.slane %v1782, 1
        %v1812 = vunpack.c.l.b16 %v1726
        %v1813 = vunpack.c.h.b16 %v1726
        %v1814 = vunpack.c.l.b16 %v1727
        %v1815 = vunpack.c.h.b16 %v1727
        %v1816 = vunpack.c.l.b16 %v1728
        %v1817 = vunpack.c.h.b16 %v1728
        %v1818 = vunpack.c.l.b16 %v1729
        %v1819 = vunpack.c.h.b16 %v1729
        %v1820 = vunpack.c.l.b16 %v1730
        %v1821 = vunpack.c.h.b16 %v1730
        %v1822 = vunpack.c.l.b16 %v1731
        %v1823 = vunpack.c.h.b16 %v1731
        %v1824 = vunpack.c.l.b16 %v1732
        %v1825 = vunpack.c.h.b16 %v1732
        %v1826 = vunpack.c.l.b16 %v1733
        %v1827 = vunpack.c.h.b16 %v1733
        %v1828 = vunpack.c.l.b16 %v1734
        %v1829 = vunpack.c.h.b16 %v1734
        %v1830 = vunpack.c.l.b16 %v1735
        %v1831 = vunpack.c.h.b16 %v1735
        %v1832 = vunpack.c.l.b16 %v1736
        %v1833 = vunpack.c.h.b16 %v1736
        %v1834 = vunpack.c.l.b16 %v1737
        %v1835 = vunpack.c.h.b16 %v1737
        %v1836 = vunpack.c.l.b16 %v1738
        %v1837 = vunpack.c.h.b16 %v1738
        %v1838 = vunpack.c.l.b16 %v1739
        %v1839 = vunpack.c.h.b16 %v1739
        %v1840 = vunpack.c.l.b16 %v1740
        %v1841 = vunpack.c.h.b16 %v1740
        %v1842 = vunpack.c.l.b16 %v1741
        %v1843 = vunpack.c.h.b16 %v1741
        %v1844 = vunpack.c.l.b16 %v1742
        %v1845 = vunpack.c.h.b16 %v1742
        %v1846 = vunpack.c.l.b16 %v1743
        %v1847 = vunpack.c.h.b16 %v1743
        %v1848 = vunpack.c.l.b16 %v1744
        %v1849 = vunpack.c.h.b16 %v1744
        %v1850 = vunpack.c.l.b16 %v1745
        %v1851 = vunpack.c.h.b16 %v1745
        %v1852 = vunpack.c.l.b16 %v1746
        %v1853 = vunpack.c.h.b16 %v1746
        %v1854 = vunpack.c.l.b16 %v1747
        %v1855 = vunpack.c.h.b16 %v1747
        %v1856 = vunpack.c.l.b16 %v1748
        %v1857 = vunpack.c.h.b16 %v1748
        %v1858 = vunpack.c.l.b16 %v1749
        %v1859 = vunpack.c.h.b16 %v1749
        %v1860 = vpack.c.b16 %v1814, %v1812
        %v1861 = vpack.c.b16 %v1815, %v1813
        %v1862 = vpack.c.b16 %v1818, %v1816
        %v1863 = vpack.c.b16 %v1819, %v1817
        %v1864 = vpack.c.b16 %v1822, %v1820
        %v1865 = vpack.c.b16 %v1823, %v1821
        %v1866 = vpack.c.b16 %v1826, %v1824
        %v1867 = vpack.c.b16 %v1827, %v1825
        %v1868 = vpack.c.b16 %v1830, %v1828
        %v1869 = vpack.c.b16 %v1831, %v1829
        %v1870 = vpack.c.b16 %v1834, %v1832
        %v1871 = vpack.c.b16 %v1835, %v1833
        %v1872 = vpack.c.b16 %v1838, %v1836
        %v1873 = vpack.c.b16 %v1839, %v1837
        %v1874 = vpack.c.b16 %v1842, %v1840
        %v1875 = vpack.c.b16 %v1843, %v1841
        %v1876 = vpack.c.b16 %v1846, %v1844
        %v1877 = vpack.c.b16 %v1847, %v1845
        %v1878 = vpack.c.b16 %v1850, %v1848
        %v1879 = vpack.c.b16 %v1851, %v1849
        %v1880 = vpack.c.b16 %v1854, %v1852
        %v1881 = vpack.c.b16 %v1855, %v1853
        %v1882 = vpack.c.b16 %v1858, %v1856
        %v1883 = vpack.c.b16 %v1859, %v1857
        %v1940 = vunpack.c.l.b16 %v1750
        %v1941 = vunpack.c.h.b16 %v1750
        %v1942 = vunpack.c.l.b16 %v1751
        %v1943 = vunpack.c.h.b16 %v1751
        %v1944 = vunpack.c.l.b16 %v1752
        %v1945 = vunpack.c.h.b16 %v1752
        %v1946 = vunpack.c.l.b16 %v1753
        %v1947 = vunpack.c.h.b16 %v1753
        %v1948 = vunpack.c.l.b16 %v1754
        %v1949 = vunpack.c.h.b16 %v1754
        %v1950 = vunpack.c.l.b16 %v1755
        %v1951 = vunpack.c.h.b16 %v1755
        %v1952 = vunpack.c.l.b16 %v1756
        %v1953 = vunpack.c.h.b16 %v1756
        %v1954 = vunpack.c.l.b16 %v1757
        %v1955 = vunpack.c.h.b16 %v1757
        %v1956 = vunpack.c.l.b16 %v1758
        %v1957 = vunpack.c.h.b16 %v1758
        %v1958 = vunpack.c.l.b16 %v1759
        %v1959 = vunpack.c.h.b16 %v1759
        %v1960 = vunpack.c.l.b16 %v1760
        %v1961 = vunpack.c.h.b16 %v1760
        %v1962 = vunpack.c.l.b16 %v1761
        %v1963 = vunpack.c.h.b16 %v1761
        %v1964 = vunpack.c.l.b16 %v1762
        %v1965 = vunpack.c.h.b16 %v1762
        %v1966 = vunpack.c.l.b16 %v1763
        %v1967 = vunpack.c.h.b16 %v1763
        %v1968 = vunpack.c.l.b16 %v1764
        %v1969 = vunpack.c.h.b16 %v1764
        %v1970 = vunpack.c.l.b16 %v1765
        %v1971 = vunpack.c.h.b16 %v1765
        %v1972 = vunpack.c.l.b16 %v1766
        %v1973 = vunpack.c.h.b16 %v1766
        %v1974 = vunpack.c.l.b16 %v1767
        %v1975 = vunpack.c.h.b16 %v1767
        %v1976 = vunpack.c.l.b16 %v1768
        %v1977 = vunpack.c.h.b16 %v1768
        %v1978 = vunpack.c.l.b16 %v1769
        %v1979 = vunpack.c.h.b16 %v1769
        %v1980 = vunpack.c.l.b16 %v1770
        %v1981 = vunpack.c.h.b16 %v1770
        %v1982 = vunpack.c.l.b16 %v1771
        %v1983 = vunpack.c.h.b16 %v1771
        %v1984 = vunpack.c.l.b16 %v1772
        %v1985 = vunpack.c.h.b16 %v1772
        %v1986 = vunpack.c.l.b16 %v1773
        %v1987 = vunpack.c.h.b16 %v1773
        %v1988 = vunpack.c.l.b16 %v1774
        %v1989 = vunpack.c.h.b16 %v1774
        %v1990 = vunpack.c.l.b16 %v1775
        %v1991 = vunpack.c.h.b16 %v1775
        %v1992 = vunpack.c.l.b16 %v1776
        %v1993 = vunpack.c.h.b16 %v1776
        %v1994 = vunpack.c.l.b16 %v1777
        %v1995 = vunpack.c.h.b16 %v1777
        %v1996 = vunpack.c.l.b16 %v1778
        %v1997 = vunpack.c.h.b16 %v1778
        %v1998 = vunpack.c.l.b16 %v1779
        %v1999 = vunpack.c.h.b16 %v1779
        %v2000 = vunpack.c.l.b16 %v1780
        %v2001 = vunpack.c.h.b16 %v1780
        %v2002 = vunpack.c.l.b16 %v1781
        %v2003 = vunpack.c.h.b16 %v1781
        %v2004 = vpack.c.b16 %v1942, %v1940
        %v2005 = vpack.c.b16 %v1943, %v1941
        %v2006 = vpack.c.b16 %v1946, %v1944
        %v2007 = vpack.c.b16 %v1947, %v1945
        %v2008 = vpack.c.b16 %v1950, %v1948
        %v2009 = vpack.c.b16 %v1951, %v1949
        %v2010 = vpack.c.b16 %v1954, %v1952
        %v2011 = vpack.c.b16 %v1955, %v1953
        %v2012 = vpack.c.b16 %v1958, %v1956
        %v2013 = vpack.c.b16 %v1959, %v1957
        %v2014 = vpack.c.b16 %v1962, %v1960
        %v2015 = vpack.c.b16 %v1963, %v1961
        %v2016 = vpack.c.b16 %v1966, %v1964
        %v2017 = vpack.c.b16 %v1967, %v1965
        %v2018 = vpack.c.b16 %v1970, %v1968
        %v2019 = vpack.c.b16 %v1971, %v1969
        %v2020 = vpack.c.b16 %v1974, %v1972
        %v2021 = vpack.c.b16 %v1975, %v1973
        %v2022 = vpack.c.b16 %v1978, %v1976
        %v2023 = vpack.c.b16 %v1979, %v1977
        %v2024 = vpack.c.b16 %v1982, %v1980
        %v2025 = vpack.c.b16 %v1983, %v1981
        %v2026 = vpack.c.b16 %v1986, %v1984
        %v2027 = vpack.c.b16 %v1987, %v1985
        %v2028 = vpack.c.b16 %v1990, %v1988
        %v2029 = vpack.c.b16 %v1991, %v1989
        %v2030 = vpack.c.b16 %v1994, %v1992
        %v2031 = vpack.c.b16 %v1995, %v1993
        %v2032 = vpack.c.b16 %v1998, %v1996
        %v2033 = vpack.c.b16 %v1999, %v1997
        %v2034 = vpack.c.b16 %v2002, %v2000
        %v2035 = vpack.c.b16 %v2003, %v2001
        %2068 = vmatpush.bf16.msra.mxu0 %v2018
        %2069 = vmatpush.bf16.msra.mxu0 %v2016
        %2070 = vmatpush.bf16.msra.mxu0 %v2014
        %2071 = vmatpush.bf16.msra.mxu0 %v2012
        %2072 = vmatpush.bf16.msra.mxu0 %v2010
        %2073 = vmatpush.bf16.msra.mxu0 %v2008
        %2074 = vmatpush.bf16.msra.mxu0 %v2006
        %2075 = vmatpush.bf16.msra.mxu0 %v2004
        %2076 = vmatmul.bf16.gmra.mxu0 %v1860
        %v2077 = vpop.f32.mrf.mxu0
        %v2078 = vadd.f32 %v1784, %v2077
        %v2079 = vpop.f32.mrf.mxu0
        %v2080 = vadd.f32 %v1784, %v2079
        %2081 = vmatmul.bf16.gmra.mxu0 %v1862
        %v2082 = vpop.f32.mrf.mxu0
        %v2083 = vadd.f32 %v1784, %v2082
        %v2084 = vpop.f32.mrf.mxu0
        %v2085 = vadd.f32 %v1784, %v2084
        %2086 = vmatmul.bf16.gmra.mxu0 %v1864
        %v2087 = vpop.f32.mrf.mxu0
        %v2088 = vadd.f32 %v1784, %v2087
        %v2089 = vpop.f32.mrf.mxu0
        %v2090 = vadd.f32 %v1784, %v2089
        %2091 = vmatmul.bf16.gmra.mxu0 %v1866
        %v2092 = vpop.f32.mrf.mxu0
        %v2093 = vadd.f32 %v1784, %v2092
        %v2094 = vpop.f32.mrf.mxu0
        %v2095 = vadd.f32 %v1784, %v2094
        %2096 = vmatmul.bf16.gmra.mxu0 %v1868
        %v2097 = vpop.f32.mrf.mxu0
        %v2098 = vadd.f32 %v1784, %v2097
        %v2099 = vpop.f32.mrf.mxu0
        %v2100 = vadd.f32 %v1784, %v2099
        %2101 = vmatmul.bf16.gmra.mxu0 %v1870
        %v2102 = vpop.f32.mrf.mxu0
        %v2103 = vadd.f32 %v1784, %v2102
        %v2104 = vpop.f32.mrf.mxu0
        %v2105 = vadd.f32 %v1784, %v2104
        %2106 = vmatmul.bf16.gmra.mxu0 %v1872
        %v2107 = vpop.f32.mrf.mxu0
        %v2108 = vadd.f32 %v1784, %v2107
        %v2109 = vpop.f32.mrf.mxu0
        %v2110 = vadd.f32 %v1784, %v2109
        %2111 = vmatmul.bf16.gmra.mxu0 %v1874
        %v2112 = vpop.f32.mrf.mxu0
        %v2113 = vadd.f32 %v1784, %v2112
        %v2114 = vpop.f32.mrf.mxu0
        %v2115 = vadd.f32 %v1784, %v2114
        %2116 = vmatmul.bf16.gmra.mxu0 %v1876
        %v2117 = vpop.f32.mrf.mxu0
        %v2118 = vadd.f32 %v1784, %v2117
        %v2119 = vpop.f32.mrf.mxu0
        %v2120 = vadd.f32 %v1784, %v2119
        %2121 = vmatmul.bf16.gmra.mxu0 %v1878
        %v2122 = vpop.f32.mrf.mxu0
        %v2123 = vadd.f32 %v1784, %v2122
        %v2124 = vpop.f32.mrf.mxu0
        %v2125 = vadd.f32 %v1784, %v2124
        %2126 = vmatmul.bf16.gmra.mxu0 %v1880
        %v2127 = vpop.f32.mrf.mxu0
        %v2128 = vadd.f32 %v1784, %v2127
        %v2129 = vpop.f32.mrf.mxu0
        %v2130 = vadd.f32 %v1784, %v2129
        %2131 = vmatmul.bf16.gmra.mxu0 %v1882
        %v2132 = vpop.f32.mrf.mxu0
        %v2133 = vadd.f32 %v1784, %v2132
        %v2134 = vpop.f32.mrf.mxu0
        %v2135 = vadd.f32 %v1784, %v2134
        %2136 = vdwg.mxu0
        %2137 = vmatpush.bf16.msra.mxu0 %v2034
        %2138 = vmatpush.bf16.msra.mxu0 %v2032
        %2139 = vmatpush.bf16.msra.mxu0 %v2030
        %2140 = vmatpush.bf16.msra.mxu0 %v2028
        %2141 = vmatpush.bf16.msra.mxu0 %v2026
        %2142 = vmatpush.bf16.msra.mxu0 %v2024
        %2143 = vmatpush.bf16.msra.mxu0 %v2022
        %2144 = vmatpush.bf16.msra.mxu0 %v2020
        %2145 = vmatmul.bf16.gmra.mxu0 %v1861
        %v2146 = vpop.f32.mrf.mxu0
        %v2147 = vadd.f32 %v2078, %v2146
        %v2148 = vpop.f32.mrf.mxu0
        %v2149 = vadd.f32 %v2080, %v2148
        %2150 = vmatmul.bf16.gmra.mxu0 %v1863
        %v2151 = vpop.f32.mrf.mxu0
        %v2152 = vadd.f32 %v2083, %v2151
        %v2153 = vpop.f32.mrf.mxu0
        %v2154 = vadd.f32 %v2085, %v2153
        %2155 = vmatmul.bf16.gmra.mxu0 %v1865
        %v2156 = vpop.f32.mrf.mxu0
        %v2157 = vadd.f32 %v2088, %v2156
        %v2158 = vpop.f32.mrf.mxu0
        %v2159 = vadd.f32 %v2090, %v2158
        %2160 = vmatmul.bf16.gmra.mxu0 %v1867
        %v2161 = vpop.f32.mrf.mxu0
        %v2162 = vadd.f32 %v2093, %v2161
        %v2163 = vpop.f32.mrf.mxu0
        %v2164 = vadd.f32 %v2095, %v2163
        %2165 = vmatmul.bf16.gmra.mxu0 %v1869
        %v2166 = vpop.f32.mrf.mxu0
        %v2167 = vadd.f32 %v2098, %v2166
        %v2168 = vpop.f32.mrf.mxu0
        %v2169 = vadd.f32 %v2100, %v2168
        %2170 = vmatmul.bf16.gmra.mxu0 %v1871
        %v2171 = vpop.f32.mrf.mxu0
        %v2172 = vadd.f32 %v2103, %v2171
        %v2173 = vpop.f32.mrf.mxu0
        %v2174 = vadd.f32 %v2105, %v2173
        %2175 = vmatmul.bf16.gmra.mxu0 %v1873
        %v2176 = vpop.f32.mrf.mxu0
        %v2177 = vadd.f32 %v2108, %v2176
        %v2178 = vpop.f32.mrf.mxu0
        %v2179 = vadd.f32 %v2110, %v2178
        %2180 = vmatmul.bf16.gmra.mxu0 %v1875
        %v2181 = vpop.f32.mrf.mxu0
        %v2182 = vadd.f32 %v2113, %v2181
        %v2183 = vpop.f32.mrf.mxu0
        %v2184 = vadd.f32 %v2115, %v2183
        %2185 = vmatmul.bf16.gmra.mxu0 %v1877
        %v2186 = vpop.f32.mrf.mxu0
        %v2187 = vadd.f32 %v2118, %v2186
        %v2188 = vpop.f32.mrf.mxu0
        %v2189 = vadd.f32 %v2120, %v2188
        %2190 = vmatmul.bf16.gmra.mxu0 %v1879
        %v2191 = vpop.f32.mrf.mxu0
        %v2192 = vadd.f32 %v2123, %v2191
        %v2193 = vpop.f32.mrf.mxu0
        %v2194 = vadd.f32 %v2125, %v2193
        %2195 = vmatmul.bf16.gmra.mxu0 %v1881
        %v2196 = vpop.f32.mrf.mxu0
        %v2197 = vadd.f32 %v2128, %v2196
        %v2198 = vpop.f32.mrf.mxu0
        %v2199 = vadd.f32 %v2130, %v2198
        %2200 = vmatmul.bf16.gmra.mxu0 %v1883
        %v2201 = vpop.f32.mrf.mxu0
        %v2202 = vadd.f32 %v2133, %v2201
        %v2203 = vpop.f32.mrf.mxu0
        %v2204 = vadd.f32 %v2135, %v2203
        %2205 = vdwg.mxu0
        %2206 = vmatpush.bf16.msra.mxu0 %v2019
        %2207 = vmatpush.bf16.msra.mxu0 %v2017
        %2208 = vmatpush.bf16.msra.mxu0 %v2015
        %2209 = vmatpush.bf16.msra.mxu0 %v2013
        %2210 = vmatpush.bf16.msra.mxu0 %v2011
        %2211 = vmatpush.bf16.msra.mxu0 %v2009
        %2212 = vmatpush.bf16.msra.mxu0 %v2007
        %2213 = vmatpush.bf16.msra.mxu0 %v2005
        %2214 = vmatmul.bf16.gmra.mxu0 %v1860
        %v2215 = vpop.f32.mrf.mxu0
        %v2216 = vadd.f32 %v1785, %v2215
        %v2217 = vpop.f32.mrf.mxu0
        %v2218 = vadd.f32 %v1785, %v2217
        %2219 = vmatmul.bf16.gmra.mxu0 %v1862
        %v2220 = vpop.f32.mrf.mxu0
        %v2221 = vadd.f32 %v1785, %v2220
        %v2222 = vpop.f32.mrf.mxu0
        %v2223 = vadd.f32 %v1785, %v2222
        %2224 = vmatmul.bf16.gmra.mxu0 %v1864
        %v2225 = vpop.f32.mrf.mxu0
        %v2226 = vadd.f32 %v1785, %v2225
        %v2227 = vpop.f32.mrf.mxu0
        %v2228 = vadd.f32 %v1785, %v2227
        %2229 = vmatmul.bf16.gmra.mxu0 %v1866
        %v2230 = vpop.f32.mrf.mxu0
        %v2231 = vadd.f32 %v1785, %v2230
        %v2232 = vpop.f32.mrf.mxu0
        %v2233 = vadd.f32 %v1785, %v2232
        %2234 = vmatmul.bf16.gmra.mxu0 %v1868
        %v2235 = vpop.f32.mrf.mxu0
        %v2236 = vadd.f32 %v1785, %v2235
        %v2237 = vpop.f32.mrf.mxu0
        %v2238 = vadd.f32 %v1785, %v2237
        %2239 = vmatmul.bf16.gmra.mxu0 %v1870
        %v2240 = vpop.f32.mrf.mxu0
        %v2241 = vadd.f32 %v1785, %v2240
        %v2242 = vpop.f32.mrf.mxu0
        %v2243 = vadd.f32 %v1785, %v2242
        %2244 = vmatmul.bf16.gmra.mxu0 %v1872
        %v2245 = vpop.f32.mrf.mxu0
        %v2246 = vadd.f32 %v1785, %v2245
        %v2247 = vpop.f32.mrf.mxu0
        %v2248 = vadd.f32 %v1785, %v2247
        %2249 = vmatmul.bf16.gmra.mxu0 %v1874
        %v2250 = vpop.f32.mrf.mxu0
        %v2251 = vadd.f32 %v1785, %v2250
        %v2252 = vpop.f32.mrf.mxu0
        %v2253 = vadd.f32 %v1785, %v2252
        %2254 = vmatmul.bf16.gmra.mxu0 %v1876
        %v2255 = vpop.f32.mrf.mxu0
        %v2256 = vadd.f32 %v1785, %v2255
        %v2257 = vpop.f32.mrf.mxu0
        %v2258 = vadd.f32 %v1785, %v2257
        %2259 = vmatmul.bf16.gmra.mxu0 %v1878
        %v2260 = vpop.f32.mrf.mxu0
        %v2261 = vadd.f32 %v1785, %v2260
        %v2262 = vpop.f32.mrf.mxu0
        %v2263 = vadd.f32 %v1785, %v2262
        %2264 = vmatmul.bf16.gmra.mxu0 %v1880
        %v2265 = vpop.f32.mrf.mxu0
        %v2266 = vadd.f32 %v1785, %v2265
        %v2267 = vpop.f32.mrf.mxu0
        %v2268 = vadd.f32 %v1785, %v2267
        %2269 = vmatmul.bf16.gmra.mxu0 %v1882
        %v2270 = vpop.f32.mrf.mxu0
        %v2271 = vadd.f32 %v1785, %v2270
        %v2272 = vpop.f32.mrf.mxu0
        %v2273 = vadd.f32 %v1785, %v2272
        %2274 = vdwg.mxu0
        %2275 = vmatpush.bf16.msra.mxu0 %v2035
        %2276 = vmatpush.bf16.msra.mxu0 %v2033
        %2277 = vmatpush.bf16.msra.mxu0 %v2031
        %2278 = vmatpush.bf16.msra.mxu0 %v2029
        %2279 = vmatpush.bf16.msra.mxu0 %v2027
        %2280 = vmatpush.bf16.msra.mxu0 %v2025
        %2281 = vmatpush.bf16.msra.mxu0 %v2023
        %2282 = vmatpush.bf16.msra.mxu0 %v2021
        %2283 = vmatmul.bf16.gmra.mxu0 %v1861
        %v2284 = vpop.f32.mrf.mxu0
        %v2285 = vadd.f32 %v2216, %v2284
        %v2286 = vpop.f32.mrf.mxu0
        %v2287 = vadd.f32 %v2218, %v2286
        %2288 = vmatmul.bf16.gmra.mxu0 %v1863
        %v2289 = vpop.f32.mrf.mxu0
        %v2290 = vadd.f32 %v2221, %v2289
        %v2291 = vpop.f32.mrf.mxu0
        %v2292 = vadd.f32 %v2223, %v2291
        %2293 = vmatmul.bf16.gmra.mxu0 %v1865
        %v2294 = vpop.f32.mrf.mxu0
        %v2295 = vadd.f32 %v2226, %v2294
        %v2296 = vpop.f32.mrf.mxu0
        %v2297 = vadd.f32 %v2228, %v2296
        %2298 = vmatmul.bf16.gmra.mxu0 %v1867
        %v2299 = vpop.f32.mrf.mxu0
        %v2300 = vadd.f32 %v2231, %v2299
        %v2301 = vpop.f32.mrf.mxu0
        %v2302 = vadd.f32 %v2233, %v2301
        %2303 = vmatmul.bf16.gmra.mxu0 %v1869
        %v2304 = vpop.f32.mrf.mxu0
        %v2305 = vadd.f32 %v2236, %v2304
        %v2306 = vpop.f32.mrf.mxu0
        %v2307 = vadd.f32 %v2238, %v2306
        %2308 = vmatmul.bf16.gmra.mxu0 %v1871
        %v2309 = vpop.f32.mrf.mxu0
        %v2310 = vadd.f32 %v2241, %v2309
        %v2311 = vpop.f32.mrf.mxu0
        %v2312 = vadd.f32 %v2243, %v2311
        %2313 = vmatmul.bf16.gmra.mxu0 %v1873
        %v2314 = vpop.f32.mrf.mxu0
        %v2315 = vadd.f32 %v2246, %v2314
        %v2316 = vpop.f32.mrf.mxu0
        %v2317 = vadd.f32 %v2248, %v2316
        %2318 = vmatmul.bf16.gmra.mxu0 %v1875
        %v2319 = vpop.f32.mrf.mxu0
        %v2320 = vadd.f32 %v2251, %v2319
        %v2321 = vpop.f32.mrf.mxu0
        %v2322 = vadd.f32 %v2253, %v2321
        %2323 = vmatmul.bf16.gmra.mxu0 %v1877
        %v2324 = vpop.f32.mrf.mxu0
        %v2325 = vadd.f32 %v2256, %v2324
        %v2326 = vpop.f32.mrf.mxu0
        %v2327 = vadd.f32 %v2258, %v2326
        %2328 = vmatmul.bf16.gmra.mxu0 %v1879
        %v2329 = vpop.f32.mrf.mxu0
        %v2330 = vadd.f32 %v2261, %v2329
        %v2331 = vpop.f32.mrf.mxu0
        %v2332 = vadd.f32 %v2263, %v2331
        %2333 = vmatmul.bf16.gmra.mxu0 %v1881
        %v2334 = vpop.f32.mrf.mxu0
        %v2335 = vadd.f32 %v2266, %v2334
        %v2336 = vpop.f32.mrf.mxu0
        %v2337 = vadd.f32 %v2268, %v2336
        %2338 = vmatmul.bf16.gmra.mxu0 %v1883
        %v2339 = vpop.f32.mrf.mxu0
        %v2340 = vadd.f32 %v2271, %v2339
        %v2341 = vpop.f32.mrf.mxu0
        %v2342 = vadd.f32 %v2273, %v2341
        %2343 = vdwg.mxu0
        %v2344 = vmul.f32 %v2147, %v2147
        %v2345 = vmul.f32 %v2285, %v2285
        %v2346 = vmul.f32 %v2149, %v2149
        %v2347 = vmul.f32 %v2287, %v2287
        %v2348 = vmul.f32 %v2152, %v2152
        %v2349 = vmul.f32 %v2290, %v2290
        %v2350 = vmul.f32 %v2154, %v2154
        %v2351 = vmul.f32 %v2292, %v2292
        %v2352 = vmul.f32 %v2157, %v2157
        %v2353 = vmul.f32 %v2295, %v2295
        %v2354 = vmul.f32 %v2159, %v2159
        %v2355 = vmul.f32 %v2297, %v2297
        %v2356 = vmul.f32 %v2162, %v2162
        %v2357 = vmul.f32 %v2300, %v2300
        %v2358 = vmul.f32 %v2164, %v2164
        %v2359 = vmul.f32 %v2302, %v2302
        %v2360 = vmul.f32 %v2167, %v2167
        %v2361 = vmul.f32 %v2305, %v2305
        %v2362 = vmul.f32 %v2169, %v2169
        %v2363 = vmul.f32 %v2307, %v2307
        %v2364 = vmul.f32 %v2172, %v2172
        %v2365 = vmul.f32 %v2310, %v2310
        %v2366 = vmul.f32 %v2174, %v2174
        %v2367 = vmul.f32 %v2312, %v2312
        %v2368 = vmul.f32 %v2177, %v2177
        %v2369 = vmul.f32 %v2315, %v2315
        %v2370 = vmul.f32 %v2179, %v2179
        %v2371 = vmul.f32 %v2317, %v2317
        %v2372 = vmul.f32 %v2182, %v2182
        %v2373 = vmul.f32 %v2320, %v2320
        %v2374 = vmul.f32 %v2184, %v2184
        %v2375 = vmul.f32 %v2322, %v2322
        %v2376 = vmul.f32 %v2187, %v2187
        %v2377 = vmul.f32 %v2325, %v2325
        %v2378 = vmul.f32 %v2189, %v2189
        %v2379 = vmul.f32 %v2327, %v2327
        %v2380 = vmul.f32 %v2192, %v2192
        %v2381 = vmul.f32 %v2330, %v2330
        %v2382 = vmul.f32 %v2194, %v2194
        %v2383 = vmul.f32 %v2332, %v2332
        %v2384 = vmul.f32 %v2197, %v2197
        %v2385 = vmul.f32 %v2335, %v2335
        %v2386 = vmul.f32 %v2199, %v2199
        %v2387 = vmul.f32 %v2337, %v2337
        %v2388 = vmul.f32 %v2202, %v2202
        %v2389 = vmul.f32 %v2340, %v2340
        %v2390 = vmul.f32 %v2204, %v2204
        %v2391 = vmul.f32 %v2342, %v2342
        %v2392 = vmul.f32 %v2344, %v2147
        %v2393 = vmul.f32 %v2345, %v2285
        %v2394 = vmul.f32 %v2346, %v2149
        %v2395 = vmul.f32 %v2347, %v2287
        %v2396 = vmul.f32 %v2348, %v2152
        %v2397 = vmul.f32 %v2349, %v2290
        %v2398 = vmul.f32 %v2350, %v2154
        %v2399 = vmul.f32 %v2351, %v2292
        %v2400 = vmul.f32 %v2352, %v2157
        %v2401 = vmul.f32 %v2353, %v2295
        %v2402 = vmul.f32 %v2354, %v2159
        %v2403 = vmul.f32 %v2355, %v2297
        %v2404 = vmul.f32 %v2356, %v2162
        %v2405 = vmul.f32 %v2357, %v2300
        %v2406 = vmul.f32 %v2358, %v2164
        %v2407 = vmul.f32 %v2359, %v2302
        %v2408 = vmul.f32 %v2360, %v2167
        %v2409 = vmul.f32 %v2361, %v2305
        %v2410 = vmul.f32 %v2362, %v2169
        %v2411 = vmul.f32 %v2363, %v2307
        %v2412 = vmul.f32 %v2364, %v2172
        %v2413 = vmul.f32 %v2365, %v2310
        %v2414 = vmul.f32 %v2366, %v2174
        %v2415 = vmul.f32 %v2367, %v2312
        %v2416 = vmul.f32 %v2368, %v2177
        %v2417 = vmul.f32 %v2369, %v2315
        %v2418 = vmul.f32 %v2370, %v2179
        %v2419 = vmul.f32 %v2371, %v2317
        %v2420 = vmul.f32 %v2372, %v2182
        %v2421 = vmul.f32 %v2373, %v2320
        %v2422 = vmul.f32 %v2374, %v2184
        %v2423 = vmul.f32 %v2375, %v2322
        %v2424 = vmul.f32 %v2376, %v2187
        %v2425 = vmul.f32 %v2377, %v2325
        %v2426 = vmul.f32 %v2378, %v2189
        %v2427 = vmul.f32 %v2379, %v2327
        %v2428 = vmul.f32 %v2380, %v2192
        %v2429 = vmul.f32 %v2381, %v2330
        %v2430 = vmul.f32 %v2382, %v2194
        %v2431 = vmul.f32 %v2383, %v2332
        %v2432 = vmul.f32 %v2384, %v2197
        %v2433 = vmul.f32 %v2385, %v2335
        %v2434 = vmul.f32 %v2386, %v2199
        %v2435 = vmul.f32 %v2387, %v2337
        %v2436 = vmul.f32 %v2388, %v2202
        %v2437 = vmul.f32 %v2389, %v2340
        %v2438 = vmul.f32 %v2390, %v2204
        %v2439 = vmul.f32 %v2391, %v2342
        %v2440 = vmul.f32 %v2392, 0.044715
        %v2441 = vmul.f32 %v2393, 0.044715
        %v2442 = vmul.f32 %v2394, 0.044715
        %v2443 = vmul.f32 %v2395, 0.044715
        %v2444 = vmul.f32 %v2396, 0.044715
        %v2445 = vmul.f32 %v2397, 0.044715
        %v2446 = vmul.f32 %v2398, 0.044715
        %v2447 = vmul.f32 %v2399, 0.044715
        %v2448 = vmul.f32 %v2400, 0.044715
        %v2449 = vmul.f32 %v2401, 0.044715
        %v2450 = vmul.f32 %v2402, 0.044715
        %v2451 = vmul.f32 %v2403, 0.044715
        %v2452 = vmul.f32 %v2404, 0.044715
        %v2453 = vmul.f32 %v2405, 0.044715
        %v2454 = vmul.f32 %v2406, 0.044715
        %v2455 = vmul.f32 %v2407, 0.044715
        %v2456 = vmul.f32 %v2408, 0.044715
        %v2457 = vmul.f32 %v2409, 0.044715
        %v2458 = vmul.f32 %v2410, 0.044715
        %v2459 = vmul.f32 %v2411, 0.044715
        %v2460 = vmul.f32 %v2412, 0.044715
        %v2461 = vmul.f32 %v2413, 0.044715
        %v2462 = vmul.f32 %v2414, 0.044715
        %v2463 = vmul.f32 %v2415, 0.044715
        %v2464 = vmul.f32 %v2416, 0.044715
        %v2465 = vmul.f32 %v2417, 0.044715
        %v2466 = vmul.f32 %v2418, 0.044715
        %v2467 = vmul.f32 %v2419, 0.044715
        %v2468 = vmul.f32 %v2420, 0.044715
        %v2469 = vmul.f32 %v2421, 0.044715
        %v2470 = vmul.f32 %v2422, 0.044715
        %v2471 = vmul.f32 %v2423, 0.044715
        %v2472 = vmul.f32 %v2424, 0.044715
        %v2473 = vmul.f32 %v2425, 0.044715
        %v2474 = vmul.f32 %v2426, 0.044715
        %v2475 = vmul.f32 %v2427, 0.044715
        %v2476 = vmul.f32 %v2428, 0.044715
        %v2477 = vmul.f32 %v2429, 0.044715
        %v2478 = vmul.f32 %v2430, 0.044715
        %v2479 = vmul.f32 %v2431, 0.044715
        %v2480 = vmul.f32 %v2432, 0.044715
        %v2481 = vmul.f32 %v2433, 0.044715
        %v2482 = vmul.f32 %v2434, 0.044715
        %v2483 = vmul.f32 %v2435, 0.044715
        %v2484 = vmul.f32 %v2436, 0.044715
        %v2485 = vmul.f32 %v2437, 0.044715
        %v2486 = vmul.f32 %v2438, 0.044715
        %v2487 = vmul.f32 %v2439, 0.044715
        %v2488 = vadd.f32 %v2147, %v2440
        %v2489 = vadd.f32 %v2285, %v2441
        %v2490 = vadd.f32 %v2149, %v2442
        %v2491 = vadd.f32 %v2287, %v2443
        %v2492 = vadd.f32 %v2152, %v2444
        %v2493 = vadd.f32 %v2290, %v2445
        %v2494 = vadd.f32 %v2154, %v2446
        %v2495 = vadd.f32 %v2292, %v2447
        %v2496 = vadd.f32 %v2157, %v2448
        %v2497 = vadd.f32 %v2295, %v2449
        %v2498 = vadd.f32 %v2159, %v2450
        %v2499 = vadd.f32 %v2297, %v2451
        %v2500 = vadd.f32 %v2162, %v2452
        %v2501 = vadd.f32 %v2300, %v2453
        %v2502 = vadd.f32 %v2164, %v2454
        %v2503 = vadd.f32 %v2302, %v2455
        %v2504 = vadd.f32 %v2167, %v2456
        %v2505 = vadd.f32 %v2305, %v2457
        %v2506 = vadd.f32 %v2169, %v2458
        %v2507 = vadd.f32 %v2307, %v2459
        %v2508 = vadd.f32 %v2172, %v2460
        %v2509 = vadd.f32 %v2310, %v2461
        %v2510 = vadd.f32 %v2174, %v2462
        %v2511 = vadd.f32 %v2312, %v2463
        %v2512 = vadd.f32 %v2177, %v2464
        %v2513 = vadd.f32 %v2315, %v2465
        %v2514 = vadd.f32 %v2179, %v2466
        %v2515 = vadd.f32 %v2317, %v2467
        %v2516 = vadd.f32 %v2182, %v2468
        %v2517 = vadd.f32 %v2320, %v2469
        %v2518 = vadd.f32 %v2184, %v2470
        %v2519 = vadd.f32 %v2322, %v2471
        %v2520 = vadd.f32 %v2187, %v2472
        %v2521 = vadd.f32 %v2325, %v2473
        %v2522 = vadd.f32 %v2189, %v2474
        %v2523 = vadd.f32 %v2327, %v2475
        %v2524 = vadd.f32 %v2192, %v2476
        %v2525 = vadd.f32 %v2330, %v2477
        %v2526 = vadd.f32 %v2194, %v2478
        %v2527 = vadd.f32 %v2332, %v2479
        %v2528 = vadd.f32 %v2197, %v2480
        %v2529 = vadd.f32 %v2335, %v2481
        %v2530 = vadd.f32 %v2199, %v2482
        %v2531 = vadd.f32 %v2337, %v2483
        %v2532 = vadd.f32 %v2202, %v2484
        %v2533 = vadd.f32 %v2340, %v2485
        %v2534 = vadd.f32 %v2204, %v2486
        %v2535 = vadd.f32 %v2342, %v2487
        %v2536 = vmul.f32 %v2488, 0.7978846
        %v2537 = vmul.f32 %v2489, 0.7978846
        %v2538 = vmul.f32 %v2490, 0.7978846
        %v2539 = vmul.f32 %v2491, 0.7978846
        %v2540 = vmul.f32 %v2492, 0.7978846
        %v2541 = vmul.f32 %v2493, 0.7978846
        %v2542 = vmul.f32 %v2494, 0.7978846
        %v2543 = vmul.f32 %v2495, 0.7978846
        %v2544 = vmul.f32 %v2496, 0.7978846
        %v2545 = vmul.f32 %v2497, 0.7978846
        %v2546 = vmul.f32 %v2498, 0.7978846
        %v2547 = vmul.f32 %v2499, 0.7978846
        %v2548 = vmul.f32 %v2500, 0.7978846
        %v2549 = vmul.f32 %v2501, 0.7978846
        %v2550 = vmul.f32 %v2502, 0.7978846
        %v2551 = vmul.f32 %v2503, 0.7978846
        %v2552 = vmul.f32 %v2504, 0.7978846
        %v2553 = vmul.f32 %v2505, 0.7978846
        %v2554 = vmul.f32 %v2506, 0.7978846
        %v2555 = vmul.f32 %v2507, 0.7978846
        %v2556 = vmul.f32 %v2508, 0.7978846
        %v2557 = vmul.f32 %v2509, 0.7978846
        %v2558 = vmul.f32 %v2510, 0.7978846
        %v2559 = vmul.f32 %v2511, 0.7978846
        %v2560 = vmul.f32 %v2512, 0.7978846
        %v2561 = vmul.f32 %v2513, 0.7978846
        %v2562 = vmul.f32 %v2514, 0.7978846
        %v2563 = vmul.f32 %v2515, 0.7978846
        %v2564 = vmul.f32 %v2516, 0.7978846
        %v2565 = vmul.f32 %v2517, 0.7978846
        %v2566 = vmul.f32 %v2518, 0.7978846
        %v2567 = vmul.f32 %v2519, 0.7978846
        %v2568 = vmul.f32 %v2520, 0.7978846
        %v2569 = vmul.f32 %v2521, 0.7978846
        %v2570 = vmul.f32 %v2522, 0.7978846
        %v2571 = vmul.f32 %v2523, 0.7978846
        %v2572 = vmul.f32 %v2524, 0.7978846
        %v2573 = vmul.f32 %v2525, 0.7978846
        %v2574 = vmul.f32 %v2526, 0.7978846
        %v2575 = vmul.f32 %v2527, 0.7978846
        %v2576 = vmul.f32 %v2528, 0.7978846
        %v2577 = vmul.f32 %v2529, 0.7978846
        %v2578 = vmul.f32 %v2530, 0.7978846
        %v2579 = vmul.f32 %v2531, 0.7978846
        %v2580 = vmul.f32 %v2532, 0.7978846
        %v2581 = vmul.f32 %v2533, 0.7978846
        %v2582 = vmul.f32 %v2534, 0.7978846
        %v2583 = vmul.f32 %v2535, 0.7978846
        %v2584 = vmul.f32 %v2147, 0.5
        %v2585 = vmul.f32 %v2285, 0.5
        %v2586 = vmul.f32 %v2149, 0.5
        %v2587 = vmul.f32 %v2287, 0.5
        %v2588 = vmul.f32 %v2152, 0.5
        %v2589 = vmul.f32 %v2290, 0.5
        %v2590 = vmul.f32 %v2154, 0.5
        %v2591 = vmul.f32 %v2292, 0.5
        %v2592 = vmul.f32 %v2157, 0.5
        %v2593 = vmul.f32 %v2295, 0.5
        %v2594 = vmul.f32 %v2159, 0.5
        %v2595 = vmul.f32 %v2297, 0.5
        %v2596 = vmul.f32 %v2162, 0.5
        %v2597 = vmul.f32 %v2300, 0.5
        %v2598 = vmul.f32 %v2164, 0.5
        %v2599 = vmul.f32 %v2302, 0.5
        %v2600 = vmul.f32 %v2167, 0.5
        %v2601 = vmul.f32 %v2305, 0.5
        %v2602 = vmul.f32 %v2169, 0.5
        %v2603 = vmul.f32 %v2307, 0.5
        %v2604 = vmul.f32 %v2172, 0.5
        %v2605 = vmul.f32 %v2310, 0.5
        %v2606 = vmul.f32 %v2174, 0.5
        %v2607 = vmul.f32 %v2312, 0.5
        %v2608 = vmul.f32 %v2177, 0.5
        %v2609 = vmul.f32 %v2315, 0.5
        %v2610 = vmul.f32 %v2179, 0.5
        %v2611 = vmul.f32 %v2317, 0.5
        %v2612 = vmul.f32 %v2182, 0.5
        %v2613 = vmul.f32 %v2320, 0.5
        %v2614 = vmul.f32 %v2184, 0.5
        %v2615 = vmul.f32 %v2322, 0.5
        %v2616 = vmul.f32 %v2187, 0.5
        %v2617 = vmul.f32 %v2325, 0.5
        %v2618 = vmul.f32 %v2189, 0.5
        %v2619 = vmul.f32 %v2327, 0.5
        %v2620 = vmul.f32 %v2192, 0.5
        %v2621 = vmul.f32 %v2330, 0.5
        %v2622 = vmul.f32 %v2194, 0.5
        %v2623 = vmul.f32 %v2332, 0.5
        %v2624 = vmul.f32 %v2197, 0.5
        %v2625 = vmul.f32 %v2335, 0.5
        %v2626 = vmul.f32 %v2199, 0.5
        %v2627 = vmul.f32 %v2337, 0.5
        %v2628 = vmul.f32 %v2202, 0.5
        %v2629 = vmul.f32 %v2340, 0.5
        %v2630 = vmul.f32 %v2204, 0.5
        %v2631 = vmul.f32 %v2342, 0.5
        %v2632 = vtanh.pop %v2536
        %v2633 = vtanh.pop %v2537
        %v2634 = vtanh.pop %v2538
        %v2635 = vtanh.pop %v2539
        %v2636 = vtanh.pop %v2540
        %v2637 = vtanh.pop %v2541
        %v2638 = vtanh.pop %v2542
        %v2639 = vtanh.pop %v2543
        %v2640 = vtanh.pop %v2544
        %v2641 = vtanh.pop %v2545
        %v2642 = vtanh.pop %v2546
        %v2643 = vtanh.pop %v2547
        %v2644 = vtanh.pop %v2548
        %v2645 = vtanh.pop %v2549
        %v2646 = vtanh.pop %v2550
        %v2647 = vtanh.pop %v2551
        %v2648 = vtanh.pop %v2552
        %v2649 = vtanh.pop %v2553
        %v2650 = vtanh.pop %v2554
        %v2651 = vtanh.pop %v2555
        %v2652 = vtanh.pop %v2556
        %v2653 = vtanh.pop %v2557
        %v2654 = vtanh.pop %v2558
        %v2655 = vtanh.pop %v2559
        %v2656 = vtanh.pop %v2560
        %v2657 = vtanh.pop %v2561
        %v2658 = vtanh.pop %v2562
        %v2659 = vtanh.pop %v2563
        %v2660 = vtanh.pop %v2564
        %v2661 = vtanh.pop %v2565
        %v2662 = vtanh.pop %v2566
        %v2663 = vtanh.pop %v2567
        %v2664 = vtanh.pop %v2568
        %v2665 = vtanh.pop %v2569
        %v2666 = vtanh.pop %v2570
        %v2667 = vtanh.pop %v2571
        %v2668 = vtanh.pop %v2572
        %v2669 = vtanh.pop %v2573
        %v2670 = vtanh.pop %v2574
        %v2671 = vtanh.pop %v2575
        %v2672 = vtanh.pop %v2576
        %v2673 = vtanh.pop %v2577
        %v2674 = vtanh.pop %v2578
        %v2675 = vtanh.pop %v2579
        %v2676 = vtanh.pop %v2580
        %v2677 = vtanh.pop %v2581
        %v2678 = vtanh.pop %v2582
        %v2679 = vtanh.pop %v2583
        %v2680 = vadd.f32 %v2632, 1.0
        %v2681 = vadd.f32 %v2633, 1.0
        %v2682 = vadd.f32 %v2634, 1.0
        %v2683 = vadd.f32 %v2635, 1.0
        %v2684 = vadd.f32 %v2636, 1.0
        %v2685 = vadd.f32 %v2637, 1.0
        %v2686 = vadd.f32 %v2638, 1.0
        %v2687 = vadd.f32 %v2639, 1.0
        %v2688 = vadd.f32 %v2640, 1.0
        %v2689 = vadd.f32 %v2641, 1.0
        %v2690 = vadd.f32 %v2642, 1.0
        %v2691 = vadd.f32 %v2643, 1.0
        %v2692 = vadd.f32 %v2644, 1.0
        %v2693 = vadd.f32 %v2645, 1.0
        %v2694 = vadd.f32 %v2646, 1.0
        %v2695 = vadd.f32 %v2647, 1.0
        %v2696 = vadd.f32 %v2648, 1.0
        %v2697 = vadd.f32 %v2649, 1.0
        %v2698 = vadd.f32 %v2650, 1.0
        %v2699 = vadd.f32 %v2651, 1.0
        %v2700 = vadd.f32 %v2652, 1.0
        %v2701 = vadd.f32 %v2653, 1.0
        %v2702 = vadd.f32 %v2654, 1.0
        %v2703 = vadd.f32 %v2655, 1.0
        %v2704 = vadd.f32 %v2656, 1.0
        %v2705 = vadd.f32 %v2657, 1.0
        %v2706 = vadd.f32 %v2658, 1.0
        %v2707 = vadd.f32 %v2659, 1.0
        %v2708 = vadd.f32 %v2660, 1.0
        %v2709 = vadd.f32 %v2661, 1.0
        %v2710 = vadd.f32 %v2662, 1.0
        %v2711 = vadd.f32 %v2663, 1.0
        %v2712 = vadd.f32 %v2664, 1.0
        %v2713 = vadd.f32 %v2665, 1.0
        %v2714 = vadd.f32 %v2666, 1.0
        %v2715 = vadd.f32 %v2667, 1.0
        %v2716 = vadd.f32 %v2668, 1.0
        %v2717 = vadd.f32 %v2669, 1.0
        %v2718 = vadd.f32 %v2670, 1.0
        %v2719 = vadd.f32 %v2671, 1.0
        %v2720 = vadd.f32 %v2672, 1.0
        %v2721 = vadd.f32 %v2673, 1.0
        %v2722 = vadd.f32 %v2674, 1.0
        %v2723 = vadd.f32 %v2675, 1.0
        %v2724 = vadd.f32 %v2676, 1.0
        %v2725 = vadd.f32 %v2677, 1.0
        %v2726 = vadd.f32 %v2678, 1.0
        %v2727 = vadd.f32 %v2679, 1.0
        %v2728 = vmul.f32 %v2584, %v2680
        %v2729 = vmul.f32 %v2585, %v2681
        %v2730 = vmul.f32 %v2586, %v2682
        %v2731 = vmul.f32 %v2587, %v2683
        %v2732 = vmul.f32 %v2588, %v2684
        %v2733 = vmul.f32 %v2589, %v2685
        %v2734 = vmul.f32 %v2590, %v2686
        %v2735 = vmul.f32 %v2591, %v2687
        %v2736 = vmul.f32 %v2592, %v2688
        %v2737 = vmul.f32 %v2593, %v2689
        %v2738 = vmul.f32 %v2594, %v2690
        %v2739 = vmul.f32 %v2595, %v2691
        %v2740 = vmul.f32 %v2596, %v2692
        %v2741 = vmul.f32 %v2597, %v2693
        %v2742 = vmul.f32 %v2598, %v2694
        %v2743 = vmul.f32 %v2599, %v2695
        %v2744 = vmul.f32 %v2600, %v2696
        %v2745 = vmul.f32 %v2601, %v2697
        %v2746 = vmul.f32 %v2602, %v2698
        %v2747 = vmul.f32 %v2603, %v2699
        %v2748 = vmul.f32 %v2604, %v2700
        %v2749 = vmul.f32 %v2605, %v2701
        %v2750 = vmul.f32 %v2606, %v2702
        %v2751 = vmul.f32 %v2607, %v2703
        %v2752 = vmul.f32 %v2608, %v2704
        %v2753 = vmul.f32 %v2609, %v2705
        %v2754 = vmul.f32 %v2610, %v2706
        %v2755 = vmul.f32 %v2611, %v2707
        %v2756 = vmul.f32 %v2612, %v2708
        %v2757 = vmul.f32 %v2613, %v2709
        %v2758 = vmul.f32 %v2614, %v2710
        %v2759 = vmul.f32 %v2615, %v2711
        %v2760 = vmul.f32 %v2616, %v2712
        %v2761 = vmul.f32 %v2617, %v2713
        %v2762 = vmul.f32 %v2618, %v2714
        %v2763 = vmul.f32 %v2619, %v2715
        %v2764 = vmul.f32 %v2620, %v2716
        %v2765 = vmul.f32 %v2621, %v2717
        %v2766 = vmul.f32 %v2622, %v2718
        %v2767 = vmul.f32 %v2623, %v2719
        %v2768 = vmul.f32 %v2624, %v2720
        %v2769 = vmul.f32 %v2625, %v2721
        %v2770 = vmul.f32 %v2626, %v2722
        %v2771 = vmul.f32 %v2627, %v2723
        %v2772 = vmul.f32 %v2628, %v2724
        %v2773 = vmul.f32 %v2629, %v2725
        %v2774 = vmul.f32 %v2630, %v2726
        %v2775 = vmul.f32 %v2631, %v2727
        %v2776 = vld [vmem:[#allocation4] sm:$0xff]
        %v2777 = vld [vmem:[#allocation4 + $0x8] sm:$0xff]
        %v2778 = vld [vmem:[#allocation4 + $0x10] sm:$0xff]
        %v2779 = vld [vmem:[#allocation4 + $0x18] sm:$0xff]
        %v2780 = vld [vmem:[#allocation4 + $0x20] sm:$0xff]
        %v2781 = vld [vmem:[#allocation4 + $0x28] sm:$0xff]
        %v2782 = vld [vmem:[#allocation4 + $0x30] sm:$0xff]
        %v2783 = vld [vmem:[#allocation4 + $0x38] sm:$0xff]
        %v2784 = vld [vmem:[#allocation4 + $0x40] sm:$0xff]
        %v2785 = vld [vmem:[#allocation4 + $0x48] sm:$0xff]
        %v2786 = vld [vmem:[#allocation4 + $0x50] sm:$0xff]
        %v2787 = vld [vmem:[#allocation4 + $0x58] sm:$0xff]
        %v2788 = vld [vmem:[#allocation4 + $0x60] sm:$0xff]
        %v2789 = vld [vmem:[#allocation4 + $0x68] sm:$0xff]
        %v2790 = vld [vmem:[#allocation4 + $0x70] sm:$0xff]
        %v2791 = vld [vmem:[#allocation4 + $0x78] sm:$0xff]
        %v2792 = vld [vmem:[#allocation4 + $0x80] sm:$0xff]
        %v2793 = vld [vmem:[#allocation4 + $0x88] sm:$0xff]
        %v2794 = vld [vmem:[#allocation4 + $0x90] sm:$0xff]
        %v2795 = vld [vmem:[#allocation4 + $0x98] sm:$0xff]
        %v2796 = vld [vmem:[#allocation4 + $0xa0] sm:$0xff]
        %v2797 = vld [vmem:[#allocation4 + $0xa8] sm:$0xff]
        %v2798 = vld [vmem:[#allocation4 + $0xb0] sm:$0xff]
        %v2799 = vld [vmem:[#allocation4 + $0xb8] sm:$0xff]
        %v2800 = vld [vmem:[#allocation4 + $0xc0] sm:$0xff]
        %v2801 = vld [vmem:[#allocation4 + $0xc8] sm:$0xff]
        %v2802 = vld [vmem:[#allocation4 + $0xd0] sm:$0xff]
        %v2803 = vld [vmem:[#allocation4 + $0xd8] sm:$0xff]
        %v2804 = vld [vmem:[#allocation4 + $0xe0] sm:$0xff]
        %v2805 = vld [vmem:[#allocation4 + $0xe8] sm:$0xff]
        %v2806 = vld [vmem:[#allocation4 + $0xf0] sm:$0xff]
        %v2807 = vld [vmem:[#allocation4 + $0xf8] sm:$0xff]
        %v2808 = vld [vmem:[#allocation4 + $0x100] sm:$0xff]
        %v2809 = vld [vmem:[#allocation4 + $0x108] sm:$0xff]
        %v2810 = vld [vmem:[#allocation4 + $0x110] sm:$0xff]
        %v2811 = vld [vmem:[#allocation4 + $0x118] sm:$0xff]
        %v2812 = vld [vmem:[#allocation4 + $0x120] sm:$0xff]
        %v2813 = vld [vmem:[#allocation4 + $0x128] sm:$0xff]
        %v2814 = vld [vmem:[#allocation4 + $0x130] sm:$0xff]
        %v2815 = vld [vmem:[#allocation4 + $0x138] sm:$0xff]
        %v2816 = vld [vmem:[#allocation4 + $0x140] sm:$0xff]
        %v2817 = vld [vmem:[#allocation4 + $0x148] sm:$0xff]
        %v2818 = vld [vmem:[#allocation4 + $0x150] sm:$0xff]
        %v2819 = vld [vmem:[#allocation4 + $0x158] sm:$0xff]
        %v2820 = vld [vmem:[#allocation4 + $0x160] sm:$0xff]
        %v2821 = vld [vmem:[#allocation4 + $0x168] sm:$0xff]
        %v2822 = vld [vmem:[#allocation4 + $0x170] sm:$0xff]
        %v2823 = vld [vmem:[#allocation4 + $0x178] sm:$0xff]
        %v2824 = vpack.c.bf16 %v2730, %v2728
        %v2825 = vpack.c.bf16 %v2731, %v2729
        %v2826 = vpack.c.bf16 %v2734, %v2732
        %v2827 = vpack.c.bf16 %v2735, %v2733
        %v2828 = vpack.c.bf16 %v2738, %v2736
        %v2829 = vpack.c.bf16 %v2739, %v2737
        %v2830 = vpack.c.bf16 %v2742, %v2740
        %v2831 = vpack.c.bf16 %v2743, %v2741
        %v2832 = vpack.c.bf16 %v2746, %v2744
        %v2833 = vpack.c.bf16 %v2747, %v2745
        %v2834 = vpack.c.bf16 %v2750, %v2748
        %v2835 = vpack.c.bf16 %v2751, %v2749
        %v2836 = vpack.c.bf16 %v2754, %v2752
        %v2837 = vpack.c.bf16 %v2755, %v2753
        %v2838 = vpack.c.bf16 %v2758, %v2756
        %v2839 = vpack.c.bf16 %v2759, %v2757
        %v2840 = vpack.c.bf16 %v2762, %v2760
        %v2841 = vpack.c.bf16 %v2763, %v2761
        %v2842 = vpack.c.bf16 %v2766, %v2764
        %v2843 = vpack.c.bf16 %v2767, %v2765
        %v2844 = vpack.c.bf16 %v2770, %v2768
        %v2845 = vpack.c.bf16 %v2771, %v2769
        %v2846 = vpack.c.bf16 %v2774, %v2772
        %v2847 = vpack.c.bf16 %v2775, %v2773
        %v2848 = vld [vmem:[%s574] sm:$0xff]
        %v2849 = vld [vmem:[%s574 + $0x8] sm:$0xff]
        %v2850 = vld [vmem:[%s574 + $0x10] sm:$0xff]
        %v2851 = vld [vmem:[%s574 + $0x18] sm:$0xff]
        %v2852 = vld [vmem:[%s574 + $0x20] sm:$0xff]
        %v2853 = vld [vmem:[%s574 + $0x28] sm:$0xff]
        %v2854 = vld [vmem:[%s574 + $0x30] sm:$0xff]
        %v2855 = vld [vmem:[%s574 + $0x38] sm:$0xff]
        %v2856 = vld [vmem:[%s574 + $0x40] sm:$0xff]
        %v2857 = vld [vmem:[%s574 + $0x48] sm:$0xff]
        %v2858 = vld [vmem:[%s574 + $0x50] sm:$0xff]
        %v2859 = vld [vmem:[%s574 + $0x58] sm:$0xff]
        %v2860 = vld [vmem:[%s574 + $0x60] sm:$0xff]
        %v2861 = vld [vmem:[%s574 + $0x68] sm:$0xff]
        %v2862 = vld [vmem:[%s574 + $0x70] sm:$0xff]
        %v2863 = vld [vmem:[%s574 + $0x78] sm:$0xff]
        %v2864 = vld [vmem:[%s574 + $0x80] sm:$0xff]
        %v2865 = vld [vmem:[%s574 + $0x88] sm:$0xff]
        %v2866 = vld [vmem:[%s574 + $0x90] sm:$0xff]
        %v2867 = vld [vmem:[%s574 + $0x98] sm:$0xff]
        %v2868 = vld [vmem:[%s574 + $0xa0] sm:$0xff]
        %v2869 = vld [vmem:[%s574 + $0xa8] sm:$0xff]
        %v2870 = vld [vmem:[%s574 + $0xb0] sm:$0xff]
        %v2871 = vld [vmem:[%s574 + $0xb8] sm:$0xff]
        %v2872 = vld [vmem:[%s574 + $0xc0] sm:$0xff]
        %v2873 = vld [vmem:[%s574 + $0xc8] sm:$0xff]
        %v2874 = vld [vmem:[%s574 + $0xd0] sm:$0xff]
        %v2875 = vld [vmem:[%s574 + $0xd8] sm:$0xff]
        %v2876 = vld [vmem:[%s574 + $0xe0] sm:$0xff]
        %v2877 = vld [vmem:[%s574 + $0xe8] sm:$0xff]
        %v2878 = vld [vmem:[%s574 + $0xf0] sm:$0xff]
        %v2879 = vld [vmem:[%s574 + $0xf8] sm:$0xff]
        %v2912 = vunpack.c.l.b16 %v2848
        %v2913 = vunpack.c.h.b16 %v2848
        %v2914 = vunpack.c.l.b16 %v2849
        %v2915 = vunpack.c.h.b16 %v2849
        %v2916 = vunpack.c.l.b16 %v2850
        %v2917 = vunpack.c.h.b16 %v2850
        %v2918 = vunpack.c.l.b16 %v2851
        %v2919 = vunpack.c.h.b16 %v2851
        %v2920 = vunpack.c.l.b16 %v2852
        %v2921 = vunpack.c.h.b16 %v2852
        %v2922 = vunpack.c.l.b16 %v2853
        %v2923 = vunpack.c.h.b16 %v2853
        %v2924 = vunpack.c.l.b16 %v2854
        %v2925 = vunpack.c.h.b16 %v2854
        %v2926 = vunpack.c.l.b16 %v2855
        %v2927 = vunpack.c.h.b16 %v2855
        %v2928 = vunpack.c.l.b16 %v2856
        %v2929 = vunpack.c.h.b16 %v2856
        %v2930 = vunpack.c.l.b16 %v2857
        %v2931 = vunpack.c.h.b16 %v2857
        %v2932 = vunpack.c.l.b16 %v2858
        %v2933 = vunpack.c.h.b16 %v2858
        %v2934 = vunpack.c.l.b16 %v2859
        %v2935 = vunpack.c.h.b16 %v2859
        %v2936 = vunpack.c.l.b16 %v2860
        %v2937 = vunpack.c.h.b16 %v2860
        %v2938 = vunpack.c.l.b16 %v2861
        %v2939 = vunpack.c.h.b16 %v2861
        %v2940 = vunpack.c.l.b16 %v2862
        %v2941 = vunpack.c.h.b16 %v2862
        %v2942 = vunpack.c.l.b16 %v2863
        %v2943 = vunpack.c.h.b16 %v2863
        %v2944 = vunpack.c.l.b16 %v2864
        %v2945 = vunpack.c.h.b16 %v2864
        %v2946 = vunpack.c.l.b16 %v2865
        %v2947 = vunpack.c.h.b16 %v2865
        %v2948 = vunpack.c.l.b16 %v2866
        %v2949 = vunpack.c.h.b16 %v2866
        %v2950 = vunpack.c.l.b16 %v2867
        %v2951 = vunpack.c.h.b16 %v2867
        %v2952 = vunpack.c.l.b16 %v2868
        %v2953 = vunpack.c.h.b16 %v2868
        %v2954 = vunpack.c.l.b16 %v2869
        %v2955 = vunpack.c.h.b16 %v2869
        %v2956 = vunpack.c.l.b16 %v2870
        %v2957 = vunpack.c.h.b16 %v2870
        %v2958 = vunpack.c.l.b16 %v2871
        %v2959 = vunpack.c.h.b16 %v2871
        %v2960 = vunpack.c.l.b16 %v2872
        %v2961 = vunpack.c.h.b16 %v2872
        %v2962 = vunpack.c.l.b16 %v2873
        %v2963 = vunpack.c.h.b16 %v2873
        %v2964 = vunpack.c.l.b16 %v2874
        %v2965 = vunpack.c.h.b16 %v2874
        %v2966 = vunpack.c.l.b16 %v2875
        %v2967 = vunpack.c.h.b16 %v2875
        %v2968 = vunpack.c.l.b16 %v2876
        %v2969 = vunpack.c.h.b16 %v2876
        %v2970 = vunpack.c.l.b16 %v2877
        %v2971 = vunpack.c.h.b16 %v2877
        %v2972 = vunpack.c.l.b16 %v2878
        %v2973 = vunpack.c.h.b16 %v2878
        %v2974 = vunpack.c.l.b16 %v2879
        %v2975 = vunpack.c.h.b16 %v2879
        %v2976 = vpack.c.b16 %v2914, %v2912
        %v2977 = vpack.c.b16 %v2915, %v2913
        %v2978 = vpack.c.b16 %v2918, %v2916
        %v2979 = vpack.c.b16 %v2919, %v2917
        %v2980 = vpack.c.b16 %v2922, %v2920
        %v2981 = vpack.c.b16 %v2923, %v2921
        %v2982 = vpack.c.b16 %v2926, %v2924
        %v2983 = vpack.c.b16 %v2927, %v2925
        %v2984 = vpack.c.b16 %v2930, %v2928
        %v2985 = vpack.c.b16 %v2931, %v2929
        %v2986 = vpack.c.b16 %v2934, %v2932
        %v2987 = vpack.c.b16 %v2935, %v2933
        %v2988 = vpack.c.b16 %v2938, %v2936
        %v2989 = vpack.c.b16 %v2939, %v2937
        %v2990 = vpack.c.b16 %v2942, %v2940
        %v2991 = vpack.c.b16 %v2943, %v2941
        %v2992 = vpack.c.b16 %v2946, %v2944
        %v2993 = vpack.c.b16 %v2947, %v2945
        %v2994 = vpack.c.b16 %v2950, %v2948
        %v2995 = vpack.c.b16 %v2951, %v2949
        %v2996 = vpack.c.b16 %v2954, %v2952
        %v2997 = vpack.c.b16 %v2955, %v2953
        %v2998 = vpack.c.b16 %v2958, %v2956
        %v2999 = vpack.c.b16 %v2959, %v2957
        %v3000 = vpack.c.b16 %v2962, %v2960
        %v3001 = vpack.c.b16 %v2963, %v2961
        %v3002 = vpack.c.b16 %v2966, %v2964
        %v3003 = vpack.c.b16 %v2967, %v2965
        %v3004 = vpack.c.b16 %v2970, %v2968
        %v3005 = vpack.c.b16 %v2971, %v2969
        %v3006 = vpack.c.b16 %v2974, %v2972
        %v3007 = vpack.c.b16 %v2975, %v2973
        %3040 = vmatpush.bf16.msra.mxu0 %v2990
        %3041 = vmatpush.bf16.msra.mxu0 %v2988
        %3042 = vmatpush.bf16.msra.mxu0 %v2986
        %3043 = vmatpush.bf16.msra.mxu0 %v2984
        %3044 = vmatpush.bf16.msra.mxu0 %v2982
        %3045 = vmatpush.bf16.msra.mxu0 %v2980
        %3046 = vmatpush.bf16.msra.mxu0 %v2978
        %3047 = vmatpush.bf16.msra.mxu0 %v2976
        %3048 = vmatmul.bf16.gmra.mxu0 %v2824
        %v3049 = vpop.f32.mrf.mxu0
        %v3050 = vadd.f32 0.0, %v3049
        %v3051 = vpop.f32.mrf.mxu0
        %v3052 = vadd.f32 0.0, %v3051
        %3053 = vmatmul.bf16.gmra.mxu0 %v2826
        %v3054 = vpop.f32.mrf.mxu0
        %v3055 = vadd.f32 0.0, %v3054
        %v3056 = vpop.f32.mrf.mxu0
        %v3057 = vadd.f32 0.0, %v3056
        %3058 = vmatmul.bf16.gmra.mxu0 %v2828
        %v3059 = vpop.f32.mrf.mxu0
        %v3060 = vadd.f32 0.0, %v3059
        %v3061 = vpop.f32.mrf.mxu0
        %v3062 = vadd.f32 0.0, %v3061
        %3063 = vmatmul.bf16.gmra.mxu0 %v2830
        %v3064 = vpop.f32.mrf.mxu0
        %v3065 = vadd.f32 0.0, %v3064
        %v3066 = vpop.f32.mrf.mxu0
        %v3067 = vadd.f32 0.0, %v3066
        %3068 = vmatmul.bf16.gmra.mxu0 %v2832
        %v3069 = vpop.f32.mrf.mxu0
        %v3070 = vadd.f32 0.0, %v3069
        %v3071 = vpop.f32.mrf.mxu0
        %v3072 = vadd.f32 0.0, %v3071
        %3073 = vmatmul.bf16.gmra.mxu0 %v2834
        %v3074 = vpop.f32.mrf.mxu0
        %v3075 = vadd.f32 0.0, %v3074
        %v3076 = vpop.f32.mrf.mxu0
        %v3077 = vadd.f32 0.0, %v3076
        %3078 = vmatmul.bf16.gmra.mxu0 %v2836
        %v3079 = vpop.f32.mrf.mxu0
        %v3080 = vadd.f32 0.0, %v3079
        %v3081 = vpop.f32.mrf.mxu0
        %v3082 = vadd.f32 0.0, %v3081
        %3083 = vmatmul.bf16.gmra.mxu0 %v2838
        %v3084 = vpop.f32.mrf.mxu0
        %v3085 = vadd.f32 0.0, %v3084
        %v3086 = vpop.f32.mrf.mxu0
        %v3087 = vadd.f32 0.0, %v3086
        %3088 = vmatmul.bf16.gmra.mxu0 %v2840
        %v3089 = vpop.f32.mrf.mxu0
        %v3090 = vadd.f32 0.0, %v3089
        %v3091 = vpop.f32.mrf.mxu0
        %v3092 = vadd.f32 0.0, %v3091
        %3093 = vmatmul.bf16.gmra.mxu0 %v2842
        %v3094 = vpop.f32.mrf.mxu0
        %v3095 = vadd.f32 0.0, %v3094
        %v3096 = vpop.f32.mrf.mxu0
        %v3097 = vadd.f32 0.0, %v3096
        %3098 = vmatmul.bf16.gmra.mxu0 %v2844
        %v3099 = vpop.f32.mrf.mxu0
        %v3100 = vadd.f32 0.0, %v3099
        %v3101 = vpop.f32.mrf.mxu0
        %v3102 = vadd.f32 0.0, %v3101
        %3103 = vmatmul.bf16.gmra.mxu0 %v2846
        %v3104 = vpop.f32.mrf.mxu0
        %v3105 = vadd.f32 0.0, %v3104
        %v3106 = vpop.f32.mrf.mxu0
        %v3107 = vadd.f32 0.0, %v3106
        %3108 = vdwg.mxu0
        %3109 = vmatpush.bf16.msra.mxu0 %v3006
        %3110 = vmatpush.bf16.msra.mxu0 %v3004
        %3111 = vmatpush.bf16.msra.mxu0 %v3002
        %3112 = vmatpush.bf16.msra.mxu0 %v3000
        %3113 = vmatpush.bf16.msra.mxu0 %v2998
        %3114 = vmatpush.bf16.msra.mxu0 %v2996
        %3115 = vmatpush.bf16.msra.mxu0 %v2994
        %3116 = vmatpush.bf16.msra.mxu0 %v2992
        %3117 = vmatmul.bf16.gmra.mxu0 %v2825
        %v3118 = vpop.f32.mrf.mxu0
        %v3119 = vadd.f32 %v3050, %v3118
        %v3120 = vpop.f32.mrf.mxu0
        %v3121 = vadd.f32 %v3052, %v3120
        %3122 = vmatmul.bf16.gmra.mxu0 %v2827
        %v3123 = vpop.f32.mrf.mxu0
        %v3124 = vadd.f32 %v3055, %v3123
        %v3125 = vpop.f32.mrf.mxu0
        %v3126 = vadd.f32 %v3057, %v3125
        %3127 = vmatmul.bf16.gmra.mxu0 %v2829
        %v3128 = vpop.f32.mrf.mxu0
        %v3129 = vadd.f32 %v3060, %v3128
        %v3130 = vpop.f32.mrf.mxu0
        %v3131 = vadd.f32 %v3062, %v3130
        %3132 = vmatmul.bf16.gmra.mxu0 %v2831
        %v3133 = vpop.f32.mrf.mxu0
        %v3134 = vadd.f32 %v3065, %v3133
        %v3135 = vpop.f32.mrf.mxu0
        %v3136 = vadd.f32 %v3067, %v3135
        %3137 = vmatmul.bf16.gmra.mxu0 %v2833
        %v3138 = vpop.f32.mrf.mxu0
        %v3139 = vadd.f32 %v3070, %v3138
        %v3140 = vpop.f32.mrf.mxu0
        %v3141 = vadd.f32 %v3072, %v3140
        %3142 = vmatmul.bf16.gmra.mxu0 %v2835
        %v3143 = vpop.f32.mrf.mxu0
        %v3144 = vadd.f32 %v3075, %v3143
        %v3145 = vpop.f32.mrf.mxu0
        %v3146 = vadd.f32 %v3077, %v3145
        %3147 = vmatmul.bf16.gmra.mxu0 %v2837
        %v3148 = vpop.f32.mrf.mxu0
        %v3149 = vadd.f32 %v3080, %v3148
        %v3150 = vpop.f32.mrf.mxu0
        %v3151 = vadd.f32 %v3082, %v3150
        %3152 = vmatmul.bf16.gmra.mxu0 %v2839
        %v3153 = vpop.f32.mrf.mxu0
        %v3154 = vadd.f32 %v3085, %v3153
        %v3155 = vpop.f32.mrf.mxu0
        %v3156 = vadd.f32 %v3087, %v3155
        %3157 = vmatmul.bf16.gmra.mxu0 %v2841
        %v3158 = vpop.f32.mrf.mxu0
        %v3159 = vadd.f32 %v3090, %v3158
        %v3160 = vpop.f32.mrf.mxu0
        %v3161 = vadd.f32 %v3092, %v3160
        %3162 = vmatmul.bf16.gmra.mxu0 %v2843
        %v3163 = vpop.f32.mrf.mxu0
        %v3164 = vadd.f32 %v3095, %v3163
        %v3165 = vpop.f32.mrf.mxu0
        %v3166 = vadd.f32 %v3097, %v3165
        %3167 = vmatmul.bf16.gmra.mxu0 %v2845
        %v3168 = vpop.f32.mrf.mxu0
        %v3169 = vadd.f32 %v3100, %v3168
        %v3170 = vpop.f32.mrf.mxu0
        %v3171 = vadd.f32 %v3102, %v3170
        %3172 = vmatmul.bf16.gmra.mxu0 %v2847
        %v3173 = vpop.f32.mrf.mxu0
        %v3174 = vadd.f32 %v3105, %v3173
        %v3175 = vpop.f32.mrf.mxu0
        %v3176 = vadd.f32 %v3107, %v3175
        %3177 = vdwg.mxu0
        %3178 = vmatpush.bf16.msra.mxu0 %v2991
        %3179 = vmatpush.bf16.msra.mxu0 %v2989
        %3180 = vmatpush.bf16.msra.mxu0 %v2987
        %3181 = vmatpush.bf16.msra.mxu0 %v2985
        %3182 = vmatpush.bf16.msra.mxu0 %v2983
        %3183 = vmatpush.bf16.msra.mxu0 %v2981
        %3184 = vmatpush.bf16.msra.mxu0 %v2979
        %3185 = vmatpush.bf16.msra.mxu0 %v2977
        %3186 = vmatmul.bf16.gmra.mxu0 %v2824
        %v3187 = vpop.f32.mrf.mxu0
        %v3188 = vadd.f32 0.0, %v3187
        %v3189 = vpop.f32.mrf.mxu0
        %v3190 = vadd.f32 0.0, %v3189
        %3191 = vmatmul.bf16.gmra.mxu0 %v2826
        %v3192 = vpop.f32.mrf.mxu0
        %v3193 = vadd.f32 0.0, %v3192
        %v3194 = vpop.f32.mrf.mxu0
        %v3195 = vadd.f32 0.0, %v3194
        %3196 = vmatmul.bf16.gmra.mxu0 %v2828
        %v3197 = vpop.f32.mrf.mxu0
        %v3198 = vadd.f32 0.0, %v3197
        %v3199 = vpop.f32.mrf.mxu0
        %v3200 = vadd.f32 0.0, %v3199
        %3201 = vmatmul.bf16.gmra.mxu0 %v2830
        %v3202 = vpop.f32.mrf.mxu0
        %v3203 = vadd.f32 0.0, %v3202
        %v3204 = vpop.f32.mrf.mxu0
        %v3205 = vadd.f32 0.0, %v3204
        %3206 = vmatmul.bf16.gmra.mxu0 %v2832
        %v3207 = vpop.f32.mrf.mxu0
        %v3208 = vadd.f32 0.0, %v3207
        %v3209 = vpop.f32.mrf.mxu0
        %v3210 = vadd.f32 0.0, %v3209
        %3211 = vmatmul.bf16.gmra.mxu0 %v2834
        %v3212 = vpop.f32.mrf.mxu0
        %v3213 = vadd.f32 0.0, %v3212
        %v3214 = vpop.f32.mrf.mxu0
        %v3215 = vadd.f32 0.0, %v3214
        %3216 = vmatmul.bf16.gmra.mxu0 %v2836
        %v3217 = vpop.f32.mrf.mxu0
        %v3218 = vadd.f32 0.0, %v3217
        %v3219 = vpop.f32.mrf.mxu0
        %v3220 = vadd.f32 0.0, %v3219
        %3221 = vmatmul.bf16.gmra.mxu0 %v2838
        %v3222 = vpop.f32.mrf.mxu0
        %v3223 = vadd.f32 0.0, %v3222
        %v3224 = vpop.f32.mrf.mxu0
        %v3225 = vadd.f32 0.0, %v3224
        %3226 = vmatmul.bf16.gmra.mxu0 %v2840
        %v3227 = vpop.f32.mrf.mxu0
        %v3228 = vadd.f32 0.0, %v3227
        %v3229 = vpop.f32.mrf.mxu0
        %v3230 = vadd.f32 0.0, %v3229
        %3231 = vmatmul.bf16.gmra.mxu0 %v2842
        %v3232 = vpop.f32.mrf.mxu0
        %v3233 = vadd.f32 0.0, %v3232
        %v3234 = vpop.f32.mrf.mxu0
        %v3235 = vadd.f32 0.0, %v3234
        %3236 = vmatmul.bf16.gmra.mxu0 %v2844
        %v3237 = vpop.f32.mrf.mxu0
        %v3238 = vadd.f32 0.0, %v3237
        %v3239 = vpop.f32.mrf.mxu0
        %v3240 = vadd.f32 0.0, %v3239
        %3241 = vmatmul.bf16.gmra.mxu0 %v2846
        %v3242 = vpop.f32.mrf.mxu0
        %v3243 = vadd.f32 0.0, %v3242
        %v3244 = vpop.f32.mrf.mxu0
        %v3245 = vadd.f32 0.0, %v3244
        %3246 = vdwg.mxu0
        %3247 = vmatpush.bf16.msra.mxu0 %v3007
        %3248 = vmatpush.bf16.msra.mxu0 %v3005
        %3249 = vmatpush.bf16.msra.mxu0 %v3003
        %3250 = vmatpush.bf16.msra.mxu0 %v3001
        %3251 = vmatpush.bf16.msra.mxu0 %v2999
        %3252 = vmatpush.bf16.msra.mxu0 %v2997
        %3253 = vmatpush.bf16.msra.mxu0 %v2995
        %3254 = vmatpush.bf16.msra.mxu0 %v2993
        %3255 = vmatmul.bf16.gmra.mxu0 %v2825
        %v3256 = vpop.f32.mrf.mxu0
        %v3257 = vadd.f32 %v3188, %v3256
        %v3258 = vpop.f32.mrf.mxu0
        %v3259 = vadd.f32 %v3190, %v3258
        %3260 = vmatmul.bf16.gmra.mxu0 %v2827
        %v3261 = vpop.f32.mrf.mxu0
        %v3262 = vadd.f32 %v3193, %v3261
        %v3263 = vpop.f32.mrf.mxu0
        %v3264 = vadd.f32 %v3195, %v3263
        %3265 = vmatmul.bf16.gmra.mxu0 %v2829
        %v3266 = vpop.f32.mrf.mxu0
        %v3267 = vadd.f32 %v3198, %v3266
        %v3268 = vpop.f32.mrf.mxu0
        %v3269 = vadd.f32 %v3200, %v3268
        %3270 = vmatmul.bf16.gmra.mxu0 %v2831
        %v3271 = vpop.f32.mrf.mxu0
        %v3272 = vadd.f32 %v3203, %v3271
        %v3273 = vpop.f32.mrf.mxu0
        %v3274 = vadd.f32 %v3205, %v3273
        %3275 = vmatmul.bf16.gmra.mxu0 %v2833
        %v3276 = vpop.f32.mrf.mxu0
        %v3277 = vadd.f32 %v3208, %v3276
        %v3278 = vpop.f32.mrf.mxu0
        %v3279 = vadd.f32 %v3210, %v3278
        %3280 = vmatmul.bf16.gmra.mxu0 %v2835
        %v3281 = vpop.f32.mrf.mxu0
        %v3282 = vadd.f32 %v3213, %v3281
        %v3283 = vpop.f32.mrf.mxu0
        %v3284 = vadd.f32 %v3215, %v3283
        %3285 = vmatmul.bf16.gmra.mxu0 %v2837
        %v3286 = vpop.f32.mrf.mxu0
        %v3287 = vadd.f32 %v3218, %v3286
        %v3288 = vpop.f32.mrf.mxu0
        %v3289 = vadd.f32 %v3220, %v3288
        %3290 = vmatmul.bf16.gmra.mxu0 %v2839
        %v3291 = vpop.f32.mrf.mxu0
        %v3292 = vadd.f32 %v3223, %v3291
        %v3293 = vpop.f32.mrf.mxu0
        %v3294 = vadd.f32 %v3225, %v3293
        %3295 = vmatmul.bf16.gmra.mxu0 %v2841
        %v3296 = vpop.f32.mrf.mxu0
        %v3297 = vadd.f32 %v3228, %v3296
        %v3298 = vpop.f32.mrf.mxu0
        %v3299 = vadd.f32 %v3230, %v3298
        %3300 = vmatmul.bf16.gmra.mxu0 %v2843
        %v3301 = vpop.f32.mrf.mxu0
        %v3302 = vadd.f32 %v3233, %v3301
        %v3303 = vpop.f32.mrf.mxu0
        %v3304 = vadd.f32 %v3235, %v3303
        %3305 = vmatmul.bf16.gmra.mxu0 %v2845
        %v3306 = vpop.f32.mrf.mxu0
        %v3307 = vadd.f32 %v3238, %v3306
        %v3308 = vpop.f32.mrf.mxu0
        %v3309 = vadd.f32 %v3240, %v3308
        %3310 = vmatmul.bf16.gmra.mxu0 %v2847
        %v3311 = vpop.f32.mrf.mxu0
        %v3312 = vadd.f32 %v3243, %v3311
        %v3313 = vpop.f32.mrf.mxu0
        %v3314 = vadd.f32 %v3245, %v3313
        %3315 = vdwg.mxu0
        %v3316 = vadd.f32 %v2776, %v3119
        %v3317 = vadd.f32 %v2777, %v3257
        %v3318 = vadd.f32 %v2778, %v3121
        %v3319 = vadd.f32 %v2779, %v3259
        %v3320 = vadd.f32 %v2780, %v3124
        %v3321 = vadd.f32 %v2781, %v3262
        %v3322 = vadd.f32 %v2782, %v3126
        %v3323 = vadd.f32 %v2783, %v3264
        %v3324 = vadd.f32 %v2784, %v3129
        %v3325 = vadd.f32 %v2785, %v3267
        %v3326 = vadd.f32 %v2786, %v3131
        %v3327 = vadd.f32 %v2787, %v3269
        %v3328 = vadd.f32 %v2788, %v3134
        %v3329 = vadd.f32 %v2789, %v3272
        %v3330 = vadd.f32 %v2790, %v3136
        %v3331 = vadd.f32 %v2791, %v3274
        %v3332 = vadd.f32 %v2792, %v3139
        %v3333 = vadd.f32 %v2793, %v3277
        %v3334 = vadd.f32 %v2794, %v3141
        %v3335 = vadd.f32 %v2795, %v3279
        %v3336 = vadd.f32 %v2796, %v3144
        %v3337 = vadd.f32 %v2797, %v3282
        %v3338 = vadd.f32 %v2798, %v3146
        %v3339 = vadd.f32 %v2799, %v3284
        %v3340 = vadd.f32 %v2800, %v3149
        %v3341 = vadd.f32 %v2801, %v3287
        %v3342 = vadd.f32 %v2802, %v3151
        %v3343 = vadd.f32 %v2803, %v3289
        %v3344 = vadd.f32 %v2804, %v3154
        %v3345 = vadd.f32 %v2805, %v3292
        %v3346 = vadd.f32 %v2806, %v3156
        %v3347 = vadd.f32 %v2807, %v3294
        %v3348 = vadd.f32 %v2808, %v3159
        %v3349 = vadd.f32 %v2809, %v3297
        %v3350 = vadd.f32 %v2810, %v3161
        %v3351 = vadd.f32 %v2811, %v3299
        %v3352 = vadd.f32 %v2812, %v3164
        %v3353 = vadd.f32 %v2813, %v3302
        %v3354 = vadd.f32 %v2814, %v3166
        %v3355 = vadd.f32 %v2815, %v3304
        %v3356 = vadd.f32 %v2816, %v3169
        %v3357 = vadd.f32 %v2817, %v3307
        %v3358 = vadd.f32 %v2818, %v3171
        %v3359 = vadd.f32 %v2819, %v3309
        %v3360 = vadd.f32 %v2820, %v3174
        %v3361 = vadd.f32 %v2821, %v3312
        %v3362 = vadd.f32 %v2822, %v3176
        %v3363 = vadd.f32 %v2823, %v3314
        %3364 = vst [vmem:[#allocation4] sm:$0xff] %v3316
        %3365 = vst [vmem:[#allocation4 + $0x8] sm:$0xff] %v3317
        %3366 = vst [vmem:[#allocation4 + $0x10] sm:$0xff] %v3318
        %3367 = vst [vmem:[#allocation4 + $0x18] sm:$0xff] %v3319
        %3368 = vst [vmem:[#allocation4 + $0x20] sm:$0xff] %v3320
        %3369 = vst [vmem:[#allocation4 + $0x28] sm:$0xff] %v3321
        %3370 = vst [vmem:[#allocation4 + $0x30] sm:$0xff] %v3322
        %3371 = vst [vmem:[#allocation4 + $0x38] sm:$0xff] %v3323
        %3372 = vst [vmem:[#allocation4 + $0x40] sm:$0xff] %v3324
        %3373 = vst [vmem:[#allocation4 + $0x48] sm:$0xff] %v3325
        %3374 = vst [vmem:[#allocation4 + $0x50] sm:$0xff] %v3326
        %3375 = vst [vmem:[#allocation4 + $0x58] sm:$0xff] %v3327
        %3376 = vst [vmem:[#allocation4 + $0x60] sm:$0xff] %v3328
        %3377 = vst [vmem:[#allocation4 + $0x68] sm:$0xff] %v3329
        %3378 = vst [vmem:[#allocation4 + $0x70] sm:$0xff] %v3330
        %3379 = vst [vmem:[#allocation4 + $0x78] sm:$0xff] %v3331
        %3380 = vst [vmem:[#allocation4 + $0x80] sm:$0xff] %v3332
        %3381 = vst [vmem:[#allocation4 + $0x88] sm:$0xff] %v3333
        %3382 = vst [vmem:[#allocation4 + $0x90] sm:$0xff] %v3334
        %3383 = vst [vmem:[#allocation4 + $0x98] sm:$0xff] %v3335
        %3384 = vst [vmem:[#allocation4 + $0xa0] sm:$0xff] %v3336
        %3385 = vst [vmem:[#allocation4 + $0xa8] sm:$0xff] %v3337
        %3386 = vst [vmem:[#allocation4 + $0xb0] sm:$0xff] %v3338
        %3387 = vst [vmem:[#allocation4 + $0xb8] sm:$0xff] %v3339
        %3388 = vst [vmem:[#allocation4 + $0xc0] sm:$0xff] %v3340
        %3389 = vst [vmem:[#allocation4 + $0xc8] sm:$0xff] %v3341
        %3390 = vst [vmem:[#allocation4 + $0xd0] sm:$0xff] %v3342
        %3391 = vst [vmem:[#allocation4 + $0xd8] sm:$0xff] %v3343
        %3392 = vst [vmem:[#allocation4 + $0xe0] sm:$0xff] %v3344
        %3393 = vst [vmem:[#allocation4 + $0xe8] sm:$0xff] %v3345
        %3394 = vst [vmem:[#allocation4 + $0xf0] sm:$0xff] %v3346
        %3395 = vst [vmem:[#allocation4 + $0xf8] sm:$0xff] %v3347
        %3396 = vst [vmem:[#allocation4 + $0x100] sm:$0xff] %v3348
        %3397 = vst [vmem:[#allocation4 + $0x108] sm:$0xff] %v3349
        %3398 = vst [vmem:[#allocation4 + $0x110] sm:$0xff] %v3350
        %3399 = vst [vmem:[#allocation4 + $0x118] sm:$0xff] %v3351
        %3400 = vst [vmem:[#allocation4 + $0x120] sm:$0xff] %v3352
        %3401 = vst [vmem:[#allocation4 + $0x128] sm:$0xff] %v3353
        %3402 = vst [vmem:[#allocation4 + $0x130] sm:$0xff] %v3354
        %3403 = vst [vmem:[#allocation4 + $0x138] sm:$0xff] %v3355
        %3404 = vst [vmem:[#allocation4 + $0x140] sm:$0xff] %v3356
        %3405 = vst [vmem:[#allocation4 + $0x148] sm:$0xff] %v3357
        %3406 = vst [vmem:[#allocation4 + $0x150] sm:$0xff] %v3358
        %3407 = vst [vmem:[#allocation4 + $0x158] sm:$0xff] %v3359
        %3408 = vst [vmem:[#allocation4 + $0x160] sm:$0xff] %v3360
        %3409 = vst [vmem:[#allocation4 + $0x168] sm:$0xff] %v3361
        %3410 = vst [vmem:[#allocation4 + $0x170] sm:$0xff] %v3362
        %3411 = vst [vmem:[#allocation4 + $0x178] sm:$0xff] %v3363
        %p3412 = scmp.eq.s32.totalorder %s43, 3
        // Predicated region
        $region101: #{tpu_custom_call.1} parent=67 // pred_check
          %p3413 = pneg %p3412
        $region102: #{tpu_custom_call.1} parent=67 // pred_check_branch
          %3415 = sbr.rel (%p3413) target = $region104
        $region103: #{tpu_custom_call.1} parent=67 // pred_region
          %v3416 = vld [vmem:[#allocation4] sm:$0xff]
          %v3417 = vld [vmem:[#allocation4 + $0x8] sm:$0xff]
          %v3418 = vld [vmem:[#allocation4 + $0x10] sm:$0xff]
          %v3419 = vld [vmem:[#allocation4 + $0x18] sm:$0xff]
          %v3420 = vld [vmem:[#allocation4 + $0x20] sm:$0xff]
          %v3421 = vld [vmem:[#allocation4 + $0x28] sm:$0xff]
          %v3422 = vld [vmem:[#allocation4 + $0x30] sm:$0xff]
          %v3423 = vld [vmem:[#allocation4 + $0x38] sm:$0xff]
          %v3424 = vld [vmem:[#allocation4 + $0x40] sm:$0xff]
          %v3425 = vld [vmem:[#allocation4 + $0x48] sm:$0xff]
          %v3426 = vld [vmem:[#allocation4 + $0x50] sm:$0xff]
          %v3427 = vld [vmem:[#allocation4 + $0x58] sm:$0xff]
          %v3428 = vld [vmem:[#allocation4 + $0x60] sm:$0xff]
          %v3429 = vld [vmem:[#allocation4 + $0x68] sm:$0xff]
          %v3430 = vld [vmem:[#allocation4 + $0x70] sm:$0xff]
          %v3431 = vld [vmem:[#allocation4 + $0x78] sm:$0xff]
          %v3432 = vld [vmem:[#allocation4 + $0x80] sm:$0xff]
          %v3433 = vld [vmem:[#allocation4 + $0x88] sm:$0xff]
          %v3434 = vld [vmem:[#allocation4 + $0x90] sm:$0xff]
          %v3435 = vld [vmem:[#allocation4 + $0x98] sm:$0xff]
          %v3436 = vld [vmem:[#allocation4 + $0xa0] sm:$0xff]
          %v3437 = vld [vmem:[#allocation4 + $0xa8] sm:$0xff]
          %v3438 = vld [vmem:[#allocation4 + $0xb0] sm:$0xff]
          %v3439 = vld [vmem:[#allocation4 + $0xb8] sm:$0xff]
          %v3440 = vld [vmem:[#allocation4 + $0xc0] sm:$0xff]
          %v3441 = vld [vmem:[#allocation4 + $0xc8] sm:$0xff]
          %v3442 = vld [vmem:[#allocation4 + $0xd0] sm:$0xff]
          %v3443 = vld [vmem:[#allocation4 + $0xd8] sm:$0xff]
          %v3444 = vld [vmem:[#allocation4 + $0xe0] sm:$0xff]
          %v3445 = vld [vmem:[#allocation4 + $0xe8] sm:$0xff]
          %v3446 = vld [vmem:[#allocation4 + $0xf0] sm:$0xff]
          %v3447 = vld [vmem:[#allocation4 + $0xf8] sm:$0xff]
          %v3448 = vld [vmem:[#allocation4 + $0x100] sm:$0xff]
          %v3449 = vld [vmem:[#allocation4 + $0x108] sm:$0xff]
          %v3450 = vld [vmem:[#allocation4 + $0x110] sm:$0xff]
          %v3451 = vld [vmem:[#allocation4 + $0x118] sm:$0xff]
          %v3452 = vld [vmem:[#allocation4 + $0x120] sm:$0xff]
          %v3453 = vld [vmem:[#allocation4 + $0x128] sm:$0xff]
          %v3454 = vld [vmem:[#allocation4 + $0x130] sm:$0xff]
          %v3455 = vld [vmem:[#allocation4 + $0x138] sm:$0xff]
          %v3456 = vld [vmem:[#allocation4 + $0x140] sm:$0xff]
          %v3457 = vld [vmem:[#allocation4 + $0x148] sm:$0xff]
          %v3458 = vld [vmem:[#allocation4 + $0x150] sm:$0xff]
          %v3459 = vld [vmem:[#allocation4 + $0x158] sm:$0xff]
          %v3460 = vld [vmem:[#allocation4 + $0x160] sm:$0xff]
          %v3461 = vld [vmem:[#allocation4 + $0x168] sm:$0xff]
          %v3462 = vld [vmem:[#allocation4 + $0x170] sm:$0xff]
          %v3463 = vld [vmem:[#allocation4 + $0x178] sm:$0xff]
          %v3464 = vld [vmem:[%s7] sm:$0x3]
          %v3466 = vperm.slane %v3464, 0
          %v3467 = vperm.slane %v3464, 1
          %v3470 = vadd.f32 %v3416, %v3466
          %v3471 = vadd.f32 %v3417, %v3467
          %v3472 = vadd.f32 %v3418, %v3466
          %v3473 = vadd.f32 %v3419, %v3467
          %v3474 = vadd.f32 %v3420, %v3466
          %v3475 = vadd.f32 %v3421, %v3467
          %v3476 = vadd.f32 %v3422, %v3466
          %v3477 = vadd.f32 %v3423, %v3467
          %v3478 = vadd.f32 %v3424, %v3466
          %v3479 = vadd.f32 %v3425, %v3467
          %v3480 = vadd.f32 %v3426, %v3466
          %v3481 = vadd.f32 %v3427, %v3467
          %v3482 = vadd.f32 %v3428, %v3466
          %v3483 = vadd.f32 %v3429, %v3467
          %v3484 = vadd.f32 %v3430, %v3466
          %v3485 = vadd.f32 %v3431, %v3467
          %v3486 = vadd.f32 %v3432, %v3466
          %v3487 = vadd.f32 %v3433, %v3467
          %v3488 = vadd.f32 %v3434, %v3466
          %v3489 = vadd.f32 %v3435, %v3467
          %v3490 = vadd.f32 %v3436, %v3466
          %v3491 = vadd.f32 %v3437, %v3467
          %v3492 = vadd.f32 %v3438, %v3466
          %v3493 = vadd.f32 %v3439, %v3467
          %v3494 = vadd.f32 %v3440, %v3466
          %v3495 = vadd.f32 %v3441, %v3467
          %v3496 = vadd.f32 %v3442, %v3466
          %v3497 = vadd.f32 %v3443, %v3467
          %v3498 = vadd.f32 %v3444, %v3466
          %v3499 = vadd.f32 %v3445, %v3467
          %v3500 = vadd.f32 %v3446, %v3466
          %v3501 = vadd.f32 %v3447, %v3467
          %v3502 = vadd.f32 %v3448, %v3466
          %v3503 = vadd.f32 %v3449, %v3467
          %v3504 = vadd.f32 %v3450, %v3466
          %v3505 = vadd.f32 %v3451, %v3467
          %v3506 = vadd.f32 %v3452, %v3466
          %v3507 = vadd.f32 %v3453, %v3467
          %v3508 = vadd.f32 %v3454, %v3466
          %v3509 = vadd.f32 %v3455, %v3467
          %v3510 = vadd.f32 %v3456, %v3466
          %v3511 = vadd.f32 %v3457, %v3467
          %v3512 = vadd.f32 %v3458, %v3466
          %v3513 = vadd.f32 %v3459, %v3467
          %v3514 = vadd.f32 %v3460, %v3466
          %v3515 = vadd.f32 %v3461, %v3467
          %v3516 = vadd.f32 %v3462, %v3466
          %v3517 = vadd.f32 %v3463, %v3467
          %v3518 = vld [vmem:[#allocation2] sm:$0xff]
          %v3519 = vld [vmem:[#allocation2 + $0x8] sm:$0xff]
          %v3520 = vld [vmem:[#allocation2 + $0x10] sm:$0xff]
          %v3521 = vld [vmem:[#allocation2 + $0x18] sm:$0xff]
          %v3522 = vld [vmem:[#allocation2 + $0x20] sm:$0xff]
          %v3523 = vld [vmem:[#allocation2 + $0x28] sm:$0xff]
          %v3524 = vld [vmem:[#allocation2 + $0x30] sm:$0xff]
          %v3525 = vld [vmem:[#allocation2 + $0x38] sm:$0xff]
          %v3526 = vld [vmem:[#allocation2 + $0x40] sm:$0xff]
          %v3527 = vld [vmem:[#allocation2 + $0x48] sm:$0xff]
          %v3528 = vld [vmem:[#allocation2 + $0x50] sm:$0xff]
          %v3529 = vld [vmem:[#allocation2 + $0x58] sm:$0xff]
          %v3530 = vld [vmem:[#allocation2 + $0x60] sm:$0xff]
          %v3531 = vld [vmem:[#allocation2 + $0x68] sm:$0xff]
          %v3532 = vld [vmem:[#allocation2 + $0x70] sm:$0xff]
          %v3533 = vld [vmem:[#allocation2 + $0x78] sm:$0xff]
          %v3534 = vld [vmem:[#allocation2 + $0x80] sm:$0xff]
          %v3535 = vld [vmem:[#allocation2 + $0x88] sm:$0xff]
          %v3536 = vld [vmem:[#allocation2 + $0x90] sm:$0xff]
          %v3537 = vld [vmem:[#allocation2 + $0x98] sm:$0xff]
          %v3538 = vld [vmem:[#allocation2 + $0xa0] sm:$0xff]
          %v3539 = vld [vmem:[#allocation2 + $0xa8] sm:$0xff]
          %v3540 = vld [vmem:[#allocation2 + $0xb0] sm:$0xff]
          %v3541 = vld [vmem:[#allocation2 + $0xb8] sm:$0xff]
          %v3542 = vld [vmem:[#allocation2 + $0xc0] sm:$0xff]
          %v3543 = vld [vmem:[#allocation2 + $0xc8] sm:$0xff]
          %v3544 = vld [vmem:[#allocation2 + $0xd0] sm:$0xff]
          %v3545 = vld [vmem:[#allocation2 + $0xd8] sm:$0xff]
          %v3546 = vld [vmem:[#allocation2 + $0xe0] sm:$0xff]
          %v3547 = vld [vmem:[#allocation2 + $0xe8] sm:$0xff]
          %v3548 = vld [vmem:[#allocation2 + $0xf0] sm:$0xff]
          %v3549 = vld [vmem:[#allocation2 + $0xf8] sm:$0xff]
          %v3550 = vld [vmem:[#allocation2 + $0x100] sm:$0xff]
          %v3551 = vld [vmem:[#allocation2 + $0x108] sm:$0xff]
          %v3552 = vld [vmem:[#allocation2 + $0x110] sm:$0xff]
          %v3553 = vld [vmem:[#allocation2 + $0x118] sm:$0xff]
          %v3554 = vld [vmem:[#allocation2 + $0x120] sm:$0xff]
          %v3555 = vld [vmem:[#allocation2 + $0x128] sm:$0xff]
          %v3556 = vld [vmem:[#allocation2 + $0x130] sm:$0xff]
          %v3557 = vld [vmem:[#allocation2 + $0x138] sm:$0xff]
          %v3558 = vld [vmem:[#allocation2 + $0x140] sm:$0xff]
          %v3559 = vld [vmem:[#allocation2 + $0x148] sm:$0xff]
          %v3560 = vld [vmem:[#allocation2 + $0x150] sm:$0xff]
          %v3561 = vld [vmem:[#allocation2 + $0x158] sm:$0xff]
          %v3562 = vld [vmem:[#allocation2 + $0x160] sm:$0xff]
          %v3563 = vld [vmem:[#allocation2 + $0x168] sm:$0xff]
          %v3564 = vld [vmem:[#allocation2 + $0x170] sm:$0xff]
          %v3565 = vld [vmem:[#allocation2 + $0x178] sm:$0xff]
          %v3566 = vadd.f32 %v3470, %v3518
          %v3567 = vadd.f32 %v3471, %v3519
          %v3568 = vadd.f32 %v3472, %v3520
          %v3569 = vadd.f32 %v3473, %v3521
          %v3570 = vadd.f32 %v3474, %v3522
          %v3571 = vadd.f32 %v3475, %v3523
          %v3572 = vadd.f32 %v3476, %v3524
          %v3573 = vadd.f32 %v3477, %v3525
          %v3574 = vadd.f32 %v3478, %v3526
          %v3575 = vadd.f32 %v3479, %v3527
          %v3576 = vadd.f32 %v3480, %v3528
          %v3577 = vadd.f32 %v3481, %v3529
          %v3578 = vadd.f32 %v3482, %v3530
          %v3579 = vadd.f32 %v3483, %v3531
          %v3580 = vadd.f32 %v3484, %v3532
          %v3581 = vadd.f32 %v3485, %v3533
          %v3582 = vadd.f32 %v3486, %v3534
          %v3583 = vadd.f32 %v3487, %v3535
          %v3584 = vadd.f32 %v3488, %v3536
          %v3585 = vadd.f32 %v3489, %v3537
          %v3586 = vadd.f32 %v3490, %v3538
          %v3587 = vadd.f32 %v3491, %v3539
          %v3588 = vadd.f32 %v3492, %v3540
          %v3589 = vadd.f32 %v3493, %v3541
          %v3590 = vadd.f32 %v3494, %v3542
          %v3591 = vadd.f32 %v3495, %v3543
          %v3592 = vadd.f32 %v3496, %v3544
          %v3593 = vadd.f32 %v3497, %v3545
          %v3594 = vadd.f32 %v3498, %v3546
          %v3595 = vadd.f32 %v3499, %v3547
          %v3596 = vadd.f32 %v3500, %v3548
          %v3597 = vadd.f32 %v3501, %v3549
          %v3598 = vadd.f32 %v3502, %v3550
          %v3599 = vadd.f32 %v3503, %v3551
          %v3600 = vadd.f32 %v3504, %v3552
          %v3601 = vadd.f32 %v3505, %v3553
          %v3602 = vadd.f32 %v3506, %v3554
          %v3603 = vadd.f32 %v3507, %v3555
          %v3604 = vadd.f32 %v3508, %v3556
          %v3605 = vadd.f32 %v3509, %v3557
          %v3606 = vadd.f32 %v3510, %v3558
          %v3607 = vadd.f32 %v3511, %v3559
          %v3608 = vadd.f32 %v3512, %v3560
          %v3609 = vadd.f32 %v3513, %v3561
          %v3610 = vadd.f32 %v3514, %v3562
          %v3611 = vadd.f32 %v3515, %v3563
          %v3612 = vadd.f32 %v3516, %v3564
          %v3613 = vadd.f32 %v3517, %v3565
          %v3614 = vld [vmem:[%s8] sm:$0x3]
          %v3615 = vld [vmem:[%s9] sm:$0x3]
          %v3616 = vadd.f32 %v3566, %v3567
          %3617 = vadd.xlane.f32.xlu0 %v3616
          %v3618 = vpop.xlane.xlu0 %3617
          %v3619 = vadd.f32 %v3568, %v3569
          %3620 = vadd.xlane.f32.xlu0 %v3619
          %v3621 = vpop.xlane.xlu0 %3620
          %v3622 = vadd.f32 %v3570, %v3571
          %3623 = vadd.xlane.f32.xlu0 %v3622
          %v3624 = vpop.xlane.xlu0 %3623
          %v3625 = vadd.f32 %v3572, %v3573
          %3626 = vadd.xlane.f32.xlu0 %v3625
          %v3627 = vpop.xlane.xlu0 %3626
          %v3628 = vadd.f32 %v3574, %v3575
          %3629 = vadd.xlane.f32.xlu0 %v3628
          %v3630 = vpop.xlane.xlu0 %3629
          %v3631 = vadd.f32 %v3576, %v3577
          %3632 = vadd.xlane.f32.xlu0 %v3631
          %v3633 = vpop.xlane.xlu0 %3632
          %v3634 = vadd.f32 %v3578, %v3579
          %3635 = vadd.xlane.f32.xlu0 %v3634
          %v3636 = vpop.xlane.xlu0 %3635
          %v3637 = vadd.f32 %v3580, %v3581
          %3638 = vadd.xlane.f32.xlu0 %v3637
          %v3639 = vpop.xlane.xlu0 %3638
          %v3640 = vadd.f32 %v3582, %v3583
          %3641 = vadd.xlane.f32.xlu0 %v3640
          %v3642 = vpop.xlane.xlu0 %3641
          %v3643 = vadd.f32 %v3584, %v3585
          %3644 = vadd.xlane.f32.xlu0 %v3643
          %v3645 = vpop.xlane.xlu0 %3644
          %v3646 = vadd.f32 %v3586, %v3587
          %3647 = vadd.xlane.f32.xlu0 %v3646
          %v3648 = vpop.xlane.xlu0 %3647
          %v3649 = vadd.f32 %v3588, %v3589
          %3650 = vadd.xlane.f32.xlu0 %v3649
          %v3651 = vpop.xlane.xlu0 %3650
          %v3652 = vadd.f32 %v3590, %v3591
          %3653 = vadd.xlane.f32.xlu0 %v3652
          %v3654 = vpop.xlane.xlu0 %3653
          %v3655 = vadd.f32 %v3592, %v3593
          %3656 = vadd.xlane.f32.xlu0 %v3655
          %v3657 = vpop.xlane.xlu0 %3656
          %v3658 = vadd.f32 %v3594, %v3595
          %3659 = vadd.xlane.f32.xlu0 %v3658
          %v3660 = vpop.xlane.xlu0 %3659
          %v3661 = vadd.f32 %v3596, %v3597
          %3662 = vadd.xlane.f32.xlu0 %v3661
          %v3663 = vpop.xlane.xlu0 %3662
          %v3664 = vadd.f32 %v3598, %v3599
          %3665 = vadd.xlane.f32.xlu0 %v3664
          %v3666 = vpop.xlane.xlu0 %3665
          %v3667 = vadd.f32 %v3600, %v3601
          %3668 = vadd.xlane.f32.xlu0 %v3667
          %v3669 = vpop.xlane.xlu0 %3668
          %v3670 = vadd.f32 %v3602, %v3603
          %3671 = vadd.xlane.f32.xlu0 %v3670
          %v3672 = vpop.xlane.xlu0 %3671
          %v3673 = vadd.f32 %v3604, %v3605
          %3674 = vadd.xlane.f32.xlu0 %v3673
          %v3675 = vpop.xlane.xlu0 %3674
          %v3676 = vadd.f32 %v3606, %v3607
          %3677 = vadd.xlane.f32.xlu0 %v3676
          %v3678 = vpop.xlane.xlu0 %3677
          %v3679 = vadd.f32 %v3608, %v3609
          %3680 = vadd.xlane.f32.xlu0 %v3679
          %v3681 = vpop.xlane.xlu0 %3680
          %v3682 = vadd.f32 %v3610, %v3611
          %3683 = vadd.xlane.f32.xlu0 %v3682
          %v3684 = vpop.xlane.xlu0 %3683
          %v3685 = vadd.f32 %v3612, %v3613
          %3686 = vadd.xlane.f32.xlu0 %v3685
          %v3687 = vpop.xlane.xlu0 %3686
          %v3688 = vrcp.pop 256.0
          %v3689 = vmul.f32 256.0, %v3688
          %v3690 = vsub.f32 1.0, %v3689
          %v3691 = vmul.f32 %v3688, %v3690
          %v3692 = vadd.f32 %v3688, %v3691
          %vm3693 = vweird.f32 %v3688
          %v3694 = vsel %vm3693, %v3688, %v3692
          %v3695 = vmul.f32 %v3618, %v3694
          %v3696 = vmul.f32 %v3621, %v3694
          %v3697 = vmul.f32 %v3624, %v3694
          %v3698 = vmul.f32 %v3627, %v3694
          %v3699 = vmul.f32 %v3630, %v3694
          %v3700 = vmul.f32 %v3633, %v3694
          %v3701 = vmul.f32 %v3636, %v3694
          %v3702 = vmul.f32 %v3639, %v3694
          %v3703 = vmul.f32 %v3642, %v3694
          %v3704 = vmul.f32 %v3645, %v3694
          %v3705 = vmul.f32 %v3648, %v3694
          %v3706 = vmul.f32 %v3651, %v3694
          %v3707 = vmul.f32 %v3654, %v3694
          %v3708 = vmul.f32 %v3657, %v3694
          %v3709 = vmul.f32 %v3660, %v3694
          %v3710 = vmul.f32 %v3663, %v3694
          %v3711 = vmul.f32 %v3666, %v3694
          %v3712 = vmul.f32 %v3669, %v3694
          %v3713 = vmul.f32 %v3672, %v3694
          %v3714 = vmul.f32 %v3675, %v3694
          %v3715 = vmul.f32 %v3678, %v3694
          %v3716 = vmul.f32 %v3681, %v3694
          %v3717 = vmul.f32 %v3684, %v3694
          %v3718 = vmul.f32 %v3687, %v3694
          %v3719 = vmul.f32 %v3566, %v3566
          %v3720 = vmul.f32 %v3567, %v3567
          %v3721 = vmul.f32 %v3568, %v3568
          %v3722 = vmul.f32 %v3569, %v3569
          %v3723 = vmul.f32 %v3570, %v3570
          %v3724 = vmul.f32 %v3571, %v3571
          %v3725 = vmul.f32 %v3572, %v3572
          %v3726 = vmul.f32 %v3573, %v3573
          %v3727 = vmul.f32 %v3574, %v3574
          %v3728 = vmul.f32 %v3575, %v3575
          %v3729 = vmul.f32 %v3576, %v3576
          %v3730 = vmul.f32 %v3577, %v3577
          %v3731 = vmul.f32 %v3578, %v3578
          %v3732 = vmul.f32 %v3579, %v3579
          %v3733 = vmul.f32 %v3580, %v3580
          %v3734 = vmul.f32 %v3581, %v3581
          %v3735 = vmul.f32 %v3582, %v3582
          %v3736 = vmul.f32 %v3583, %v3583
          %v3737 = vmul.f32 %v3584, %v3584
          %v3738 = vmul.f32 %v3585, %v3585
          %v3739 = vmul.f32 %v3586, %v3586
          %v3740 = vmul.f32 %v3587, %v3587
          %v3741 = vmul.f32 %v3588, %v3588
          %v3742 = vmul.f32 %v3589, %v3589
          %v3743 = vmul.f32 %v3590, %v3590
          %v3744 = vmul.f32 %v3591, %v3591
          %v3745 = vmul.f32 %v3592, %v3592
          %v3746 = vmul.f32 %v3593, %v3593
          %v3747 = vmul.f32 %v3594, %v3594
          %v3748 = vmul.f32 %v3595, %v3595
          %v3749 = vmul.f32 %v3596, %v3596
          %v3750 = vmul.f32 %v3597, %v3597
          %v3751 = vmul.f32 %v3598, %v3598
          %v3752 = vmul.f32 %v3599, %v3599
          %v3753 = vmul.f32 %v3600, %v3600
          %v3754 = vmul.f32 %v3601, %v3601
          %v3755 = vmul.f32 %v3602, %v3602
          %v3756 = vmul.f32 %v3603, %v3603
          %v3757 = vmul.f32 %v3604, %v3604
          %v3758 = vmul.f32 %v3605, %v3605
          %v3759 = vmul.f32 %v3606, %v3606
          %v3760 = vmul.f32 %v3607, %v3607
          %v3761 = vmul.f32 %v3608, %v3608
          %v3762 = vmul.f32 %v3609, %v3609
          %v3763 = vmul.f32 %v3610, %v3610
          %v3764 = vmul.f32 %v3611, %v3611
          %v3765 = vmul.f32 %v3612, %v3612
          %v3766 = vmul.f32 %v3613, %v3613
          %v3767 = vadd.f32 %v3719, %v3720
          %3768 = vadd.xlane.f32.xlu0 %v3767
          %v3769 = vpop.xlane.xlu0 %3768
          %v3770 = vadd.f32 %v3721, %v3722
          %3771 = vadd.xlane.f32.xlu0 %v3770
          %v3772 = vpop.xlane.xlu0 %3771
          %v3773 = vadd.f32 %v3723, %v3724
          %3774 = vadd.xlane.f32.xlu0 %v3773
          %v3775 = vpop.xlane.xlu0 %3774
          %v3776 = vadd.f32 %v3725, %v3726
          %3777 = vadd.xlane.f32.xlu0 %v3776
          %v3778 = vpop.xlane.xlu0 %3777
          %v3779 = vadd.f32 %v3727, %v3728
          %3780 = vadd.xlane.f32.xlu0 %v3779
          %v3781 = vpop.xlane.xlu0 %3780
          %v3782 = vadd.f32 %v3729, %v3730
          %3783 = vadd.xlane.f32.xlu0 %v3782
          %v3784 = vpop.xlane.xlu0 %3783
          %v3785 = vadd.f32 %v3731, %v3732
          %3786 = vadd.xlane.f32.xlu0 %v3785
          %v3787 = vpop.xlane.xlu0 %3786
          %v3788 = vadd.f32 %v3733, %v3734
          %3789 = vadd.xlane.f32.xlu0 %v3788
          %v3790 = vpop.xlane.xlu0 %3789
          %v3791 = vadd.f32 %v3735, %v3736
          %3792 = vadd.xlane.f32.xlu0 %v3791
          %v3793 = vpop.xlane.xlu0 %3792
          %v3794 = vadd.f32 %v3737, %v3738
          %3795 = vadd.xlane.f32.xlu0 %v3794
          %v3796 = vpop.xlane.xlu0 %3795
          %v3797 = vadd.f32 %v3739, %v3740
          %3798 = vadd.xlane.f32.xlu0 %v3797
          %v3799 = vpop.xlane.xlu0 %3798
          %v3800 = vadd.f32 %v3741, %v3742
          %3801 = vadd.xlane.f32.xlu0 %v3800
          %v3802 = vpop.xlane.xlu0 %3801
          %v3803 = vadd.f32 %v3743, %v3744
          %3804 = vadd.xlane.f32.xlu0 %v3803
          %v3805 = vpop.xlane.xlu0 %3804
          %v3806 = vadd.f32 %v3745, %v3746
          %3807 = vadd.xlane.f32.xlu0 %v3806
          %v3808 = vpop.xlane.xlu0 %3807
          %v3809 = vadd.f32 %v3747, %v3748
          %3810 = vadd.xlane.f32.xlu0 %v3809
          %v3811 = vpop.xlane.xlu0 %3810
          %v3812 = vadd.f32 %v3749, %v3750
          %3813 = vadd.xlane.f32.xlu0 %v3812
          %v3814 = vpop.xlane.xlu0 %3813
          %v3815 = vadd.f32 %v3751, %v3752
          %3816 = vadd.xlane.f32.xlu0 %v3815
          %v3817 = vpop.xlane.xlu0 %3816
          %v3818 = vadd.f32 %v3753, %v3754
          %3819 = vadd.xlane.f32.xlu0 %v3818
          %v3820 = vpop.xlane.xlu0 %3819
          %v3821 = vadd.f32 %v3755, %v3756
          %3822 = vadd.xlane.f32.xlu0 %v3821
          %v3823 = vpop.xlane.xlu0 %3822
          %v3824 = vadd.f32 %v3757, %v3758
          %3825 = vadd.xlane.f32.xlu0 %v3824
          %v3826 = vpop.xlane.xlu0 %3825
          %v3827 = vadd.f32 %v3759, %v3760
          %3828 = vadd.xlane.f32.xlu0 %v3827
          %v3829 = vpop.xlane.xlu0 %3828
          %v3830 = vadd.f32 %v3761, %v3762
          %3831 = vadd.xlane.f32.xlu0 %v3830
          %v3832 = vpop.xlane.xlu0 %3831
          %v3833 = vadd.f32 %v3763, %v3764
          %3834 = vadd.xlane.f32.xlu0 %v3833
          %v3835 = vpop.xlane.xlu0 %3834
          %v3836 = vadd.f32 %v3765, %v3766
          %3837 = vadd.xlane.f32.xlu0 %v3836
          %v3838 = vpop.xlane.xlu0 %3837
          %v3839 = vmul.f32 %v3769, %v3694
          %v3840 = vmul.f32 %v3772, %v3694
          %v3841 = vmul.f32 %v3775, %v3694
          %v3842 = vmul.f32 %v3778, %v3694
          %v3843 = vmul.f32 %v3781, %v3694
          %v3844 = vmul.f32 %v3784, %v3694
          %v3845 = vmul.f32 %v3787, %v3694
          %v3846 = vmul.f32 %v3790, %v3694
          %v3847 = vmul.f32 %v3793, %v3694
          %v3848 = vmul.f32 %v3796, %v3694
          %v3849 = vmul.f32 %v3799, %v3694
          %v3850 = vmul.f32 %v3802, %v3694
          %v3851 = vmul.f32 %v3805, %v3694
          %v3852 = vmul.f32 %v3808, %v3694
          %v3853 = vmul.f32 %v3811, %v3694
          %v3854 = vmul.f32 %v3814, %v3694
          %v3855 = vmul.f32 %v3817, %v3694
          %v3856 = vmul.f32 %v3820, %v3694
          %v3857 = vmul.f32 %v3823, %v3694
          %v3858 = vmul.f32 %v3826, %v3694
          %v3859 = vmul.f32 %v3829, %v3694
          %v3860 = vmul.f32 %v3832, %v3694
          %v3861 = vmul.f32 %v3835, %v3694
          %v3862 = vmul.f32 %v3838, %v3694
          %v3863 = vmul.f32 %v3695, %v3695
          %v3864 = vmul.f32 %v3696, %v3696
          %v3865 = vmul.f32 %v3697, %v3697
          %v3866 = vmul.f32 %v3698, %v3698
          %v3867 = vmul.f32 %v3699, %v3699
          %v3868 = vmul.f32 %v3700, %v3700
          %v3869 = vmul.f32 %v3701, %v3701
          %v3870 = vmul.f32 %v3702, %v3702
          %v3871 = vmul.f32 %v3703, %v3703
          %v3872 = vmul.f32 %v3704, %v3704
          %v3873 = vmul.f32 %v3705, %v3705
          %v3874 = vmul.f32 %v3706, %v3706
          %v3875 = vmul.f32 %v3707, %v3707
          %v3876 = vmul.f32 %v3708, %v3708
          %v3877 = vmul.f32 %v3709, %v3709
          %v3878 = vmul.f32 %v3710, %v3710
          %v3879 = vmul.f32 %v3711, %v3711
          %v3880 = vmul.f32 %v3712, %v3712
          %v3881 = vmul.f32 %v3713, %v3713
          %v3882 = vmul.f32 %v3714, %v3714
          %v3883 = vmul.f32 %v3715, %v3715
          %v3884 = vmul.f32 %v3716, %v3716
          %v3885 = vmul.f32 %v3717, %v3717
          %v3886 = vmul.f32 %v3718, %v3718
          %v3887 = vsub.f32 %v3839, %v3863
          %v3888 = vsub.f32 %v3840, %v3864
          %v3889 = vsub.f32 %v3841, %v3865
          %v3890 = vsub.f32 %v3842, %v3866
          %v3891 = vsub.f32 %v3843, %v3867
          %v3892 = vsub.f32 %v3844, %v3868
          %v3893 = vsub.f32 %v3845, %v3869
          %v3894 = vsub.f32 %v3846, %v3870
          %v3895 = vsub.f32 %v3847, %v3871
          %v3896 = vsub.f32 %v3848, %v3872
          %v3897 = vsub.f32 %v3849, %v3873
          %v3898 = vsub.f32 %v3850, %v3874
          %v3899 = vsub.f32 %v3851, %v3875
          %v3900 = vsub.f32 %v3852, %v3876
          %v3901 = vsub.f32 %v3853, %v3877
          %v3902 = vsub.f32 %v3854, %v3878
          %v3903 = vsub.f32 %v3855, %v3879
          %v3904 = vsub.f32 %v3856, %v3880
          %v3905 = vsub.f32 %v3857, %v3881
          %v3906 = vsub.f32 %v3858, %v3882
          %v3907 = vsub.f32 %v3859, %v3883
          %v3908 = vsub.f32 %v3860, %v3884
          %v3909 = vsub.f32 %v3861, %v3885
          %v3910 = vsub.f32 %v3862, %v3886
          %v3911 = vmax.f32 %v3887, 0.0
          %v3912 = vmax.f32 %v3888, 0.0
          %v3913 = vmax.f32 %v3889, 0.0
          %v3914 = vmax.f32 %v3890, 0.0
          %v3915 = vmax.f32 %v3891, 0.0
          %v3916 = vmax.f32 %v3892, 0.0
          %v3917 = vmax.f32 %v3893, 0.0
          %v3918 = vmax.f32 %v3894, 0.0
          %v3919 = vmax.f32 %v3895, 0.0
          %v3920 = vmax.f32 %v3896, 0.0
          %v3921 = vmax.f32 %v3897, 0.0
          %v3922 = vmax.f32 %v3898, 0.0
          %v3923 = vmax.f32 %v3899, 0.0
          %v3924 = vmax.f32 %v3900, 0.0
          %v3925 = vmax.f32 %v3901, 0.0
          %v3926 = vmax.f32 %v3902, 0.0
          %v3927 = vmax.f32 %v3903, 0.0
          %v3928 = vmax.f32 %v3904, 0.0
          %v3929 = vmax.f32 %v3905, 0.0
          %v3930 = vmax.f32 %v3906, 0.0
          %v3931 = vmax.f32 %v3907, 0.0
          %v3932 = vmax.f32 %v3908, 0.0
          %v3933 = vmax.f32 %v3909, 0.0
          %v3934 = vmax.f32 %v3910, 0.0
          %v3935 = vadd.f32 %v3911, 1e-12
          %v3936 = vadd.f32 %v3912, 1e-12
          %v3937 = vadd.f32 %v3913, 1e-12
          %v3938 = vadd.f32 %v3914, 1e-12
          %v3939 = vadd.f32 %v3915, 1e-12
          %v3940 = vadd.f32 %v3916, 1e-12
          %v3941 = vadd.f32 %v3917, 1e-12
          %v3942 = vadd.f32 %v3918, 1e-12
          %v3943 = vadd.f32 %v3919, 1e-12
          %v3944 = vadd.f32 %v3920, 1e-12
          %v3945 = vadd.f32 %v3921, 1e-12
          %v3946 = vadd.f32 %v3922, 1e-12
          %v3947 = vadd.f32 %v3923, 1e-12
          %v3948 = vadd.f32 %v3924, 1e-12
          %v3949 = vadd.f32 %v3925, 1e-12
          %v3950 = vadd.f32 %v3926, 1e-12
          %v3951 = vadd.f32 %v3927, 1e-12
          %v3952 = vadd.f32 %v3928, 1e-12
          %v3953 = vadd.f32 %v3929, 1e-12
          %v3954 = vadd.f32 %v3930, 1e-12
          %v3955 = vadd.f32 %v3931, 1e-12
          %v3956 = vadd.f32 %v3932, 1e-12
          %v3957 = vadd.f32 %v3933, 1e-12
          %v3958 = vadd.f32 %v3934, 1e-12
          %v3959 = vrsqrt.pop %v3935
          %v3960 = vmul.f32 %v3959, %v3935
          %v3961 = vmul.f32 %v3960, %v3959
          %v3962 = vmul.f32 0.5, %v3961
          %v3963 = vsub.f32 1.5, %v3962
          %v3964 = vmul.f32 %v3959, %v3963
          %vm3965 = vweird.f32 %v3935
          %vm3966 = vweird.f32 %v3959
          %vm3967 = vmor %vm3965, %vm3966
          %v3968 = vsel %vm3967, %v3959, %v3964
          %v3969 = vrsqrt.pop %v3936
          %v3970 = vmul.f32 %v3969, %v3936
          %v3971 = vmul.f32 %v3970, %v3969
          %v3972 = vmul.f32 0.5, %v3971
          %v3973 = vsub.f32 1.5, %v3972
          %v3974 = vmul.f32 %v3969, %v3973
          %vm3975 = vweird.f32 %v3936
          %vm3976 = vweird.f32 %v3969
          %vm3977 = vmor %vm3975, %vm3976
          %v3978 = vsel %vm3977, %v3969, %v3974
          %v3979 = vrsqrt.pop %v3937
          %v3980 = vmul.f32 %v3979, %v3937
          %v3981 = vmul.f32 %v3980, %v3979
          %v3982 = vmul.f32 0.5, %v3981
          %v3983 = vsub.f32 1.5, %v3982
          %v3984 = vmul.f32 %v3979, %v3983
          %vm3985 = vweird.f32 %v3937
          %vm3986 = vweird.f32 %v3979
          %vm3987 = vmor %vm3985, %vm3986
          %v3988 = vsel %vm3987, %v3979, %v3984
          %v3989 = vrsqrt.pop %v3938
          %v3990 = vmul.f32 %v3989, %v3938
          %v3991 = vmul.f32 %v3990, %v3989
          %v3992 = vmul.f32 0.5, %v3991
          %v3993 = vsub.f32 1.5, %v3992
          %v3994 = vmul.f32 %v3989, %v3993
          %vm3995 = vweird.f32 %v3938
          %vm3996 = vweird.f32 %v3989
          %vm3997 = vmor %vm3995, %vm3996
          %v3998 = vsel %vm3997, %v3989, %v3994
          %v3999 = vrsqrt.pop %v3939
          %v4000 = vmul.f32 %v3999, %v3939
          %v4001 = vmul.f32 %v4000, %v3999
          %v4002 = vmul.f32 0.5, %v4001
          %v4003 = vsub.f32 1.5, %v4002
          %v4004 = vmul.f32 %v3999, %v4003
          %vm4005 = vweird.f32 %v3939
          %vm4006 = vweird.f32 %v3999
          %vm4007 = vmor %vm4005, %vm4006
          %v4008 = vsel %vm4007, %v3999, %v4004
          %v4009 = vrsqrt.pop %v3940
          %v4010 = vmul.f32 %v4009, %v3940
          %v4011 = vmul.f32 %v4010, %v4009
          %v4012 = vmul.f32 0.5, %v4011
          %v4013 = vsub.f32 1.5, %v4012
          %v4014 = vmul.f32 %v4009, %v4013
          %vm4015 = vweird.f32 %v3940
          %vm4016 = vweird.f32 %v4009
          %vm4017 = vmor %vm4015, %vm4016
          %v4018 = vsel %vm4017, %v4009, %v4014
          %v4019 = vrsqrt.pop %v3941
          %v4020 = vmul.f32 %v4019, %v3941
          %v4021 = vmul.f32 %v4020, %v4019
          %v4022 = vmul.f32 0.5, %v4021
          %v4023 = vsub.f32 1.5, %v4022
          %v4024 = vmul.f32 %v4019, %v4023
          %vm4025 = vweird.f32 %v3941
          %vm4026 = vweird.f32 %v4019
          %vm4027 = vmor %vm4025, %vm4026
          %v4028 = vsel %vm4027, %v4019, %v4024
          %v4029 = vrsqrt.pop %v3942
          %v4030 = vmul.f32 %v4029, %v3942
          %v4031 = vmul.f32 %v4030, %v4029
          %v4032 = vmul.f32 0.5, %v4031
          %v4033 = vsub.f32 1.5, %v4032
          %v4034 = vmul.f32 %v4029, %v4033
          %vm4035 = vweird.f32 %v3942
          %vm4036 = vweird.f32 %v4029
          %vm4037 = vmor %vm4035, %vm4036
          %v4038 = vsel %vm4037, %v4029, %v4034
          %v4039 = vrsqrt.pop %v3943
          %v4040 = vmul.f32 %v4039, %v3943
          %v4041 = vmul.f32 %v4040, %v4039
          %v4042 = vmul.f32 0.5, %v4041
          %v4043 = vsub.f32 1.5, %v4042
          %v4044 = vmul.f32 %v4039, %v4043
          %vm4045 = vweird.f32 %v3943
          %vm4046 = vweird.f32 %v4039
          %vm4047 = vmor %vm4045, %vm4046
          %v4048 = vsel %vm4047, %v4039, %v4044
          %v4049 = vrsqrt.pop %v3944
          %v4050 = vmul.f32 %v4049, %v3944
          %v4051 = vmul.f32 %v4050, %v4049
          %v4052 = vmul.f32 0.5, %v4051
          %v4053 = vsub.f32 1.5, %v4052
          %v4054 = vmul.f32 %v4049, %v4053
          %vm4055 = vweird.f32 %v3944
          %vm4056 = vweird.f32 %v4049
          %vm4057 = vmor %vm4055, %vm4056
          %v4058 = vsel %vm4057, %v4049, %v4054
          %v4059 = vrsqrt.pop %v3945
          %v4060 = vmul.f32 %v4059, %v3945
          %v4061 = vmul.f32 %v4060, %v4059
          %v4062 = vmul.f32 0.5, %v4061
          %v4063 = vsub.f32 1.5, %v4062
          %v4064 = vmul.f32 %v4059, %v4063
          %vm4065 = vweird.f32 %v3945
          %vm4066 = vweird.f32 %v4059
          %vm4067 = vmor %vm4065, %vm4066
          %v4068 = vsel %vm4067, %v4059, %v4064
          %v4069 = vrsqrt.pop %v3946
          %v4070 = vmul.f32 %v4069, %v3946
          %v4071 = vmul.f32 %v4070, %v4069
          %v4072 = vmul.f32 0.5, %v4071
          %v4073 = vsub.f32 1.5, %v4072
          %v4074 = vmul.f32 %v4069, %v4073
          %vm4075 = vweird.f32 %v3946
          %vm4076 = vweird.f32 %v4069
          %vm4077 = vmor %vm4075, %vm4076
          %v4078 = vsel %vm4077, %v4069, %v4074
          %v4079 = vrsqrt.pop %v3947
          %v4080 = vmul.f32 %v4079, %v3947
          %v4081 = vmul.f32 %v4080, %v4079
          %v4082 = vmul.f32 0.5, %v4081
          %v4083 = vsub.f32 1.5, %v4082
          %v4084 = vmul.f32 %v4079, %v4083
          %vm4085 = vweird.f32 %v3947
          %vm4086 = vweird.f32 %v4079
          %vm4087 = vmor %vm4085, %vm4086
          %v4088 = vsel %vm4087, %v4079, %v4084
          %v4089 = vrsqrt.pop %v3948
          %v4090 = vmul.f32 %v4089, %v3948
          %v4091 = vmul.f32 %v4090, %v4089
          %v4092 = vmul.f32 0.5, %v4091
          %v4093 = vsub.f32 1.5, %v4092
          %v4094 = vmul.f32 %v4089, %v4093
          %vm4095 = vweird.f32 %v3948
          %vm4096 = vweird.f32 %v4089
          %vm4097 = vmor %vm4095, %vm4096
          %v4098 = vsel %vm4097, %v4089, %v4094
          %v4099 = vrsqrt.pop %v3949
          %v4100 = vmul.f32 %v4099, %v3949
          %v4101 = vmul.f32 %v4100, %v4099
          %v4102 = vmul.f32 0.5, %v4101
          %v4103 = vsub.f32 1.5, %v4102
          %v4104 = vmul.f32 %v4099, %v4103
          %vm4105 = vweird.f32 %v3949
          %vm4106 = vweird.f32 %v4099
          %vm4107 = vmor %vm4105, %vm4106
          %v4108 = vsel %vm4107, %v4099, %v4104
          %v4109 = vrsqrt.pop %v3950
          %v4110 = vmul.f32 %v4109, %v3950
          %v4111 = vmul.f32 %v4110, %v4109
          %v4112 = vmul.f32 0.5, %v4111
          %v4113 = vsub.f32 1.5, %v4112
          %v4114 = vmul.f32 %v4109, %v4113
          %vm4115 = vweird.f32 %v3950
          %vm4116 = vweird.f32 %v4109
          %vm4117 = vmor %vm4115, %vm4116
          %v4118 = vsel %vm4117, %v4109, %v4114
          %v4119 = vrsqrt.pop %v3951
          %v4120 = vmul.f32 %v4119, %v3951
          %v4121 = vmul.f32 %v4120, %v4119
          %v4122 = vmul.f32 0.5, %v4121
          %v4123 = vsub.f32 1.5, %v4122
          %v4124 = vmul.f32 %v4119, %v4123
          %vm4125 = vweird.f32 %v3951
          %vm4126 = vweird.f32 %v4119
          %vm4127 = vmor %vm4125, %vm4126
          %v4128 = vsel %vm4127, %v4119, %v4124
          %v4129 = vrsqrt.pop %v3952
          %v4130 = vmul.f32 %v4129, %v3952
          %v4131 = vmul.f32 %v4130, %v4129
          %v4132 = vmul.f32 0.5, %v4131
          %v4133 = vsub.f32 1.5, %v4132
          %v4134 = vmul.f32 %v4129, %v4133
          %vm4135 = vweird.f32 %v3952
          %vm4136 = vweird.f32 %v4129
          %vm4137 = vmor %vm4135, %vm4136
          %v4138 = vsel %vm4137, %v4129, %v4134
          %v4139 = vrsqrt.pop %v3953
          %v4140 = vmul.f32 %v4139, %v3953
          %v4141 = vmul.f32 %v4140, %v4139
          %v4142 = vmul.f32 0.5, %v4141
          %v4143 = vsub.f32 1.5, %v4142
          %v4144 = vmul.f32 %v4139, %v4143
          %vm4145 = vweird.f32 %v3953
          %vm4146 = vweird.f32 %v4139
          %vm4147 = vmor %vm4145, %vm4146
          %v4148 = vsel %vm4147, %v4139, %v4144
          %v4149 = vrsqrt.pop %v3954
          %v4150 = vmul.f32 %v4149, %v3954
          %v4151 = vmul.f32 %v4150, %v4149
          %v4152 = vmul.f32 0.5, %v4151
          %v4153 = vsub.f32 1.5, %v4152
          %v4154 = vmul.f32 %v4149, %v4153
          %vm4155 = vweird.f32 %v3954
          %vm4156 = vweird.f32 %v4149
          %vm4157 = vmor %vm4155, %vm4156
          %v4158 = vsel %vm4157, %v4149, %v4154
          %v4159 = vrsqrt.pop %v3955
          %v4160 = vmul.f32 %v4159, %v3955
          %v4161 = vmul.f32 %v4160, %v4159
          %v4162 = vmul.f32 0.5, %v4161
          %v4163 = vsub.f32 1.5, %v4162
          %v4164 = vmul.f32 %v4159, %v4163
          %vm4165 = vweird.f32 %v3955
          %vm4166 = vweird.f32 %v4159
          %vm4167 = vmor %vm4165, %vm4166
          %v4168 = vsel %vm4167, %v4159, %v4164
          %v4169 = vrsqrt.pop %v3956
          %v4170 = vmul.f32 %v4169, %v3956
          %v4171 = vmul.f32 %v4170, %v4169
          %v4172 = vmul.f32 0.5, %v4171
          %v4173 = vsub.f32 1.5, %v4172
          %v4174 = vmul.f32 %v4169, %v4173
          %vm4175 = vweird.f32 %v3956
          %vm4176 = vweird.f32 %v4169
          %vm4177 = vmor %vm4175, %vm4176
          %v4178 = vsel %vm4177, %v4169, %v4174
          %v4179 = vrsqrt.pop %v3957
          %v4180 = vmul.f32 %v4179, %v3957
          %v4181 = vmul.f32 %v4180, %v4179
          %v4182 = vmul.f32 0.5, %v4181
          %v4183 = vsub.f32 1.5, %v4182
          %v4184 = vmul.f32 %v4179, %v4183
          %vm4185 = vweird.f32 %v3957
          %vm4186 = vweird.f32 %v4179
          %vm4187 = vmor %vm4185, %vm4186
          %v4188 = vsel %vm4187, %v4179, %v4184
          %v4189 = vrsqrt.pop %v3958
          %v4190 = vmul.f32 %v4189, %v3958
          %v4191 = vmul.f32 %v4190, %v4189
          %v4192 = vmul.f32 0.5, %v4191
          %v4193 = vsub.f32 1.5, %v4192
          %v4194 = vmul.f32 %v4189, %v4193
          %vm4195 = vweird.f32 %v3958
          %vm4196 = vweird.f32 %v4189
          %vm4197 = vmor %vm4195, %vm4196
          %v4198 = vsel %vm4197, %v4189, %v4194
          %v4199 = vsub.f32 %v3566, %v3695
          %v4200 = vsub.f32 %v3567, %v3695
          %v4201 = vsub.f32 %v3568, %v3696
          %v4202 = vsub.f32 %v3569, %v3696
          %v4203 = vsub.f32 %v3570, %v3697
          %v4204 = vsub.f32 %v3571, %v3697
          %v4205 = vsub.f32 %v3572, %v3698
          %v4206 = vsub.f32 %v3573, %v3698
          %v4207 = vsub.f32 %v3574, %v3699
          %v4208 = vsub.f32 %v3575, %v3699
          %v4209 = vsub.f32 %v3576, %v3700
          %v4210 = vsub.f32 %v3577, %v3700
          %v4211 = vsub.f32 %v3578, %v3701
          %v4212 = vsub.f32 %v3579, %v3701
          %v4213 = vsub.f32 %v3580, %v3702
          %v4214 = vsub.f32 %v3581, %v3702
          %v4215 = vsub.f32 %v3582, %v3703
          %v4216 = vsub.f32 %v3583, %v3703
          %v4217 = vsub.f32 %v3584, %v3704
          %v4218 = vsub.f32 %v3585, %v3704
          %v4219 = vsub.f32 %v3586, %v3705
          %v4220 = vsub.f32 %v3587, %v3705
          %v4221 = vsub.f32 %v3588, %v3706
          %v4222 = vsub.f32 %v3589, %v3706
          %v4223 = vsub.f32 %v3590, %v3707
          %v4224 = vsub.f32 %v3591, %v3707
          %v4225 = vsub.f32 %v3592, %v3708
          %v4226 = vsub.f32 %v3593, %v3708
          %v4227 = vsub.f32 %v3594, %v3709
          %v4228 = vsub.f32 %v3595, %v3709
          %v4229 = vsub.f32 %v3596, %v3710
          %v4230 = vsub.f32 %v3597, %v3710
          %v4231 = vsub.f32 %v3598, %v3711
          %v4232 = vsub.f32 %v3599, %v3711
          %v4233 = vsub.f32 %v3600, %v3712
          %v4234 = vsub.f32 %v3601, %v3712
          %v4235 = vsub.f32 %v3602, %v3713
          %v4236 = vsub.f32 %v3603, %v3713
          %v4237 = vsub.f32 %v3604, %v3714
          %v4238 = vsub.f32 %v3605, %v3714
          %v4239 = vsub.f32 %v3606, %v3715
          %v4240 = vsub.f32 %v3607, %v3715
          %v4241 = vsub.f32 %v3608, %v3716
          %v4242 = vsub.f32 %v3609, %v3716
          %v4243 = vsub.f32 %v3610, %v3717
          %v4244 = vsub.f32 %v3611, %v3717
          %v4245 = vsub.f32 %v3612, %v3718
          %v4246 = vsub.f32 %v3613, %v3718
          %v4247 = vmul.f32 %v4199, %v3968
          %v4248 = vmul.f32 %v4200, %v3968
          %v4249 = vmul.f32 %v4201, %v3978
          %v4250 = vmul.f32 %v4202, %v3978
          %v4251 = vmul.f32 %v4203, %v3988
          %v4252 = vmul.f32 %v4204, %v3988
          %v4253 = vmul.f32 %v4205, %v3998
          %v4254 = vmul.f32 %v4206, %v3998
          %v4255 = vmul.f32 %v4207, %v4008
          %v4256 = vmul.f32 %v4208, %v4008
          %v4257 = vmul.f32 %v4209, %v4018
          %v4258 = vmul.f32 %v4210, %v4018
          %v4259 = vmul.f32 %v4211, %v4028
          %v4260 = vmul.f32 %v4212, %v4028
          %v4261 = vmul.f32 %v4213, %v4038
          %v4262 = vmul.f32 %v4214, %v4038
          %v4263 = vmul.f32 %v4215, %v4048
          %v4264 = vmul.f32 %v4216, %v4048
          %v4265 = vmul.f32 %v4217, %v4058
          %v4266 = vmul.f32 %v4218, %v4058
          %v4267 = vmul.f32 %v4219, %v4068
          %v4268 = vmul.f32 %v4220, %v4068
          %v4269 = vmul.f32 %v4221, %v4078
          %v4270 = vmul.f32 %v4222, %v4078
          %v4271 = vmul.f32 %v4223, %v4088
          %v4272 = vmul.f32 %v4224, %v4088
          %v4273 = vmul.f32 %v4225, %v4098
          %v4274 = vmul.f32 %v4226, %v4098
          %v4275 = vmul.f32 %v4227, %v4108
          %v4276 = vmul.f32 %v4228, %v4108
          %v4277 = vmul.f32 %v4229, %v4118
          %v4278 = vmul.f32 %v4230, %v4118
          %v4279 = vmul.f32 %v4231, %v4128
          %v4280 = vmul.f32 %v4232, %v4128
          %v4281 = vmul.f32 %v4233, %v4138
          %v4282 = vmul.f32 %v4234, %v4138
          %v4283 = vmul.f32 %v4235, %v4148
          %v4284 = vmul.f32 %v4236, %v4148
          %v4285 = vmul.f32 %v4237, %v4158
          %v4286 = vmul.f32 %v4238, %v4158
          %v4287 = vmul.f32 %v4239, %v4168
          %v4288 = vmul.f32 %v4240, %v4168
          %v4289 = vmul.f32 %v4241, %v4178
          %v4290 = vmul.f32 %v4242, %v4178
          %v4291 = vmul.f32 %v4243, %v4188
          %v4292 = vmul.f32 %v4244, %v4188
          %v4293 = vmul.f32 %v4245, %v4198
          %v4294 = vmul.f32 %v4246, %v4198
          %v4296 = vperm.slane %v3614, 0
          %v4297 = vperm.slane %v3614, 1
          %v4300 = vmul.f32 %v4247, %v4296
          %v4301 = vmul.f32 %v4248, %v4297
          %v4302 = vmul.f32 %v4249, %v4296
          %v4303 = vmul.f32 %v4250, %v4297
          %v4304 = vmul.f32 %v4251, %v4296
          %v4305 = vmul.f32 %v4252, %v4297
          %v4306 = vmul.f32 %v4253, %v4296
          %v4307 = vmul.f32 %v4254, %v4297
          %v4308 = vmul.f32 %v4255, %v4296
          %v4309 = vmul.f32 %v4256, %v4297
          %v4310 = vmul.f32 %v4257, %v4296
          %v4311 = vmul.f32 %v4258, %v4297
          %v4312 = vmul.f32 %v4259, %v4296
          %v4313 = vmul.f32 %v4260, %v4297
          %v4314 = vmul.f32 %v4261, %v4296
          %v4315 = vmul.f32 %v4262, %v4297
          %v4316 = vmul.f32 %v4263, %v4296
          %v4317 = vmul.f32 %v4264, %v4297
          %v4318 = vmul.f32 %v4265, %v4296
          %v4319 = vmul.f32 %v4266, %v4297
          %v4320 = vmul.f32 %v4267, %v4296
          %v4321 = vmul.f32 %v4268, %v4297
          %v4322 = vmul.f32 %v4269, %v4296
          %v4323 = vmul.f32 %v4270, %v4297
          %v4324 = vmul.f32 %v4271, %v4296
          %v4325 = vmul.f32 %v4272, %v4297
          %v4326 = vmul.f32 %v4273, %v4296
          %v4327 = vmul.f32 %v4274, %v4297
          %v4328 = vmul.f32 %v4275, %v4296
          %v4329 = vmul.f32 %v4276, %v4297
          %v4330 = vmul.f32 %v4277, %v4296
          %v4331 = vmul.f32 %v4278, %v4297
          %v4332 = vmul.f32 %v4279, %v4296
          %v4333 = vmul.f32 %v4280, %v4297
          %v4334 = vmul.f32 %v4281, %v4296
          %v4335 = vmul.f32 %v4282, %v4297
          %v4336 = vmul.f32 %v4283, %v4296
          %v4337 = vmul.f32 %v4284, %v4297
          %v4338 = vmul.f32 %v4285, %v4296
          %v4339 = vmul.f32 %v4286, %v4297
          %v4340 = vmul.f32 %v4287, %v4296
          %v4341 = vmul.f32 %v4288, %v4297
          %v4342 = vmul.f32 %v4289, %v4296
          %v4343 = vmul.f32 %v4290, %v4297
          %v4344 = vmul.f32 %v4291, %v4296
          %v4345 = vmul.f32 %v4292, %v4297
          %v4346 = vmul.f32 %v4293, %v4296
          %v4347 = vmul.f32 %v4294, %v4297
          %v4349 = vperm.slane %v3615, 0
          %v4350 = vperm.slane %v3615, 1
          %v4353 = vadd.f32 %v4300, %v4349
          %v4354 = vadd.f32 %v4301, %v4350
          %v4355 = vadd.f32 %v4302, %v4349
          %v4356 = vadd.f32 %v4303, %v4350
          %v4357 = vadd.f32 %v4304, %v4349
          %v4358 = vadd.f32 %v4305, %v4350
          %v4359 = vadd.f32 %v4306, %v4349
          %v4360 = vadd.f32 %v4307, %v4350
          %v4361 = vadd.f32 %v4308, %v4349
          %v4362 = vadd.f32 %v4309, %v4350
          %v4363 = vadd.f32 %v4310, %v4349
          %v4364 = vadd.f32 %v4311, %v4350
          %v4365 = vadd.f32 %v4312, %v4349
          %v4366 = vadd.f32 %v4313, %v4350
          %v4367 = vadd.f32 %v4314, %v4349
          %v4368 = vadd.f32 %v4315, %v4350
          %v4369 = vadd.f32 %v4316, %v4349
          %v4370 = vadd.f32 %v4317, %v4350
          %v4371 = vadd.f32 %v4318, %v4349
          %v4372 = vadd.f32 %v4319, %v4350
          %v4373 = vadd.f32 %v4320, %v4349
          %v4374 = vadd.f32 %v4321, %v4350
          %v4375 = vadd.f32 %v4322, %v4349
          %v4376 = vadd.f32 %v4323, %v4350
          %v4377 = vadd.f32 %v4324, %v4349
          %v4378 = vadd.f32 %v4325, %v4350
          %v4379 = vadd.f32 %v4326, %v4349
          %v4380 = vadd.f32 %v4327, %v4350
          %v4381 = vadd.f32 %v4328, %v4349
          %v4382 = vadd.f32 %v4329, %v4350
          %v4383 = vadd.f32 %v4330, %v4349
          %v4384 = vadd.f32 %v4331, %v4350
          %v4385 = vadd.f32 %v4332, %v4349
          %v4386 = vadd.f32 %v4333, %v4350
          %v4387 = vadd.f32 %v4334, %v4349
          %v4388 = vadd.f32 %v4335, %v4350
          %v4389 = vadd.f32 %v4336, %v4349
          %v4390 = vadd.f32 %v4337, %v4350
          %v4391 = vadd.f32 %v4338, %v4349
          %v4392 = vadd.f32 %v4339, %v4350
          %v4393 = vadd.f32 %v4340, %v4349
          %v4394 = vadd.f32 %v4341, %v4350
          %v4395 = vadd.f32 %v4342, %v4349
          %v4396 = vadd.f32 %v4343, %v4350
          %v4397 = vadd.f32 %v4344, %v4349
          %v4398 = vadd.f32 %v4345, %v4350
          %v4399 = vadd.f32 %v4346, %v4349
          %v4400 = vadd.f32 %v4347, %v4350
          %v4401 = vpack.c.bf16 %v4355, %v4353
          %v4402 = vpack.c.bf16 %v4356, %v4354
          %v4403 = vpack.c.bf16 %v4359, %v4357
          %v4404 = vpack.c.bf16 %v4360, %v4358
          %v4405 = vpack.c.bf16 %v4363, %v4361
          %v4406 = vpack.c.bf16 %v4364, %v4362
          %v4407 = vpack.c.bf16 %v4367, %v4365
          %v4408 = vpack.c.bf16 %v4368, %v4366
          %v4409 = vpack.c.bf16 %v4371, %v4369
          %v4410 = vpack.c.bf16 %v4372, %v4370
          %v4411 = vpack.c.bf16 %v4375, %v4373
          %v4412 = vpack.c.bf16 %v4376, %v4374
          %v4413 = vpack.c.bf16 %v4379, %v4377
          %v4414 = vpack.c.bf16 %v4380, %v4378
          %v4415 = vpack.c.bf16 %v4383, %v4381
          %v4416 = vpack.c.bf16 %v4384, %v4382
          %v4417 = vpack.c.bf16 %v4387, %v4385
          %v4418 = vpack.c.bf16 %v4388, %v4386
          %v4419 = vpack.c.bf16 %v4391, %v4389
          %v4420 = vpack.c.bf16 %v4392, %v4390
          %v4421 = vpack.c.bf16 %v4395, %v4393
          %v4422 = vpack.c.bf16 %v4396, %v4394
          %v4423 = vpack.c.bf16 %v4399, %v4397
          %v4424 = vpack.c.bf16 %v4400, %v4398
          %v4425 = vld [vmem:[#allocation16] sm:$0xff]
          %v4426 = vld [vmem:[#allocation16 + $0x8] sm:$0xff]
          %v4427 = vld [vmem:[#allocation16 + $0x10] sm:$0xff]
          %v4428 = vld [vmem:[#allocation16 + $0x18] sm:$0xff]
          %v4429 = vld [vmem:[#allocation16 + $0x20] sm:$0xff]
          %v4430 = vld [vmem:[#allocation16 + $0x28] sm:$0xff]
          %v4431 = vld [vmem:[#allocation16 + $0x30] sm:$0xff]
          %v4432 = vld [vmem:[#allocation16 + $0x38] sm:$0xff]
          %v4433 = vld [vmem:[#allocation16 + $0x40] sm:$0xff]
          %v4434 = vld [vmem:[#allocation16 + $0x48] sm:$0xff]
          %v4435 = vld [vmem:[#allocation16 + $0x50] sm:$0xff]
          %v4436 = vld [vmem:[#allocation16 + $0x58] sm:$0xff]
          %v4437 = vld [vmem:[#allocation16 + $0x60] sm:$0xff]
          %v4438 = vld [vmem:[#allocation16 + $0x68] sm:$0xff]
          %v4439 = vld [vmem:[#allocation16 + $0x70] sm:$0xff]
          %v4440 = vld [vmem:[#allocation16 + $0x78] sm:$0xff]
          %v4441 = vld [vmem:[#allocation16 + $0x80] sm:$0xff]
          %v4442 = vld [vmem:[#allocation16 + $0x88] sm:$0xff]
          %v4443 = vld [vmem:[#allocation16 + $0x90] sm:$0xff]
          %v4444 = vld [vmem:[#allocation16 + $0x98] sm:$0xff]
          %v4445 = vld [vmem:[#allocation16 + $0xa0] sm:$0xff]
          %v4446 = vld [vmem:[#allocation16 + $0xa8] sm:$0xff]
          %v4447 = vld [vmem:[#allocation16 + $0xb0] sm:$0xff]
          %v4448 = vld [vmem:[#allocation16 + $0xb8] sm:$0xff]
          %v4449 = vld [vmem:[#allocation16 + $0xc0] sm:$0xff]
          %v4450 = vld [vmem:[#allocation16 + $0xc8] sm:$0xff]
          %v4451 = vld [vmem:[#allocation16 + $0xd0] sm:$0xff]
          %v4452 = vld [vmem:[#allocation16 + $0xd8] sm:$0xff]
          %v4453 = vld [vmem:[#allocation16 + $0xe0] sm:$0xff]
          %v4454 = vld [vmem:[#allocation16 + $0xe8] sm:$0xff]
          %v4455 = vld [vmem:[#allocation16 + $0xf0] sm:$0xff]
          %v4456 = vld [vmem:[#allocation16 + $0xf8] sm:$0xff]
          %v4457 = vld [vmem:[%s11] sm:$0x3]
          %v4459 = vperm.slane %v4457, 0
          %v4460 = vperm.slane %v4457, 1
          %v4495 = vunpack.c.l.b16 %v4425
          %v4496 = vunpack.c.h.b16 %v4425
          %v4497 = vunpack.c.l.b16 %v4426
          %v4498 = vunpack.c.h.b16 %v4426
          %v4499 = vunpack.c.l.b16 %v4427
          %v4500 = vunpack.c.h.b16 %v4427
          %v4501 = vunpack.c.l.b16 %v4428
          %v4502 = vunpack.c.h.b16 %v4428
          %v4503 = vunpack.c.l.b16 %v4429
          %v4504 = vunpack.c.h.b16 %v4429
          %v4505 = vunpack.c.l.b16 %v4430
          %v4506 = vunpack.c.h.b16 %v4430
          %v4507 = vunpack.c.l.b16 %v4431
          %v4508 = vunpack.c.h.b16 %v4431
          %v4509 = vunpack.c.l.b16 %v4432
          %v4510 = vunpack.c.h.b16 %v4432
          %v4511 = vunpack.c.l.b16 %v4433
          %v4512 = vunpack.c.h.b16 %v4433
          %v4513 = vunpack.c.l.b16 %v4434
          %v4514 = vunpack.c.h.b16 %v4434
          %v4515 = vunpack.c.l.b16 %v4435
          %v4516 = vunpack.c.h.b16 %v4435
          %v4517 = vunpack.c.l.b16 %v4436
          %v4518 = vunpack.c.h.b16 %v4436
          %v4519 = vunpack.c.l.b16 %v4437
          %v4520 = vunpack.c.h.b16 %v4437
          %v4521 = vunpack.c.l.b16 %v4438
          %v4522 = vunpack.c.h.b16 %v4438
          %v4523 = vunpack.c.l.b16 %v4439
          %v4524 = vunpack.c.h.b16 %v4439
          %v4525 = vunpack.c.l.b16 %v4440
          %v4526 = vunpack.c.h.b16 %v4440
          %v4527 = vunpack.c.l.b16 %v4441
          %v4528 = vunpack.c.h.b16 %v4441
          %v4529 = vunpack.c.l.b16 %v4442
          %v4530 = vunpack.c.h.b16 %v4442
          %v4531 = vunpack.c.l.b16 %v4443
          %v4532 = vunpack.c.h.b16 %v4443
          %v4533 = vunpack.c.l.b16 %v4444
          %v4534 = vunpack.c.h.b16 %v4444
          %v4535 = vunpack.c.l.b16 %v4445
          %v4536 = vunpack.c.h.b16 %v4445
          %v4537 = vunpack.c.l.b16 %v4446
          %v4538 = vunpack.c.h.b16 %v4446
          %v4539 = vunpack.c.l.b16 %v4447
          %v4540 = vunpack.c.h.b16 %v4447
          %v4541 = vunpack.c.l.b16 %v4448
          %v4542 = vunpack.c.h.b16 %v4448
          %v4543 = vunpack.c.l.b16 %v4449
          %v4544 = vunpack.c.h.b16 %v4449
          %v4545 = vunpack.c.l.b16 %v4450
          %v4546 = vunpack.c.h.b16 %v4450
          %v4547 = vunpack.c.l.b16 %v4451
          %v4548 = vunpack.c.h.b16 %v4451
          %v4549 = vunpack.c.l.b16 %v4452
          %v4550 = vunpack.c.h.b16 %v4452
          %v4551 = vunpack.c.l.b16 %v4453
          %v4552 = vunpack.c.h.b16 %v4453
          %v4553 = vunpack.c.l.b16 %v4454
          %v4554 = vunpack.c.h.b16 %v4454
          %v4555 = vunpack.c.l.b16 %v4455
          %v4556 = vunpack.c.h.b16 %v4455
          %v4557 = vunpack.c.l.b16 %v4456
          %v4558 = vunpack.c.h.b16 %v4456
          %v4559 = vpack.c.b16 %v4497, %v4495
          %v4560 = vpack.c.b16 %v4498, %v4496
          %v4561 = vpack.c.b16 %v4501, %v4499
          %v4562 = vpack.c.b16 %v4502, %v4500
          %v4563 = vpack.c.b16 %v4505, %v4503
          %v4564 = vpack.c.b16 %v4506, %v4504
          %v4565 = vpack.c.b16 %v4509, %v4507
          %v4566 = vpack.c.b16 %v4510, %v4508
          %v4567 = vpack.c.b16 %v4513, %v4511
          %v4568 = vpack.c.b16 %v4514, %v4512
          %v4569 = vpack.c.b16 %v4517, %v4515
          %v4570 = vpack.c.b16 %v4518, %v4516
          %v4571 = vpack.c.b16 %v4521, %v4519
          %v4572 = vpack.c.b16 %v4522, %v4520
          %v4573 = vpack.c.b16 %v4525, %v4523
          %v4574 = vpack.c.b16 %v4526, %v4524
          %v4575 = vpack.c.b16 %v4529, %v4527
          %v4576 = vpack.c.b16 %v4530, %v4528
          %v4577 = vpack.c.b16 %v4533, %v4531
          %v4578 = vpack.c.b16 %v4534, %v4532
          %v4579 = vpack.c.b16 %v4537, %v4535
          %v4580 = vpack.c.b16 %v4538, %v4536
          %v4581 = vpack.c.b16 %v4541, %v4539
          %v4582 = vpack.c.b16 %v4542, %v4540
          %v4583 = vpack.c.b16 %v4545, %v4543
          %v4584 = vpack.c.b16 %v4546, %v4544
          %v4585 = vpack.c.b16 %v4549, %v4547
          %v4586 = vpack.c.b16 %v4550, %v4548
          %v4587 = vpack.c.b16 %v4553, %v4551
          %v4588 = vpack.c.b16 %v4554, %v4552
          %v4589 = vpack.c.b16 %v4557, %v4555
          %v4590 = vpack.c.b16 %v4558, %v4556
          %4623 = vmatpush.bf16.msra.mxu0 %v4573
          %4624 = vmatpush.bf16.msra.mxu0 %v4571
          %4625 = vmatpush.bf16.msra.mxu0 %v4569
          %4626 = vmatpush.bf16.msra.mxu0 %v4567
          %4627 = vmatpush.bf16.msra.mxu0 %v4565
          %4628 = vmatpush.bf16.msra.mxu0 %v4563
          %4629 = vmatpush.bf16.msra.mxu0 %v4561
          %4630 = vmatpush.bf16.msra.mxu0 %v4559
          %4631 = vmatmul.bf16.gmra.mxu0 %v4401
          %v4632 = vpop.f32.mrf.mxu0
          %v4633 = vadd.f32 %v4459, %v4632
          %v4634 = vpop.f32.mrf.mxu0
          %v4635 = vadd.f32 %v4459, %v4634
          %4636 = vmatmul.bf16.gmra.mxu0 %v4403
          %v4637 = vpop.f32.mrf.mxu0
          %v4638 = vadd.f32 %v4459, %v4637
          %v4639 = vpop.f32.mrf.mxu0
          %v4640 = vadd.f32 %v4459, %v4639
          %4641 = vmatmul.bf16.gmra.mxu0 %v4405
          %v4642 = vpop.f32.mrf.mxu0
          %v4643 = vadd.f32 %v4459, %v4642
          %v4644 = vpop.f32.mrf.mxu0
          %v4645 = vadd.f32 %v4459, %v4644
          %4646 = vmatmul.bf16.gmra.mxu0 %v4407
          %v4647 = vpop.f32.mrf.mxu0
          %v4648 = vadd.f32 %v4459, %v4647
          %v4649 = vpop.f32.mrf.mxu0
          %v4650 = vadd.f32 %v4459, %v4649
          %4651 = vmatmul.bf16.gmra.mxu0 %v4409
          %v4652 = vpop.f32.mrf.mxu0
          %v4653 = vadd.f32 %v4459, %v4652
          %v4654 = vpop.f32.mrf.mxu0
          %v4655 = vadd.f32 %v4459, %v4654
          %4656 = vmatmul.bf16.gmra.mxu0 %v4411
          %v4657 = vpop.f32.mrf.mxu0
          %v4658 = vadd.f32 %v4459, %v4657
          %v4659 = vpop.f32.mrf.mxu0
          %v4660 = vadd.f32 %v4459, %v4659
          %4661 = vmatmul.bf16.gmra.mxu0 %v4413
          %v4662 = vpop.f32.mrf.mxu0
          %v4663 = vadd.f32 %v4459, %v4662
          %v4664 = vpop.f32.mrf.mxu0
          %v4665 = vadd.f32 %v4459, %v4664
          %4666 = vmatmul.bf16.gmra.mxu0 %v4415
          %v4667 = vpop.f32.mrf.mxu0
          %v4668 = vadd.f32 %v4459, %v4667
          %v4669 = vpop.f32.mrf.mxu0
          %v4670 = vadd.f32 %v4459, %v4669
          %4671 = vmatmul.bf16.gmra.mxu0 %v4417
          %v4672 = vpop.f32.mrf.mxu0
          %v4673 = vadd.f32 %v4459, %v4672
          %v4674 = vpop.f32.mrf.mxu0
          %v4675 = vadd.f32 %v4459, %v4674
          %4676 = vmatmul.bf16.gmra.mxu0 %v4419
          %v4677 = vpop.f32.mrf.mxu0
          %v4678 = vadd.f32 %v4459, %v4677
          %v4679 = vpop.f32.mrf.mxu0
          %v4680 = vadd.f32 %v4459, %v4679
          %4681 = vmatmul.bf16.gmra.mxu0 %v4421
          %v4682 = vpop.f32.mrf.mxu0
          %v4683 = vadd.f32 %v4459, %v4682
          %v4684 = vpop.f32.mrf.mxu0
          %v4685 = vadd.f32 %v4459, %v4684
          %4686 = vmatmul.bf16.gmra.mxu0 %v4423
          %v4687 = vpop.f32.mrf.mxu0
          %v4688 = vadd.f32 %v4459, %v4687
          %v4689 = vpop.f32.mrf.mxu0
          %v4690 = vadd.f32 %v4459, %v4689
          %4691 = vdwg.mxu0
          %4692 = vmatpush.bf16.msra.mxu0 %v4589
          %4693 = vmatpush.bf16.msra.mxu0 %v4587
          %4694 = vmatpush.bf16.msra.mxu0 %v4585
          %4695 = vmatpush.bf16.msra.mxu0 %v4583
          %4696 = vmatpush.bf16.msra.mxu0 %v4581
          %4697 = vmatpush.bf16.msra.mxu0 %v4579
          %4698 = vmatpush.bf16.msra.mxu0 %v4577
          %4699 = vmatpush.bf16.msra.mxu0 %v4575
          %4700 = vmatmul.bf16.gmra.mxu0 %v4402
          %v4701 = vpop.f32.mrf.mxu0
          %v4702 = vadd.f32 %v4633, %v4701
          %v4703 = vpop.f32.mrf.mxu0
          %v4704 = vadd.f32 %v4635, %v4703
          %4705 = vmatmul.bf16.gmra.mxu0 %v4404
          %v4706 = vpop.f32.mrf.mxu0
          %v4707 = vadd.f32 %v4638, %v4706
          %v4708 = vpop.f32.mrf.mxu0
          %v4709 = vadd.f32 %v4640, %v4708
          %4710 = vmatmul.bf16.gmra.mxu0 %v4406
          %v4711 = vpop.f32.mrf.mxu0
          %v4712 = vadd.f32 %v4643, %v4711
          %v4713 = vpop.f32.mrf.mxu0
          %v4714 = vadd.f32 %v4645, %v4713
          %4715 = vmatmul.bf16.gmra.mxu0 %v4408
          %v4716 = vpop.f32.mrf.mxu0
          %v4717 = vadd.f32 %v4648, %v4716
          %v4718 = vpop.f32.mrf.mxu0
          %v4719 = vadd.f32 %v4650, %v4718
          %4720 = vmatmul.bf16.gmra.mxu0 %v4410
          %v4721 = vpop.f32.mrf.mxu0
          %v4722 = vadd.f32 %v4653, %v4721
          %v4723 = vpop.f32.mrf.mxu0
          %v4724 = vadd.f32 %v4655, %v4723
          %4725 = vmatmul.bf16.gmra.mxu0 %v4412
          %v4726 = vpop.f32.mrf.mxu0
          %v4727 = vadd.f32 %v4658, %v4726
          %v4728 = vpop.f32.mrf.mxu0
          %v4729 = vadd.f32 %v4660, %v4728
          %4730 = vmatmul.bf16.gmra.mxu0 %v4414
          %v4731 = vpop.f32.mrf.mxu0
          %v4732 = vadd.f32 %v4663, %v4731
          %v4733 = vpop.f32.mrf.mxu0
          %v4734 = vadd.f32 %v4665, %v4733
          %4735 = vmatmul.bf16.gmra.mxu0 %v4416
          %v4736 = vpop.f32.mrf.mxu0
          %v4737 = vadd.f32 %v4668, %v4736
          %v4738 = vpop.f32.mrf.mxu0
          %v4739 = vadd.f32 %v4670, %v4738
          %4740 = vmatmul.bf16.gmra.mxu0 %v4418
          %v4741 = vpop.f32.mrf.mxu0
          %v4742 = vadd.f32 %v4673, %v4741
          %v4743 = vpop.f32.mrf.mxu0
          %v4744 = vadd.f32 %v4675, %v4743
          %4745 = vmatmul.bf16.gmra.mxu0 %v4420
          %v4746 = vpop.f32.mrf.mxu0
          %v4747 = vadd.f32 %v4678, %v4746
          %v4748 = vpop.f32.mrf.mxu0
          %v4749 = vadd.f32 %v4680, %v4748
          %4750 = vmatmul.bf16.gmra.mxu0 %v4422
          %v4751 = vpop.f32.mrf.mxu0
          %v4752 = vadd.f32 %v4683, %v4751
          %v4753 = vpop.f32.mrf.mxu0
          %v4754 = vadd.f32 %v4685, %v4753
          %4755 = vmatmul.bf16.gmra.mxu0 %v4424
          %v4756 = vpop.f32.mrf.mxu0
          %v4757 = vadd.f32 %v4688, %v4756
          %v4758 = vpop.f32.mrf.mxu0
          %v4759 = vadd.f32 %v4690, %v4758
          %4760 = vdwg.mxu0
          %4761 = vmatpush.bf16.msra.mxu0 %v4574
          %4762 = vmatpush.bf16.msra.mxu0 %v4572
          %4763 = vmatpush.bf16.msra.mxu0 %v4570
          %4764 = vmatpush.bf16.msra.mxu0 %v4568
          %4765 = vmatpush.bf16.msra.mxu0 %v4566
          %4766 = vmatpush.bf16.msra.mxu0 %v4564
          %4767 = vmatpush.bf16.msra.mxu0 %v4562
          %4768 = vmatpush.bf16.msra.mxu0 %v4560
          %4769 = vmatmul.bf16.gmra.mxu0 %v4401
          %v4770 = vpop.f32.mrf.mxu0
          %v4771 = vadd.f32 %v4460, %v4770
          %v4772 = vpop.f32.mrf.mxu0
          %v4773 = vadd.f32 %v4460, %v4772
          %4774 = vmatmul.bf16.gmra.mxu0 %v4403
          %v4775 = vpop.f32.mrf.mxu0
          %v4776 = vadd.f32 %v4460, %v4775
          %v4777 = vpop.f32.mrf.mxu0
          %v4778 = vadd.f32 %v4460, %v4777
          %4779 = vmatmul.bf16.gmra.mxu0 %v4405
          %v4780 = vpop.f32.mrf.mxu0
          %v4781 = vadd.f32 %v4460, %v4780
          %v4782 = vpop.f32.mrf.mxu0
          %v4783 = vadd.f32 %v4460, %v4782
          %4784 = vmatmul.bf16.gmra.mxu0 %v4407
          %v4785 = vpop.f32.mrf.mxu0
          %v4786 = vadd.f32 %v4460, %v4785
          %v4787 = vpop.f32.mrf.mxu0
          %v4788 = vadd.f32 %v4460, %v4787
          %4789 = vmatmul.bf16.gmra.mxu0 %v4409
          %v4790 = vpop.f32.mrf.mxu0
          %v4791 = vadd.f32 %v4460, %v4790
          %v4792 = vpop.f32.mrf.mxu0
          %v4793 = vadd.f32 %v4460, %v4792
          %4794 = vmatmul.bf16.gmra.mxu0 %v4411
          %v4795 = vpop.f32.mrf.mxu0
          %v4796 = vadd.f32 %v4460, %v4795
          %v4797 = vpop.f32.mrf.mxu0
          %v4798 = vadd.f32 %v4460, %v4797
          %4799 = vmatmul.bf16.gmra.mxu0 %v4413
          %v4800 = vpop.f32.mrf.mxu0
          %v4801 = vadd.f32 %v4460, %v4800
          %v4802 = vpop.f32.mrf.mxu0
          %v4803 = vadd.f32 %v4460, %v4802
          %4804 = vmatmul.bf16.gmra.mxu0 %v4415
          %v4805 = vpop.f32.mrf.mxu0
          %v4806 = vadd.f32 %v4460, %v4805
          %v4807 = vpop.f32.mrf.mxu0
          %v4808 = vadd.f32 %v4460, %v4807
          %4809 = vmatmul.bf16.gmra.mxu0 %v4417
          %v4810 = vpop.f32.mrf.mxu0
          %v4811 = vadd.f32 %v4460, %v4810
          %v4812 = vpop.f32.mrf.mxu0
          %v4813 = vadd.f32 %v4460, %v4812
          %4814 = vmatmul.bf16.gmra.mxu0 %v4419
          %v4815 = vpop.f32.mrf.mxu0
          %v4816 = vadd.f32 %v4460, %v4815
          %v4817 = vpop.f32.mrf.mxu0
          %v4818 = vadd.f32 %v4460, %v4817
          %4819 = vmatmul.bf16.gmra.mxu0 %v4421
          %v4820 = vpop.f32.mrf.mxu0
          %v4821 = vadd.f32 %v4460, %v4820
          %v4822 = vpop.f32.mrf.mxu0
          %v4823 = vadd.f32 %v4460, %v4822
          %4824 = vmatmul.bf16.gmra.mxu0 %v4423
          %v4825 = vpop.f32.mrf.mxu0
          %v4826 = vadd.f32 %v4460, %v4825
          %v4827 = vpop.f32.mrf.mxu0
          %v4828 = vadd.f32 %v4460, %v4827
          %4829 = vdwg.mxu0
          %4830 = vmatpush.bf16.msra.mxu0 %v4590
          %4831 = vmatpush.bf16.msra.mxu0 %v4588
          %4832 = vmatpush.bf16.msra.mxu0 %v4586
          %4833 = vmatpush.bf16.msra.mxu0 %v4584
          %4834 = vmatpush.bf16.msra.mxu0 %v4582
          %4835 = vmatpush.bf16.msra.mxu0 %v4580
          %4836 = vmatpush.bf16.msra.mxu0 %v4578
          %4837 = vmatpush.bf16.msra.mxu0 %v4576
          %4838 = vmatmul.bf16.gmra.mxu0 %v4402
          %v4839 = vpop.f32.mrf.mxu0
          %v4840 = vadd.f32 %v4771, %v4839
          %v4841 = vpop.f32.mrf.mxu0
          %v4842 = vadd.f32 %v4773, %v4841
          %4843 = vmatmul.bf16.gmra.mxu0 %v4404
          %v4844 = vpop.f32.mrf.mxu0
          %v4845 = vadd.f32 %v4776, %v4844
          %v4846 = vpop.f32.mrf.mxu0
          %v4847 = vadd.f32 %v4778, %v4846
          %4848 = vmatmul.bf16.gmra.mxu0 %v4406
          %v4849 = vpop.f32.mrf.mxu0
          %v4850 = vadd.f32 %v4781, %v4849
          %v4851 = vpop.f32.mrf.mxu0
          %v4852 = vadd.f32 %v4783, %v4851
          %4853 = vmatmul.bf16.gmra.mxu0 %v4408
          %v4854 = vpop.f32.mrf.mxu0
          %v4855 = vadd.f32 %v4786, %v4854
          %v4856 = vpop.f32.mrf.mxu0
          %v4857 = vadd.f32 %v4788, %v4856
          %4858 = vmatmul.bf16.gmra.mxu0 %v4410
          %v4859 = vpop.f32.mrf.mxu0
          %v4860 = vadd.f32 %v4791, %v4859
          %v4861 = vpop.f32.mrf.mxu0
          %v4862 = vadd.f32 %v4793, %v4861
          %4863 = vmatmul.bf16.gmra.mxu0 %v4412
          %v4864 = vpop.f32.mrf.mxu0
          %v4865 = vadd.f32 %v4796, %v4864
          %v4866 = vpop.f32.mrf.mxu0
          %v4867 = vadd.f32 %v4798, %v4866
          %4868 = vmatmul.bf16.gmra.mxu0 %v4414
          %v4869 = vpop.f32.mrf.mxu0
          %v4870 = vadd.f32 %v4801, %v4869
          %v4871 = vpop.f32.mrf.mxu0
          %v4872 = vadd.f32 %v4803, %v4871
          %4873 = vmatmul.bf16.gmra.mxu0 %v4416
          %v4874 = vpop.f32.mrf.mxu0
          %v4875 = vadd.f32 %v4806, %v4874
          %v4876 = vpop.f32.mrf.mxu0
          %v4877 = vadd.f32 %v4808, %v4876
          %4878 = vmatmul.bf16.gmra.mxu0 %v4418
          %v4879 = vpop.f32.mrf.mxu0
          %v4880 = vadd.f32 %v4811, %v4879
          %v4881 = vpop.f32.mrf.mxu0
          %v4882 = vadd.f32 %v4813, %v4881
          %4883 = vmatmul.bf16.gmra.mxu0 %v4420
          %v4884 = vpop.f32.mrf.mxu0
          %v4885 = vadd.f32 %v4816, %v4884
          %v4886 = vpop.f32.mrf.mxu0
          %v4887 = vadd.f32 %v4818, %v4886
          %4888 = vmatmul.bf16.gmra.mxu0 %v4422
          %v4889 = vpop.f32.mrf.mxu0
          %v4890 = vadd.f32 %v4821, %v4889
          %v4891 = vpop.f32.mrf.mxu0
          %v4892 = vadd.f32 %v4823, %v4891
          %4893 = vmatmul.bf16.gmra.mxu0 %v4424
          %v4894 = vpop.f32.mrf.mxu0
          %v4895 = vadd.f32 %v4826, %v4894
          %v4896 = vpop.f32.mrf.mxu0
          %v4897 = vadd.f32 %v4828, %v4896
          %4898 = vdwg.mxu0
          %4899 = vst [vmem:[%s640] sm:$0xff] %v4702
          %4900 = vst [vmem:[%s640 + $0x8] sm:$0xff] %v4840
          %4901 = vst [vmem:[%s640 + $0x10] sm:$0xff] %v4704
          %4902 = vst [vmem:[%s640 + $0x18] sm:$0xff] %v4842
          %4903 = vst [vmem:[%s640 + $0x20] sm:$0xff] %v4707
          %4904 = vst [vmem:[%s640 + $0x28] sm:$0xff] %v4845
          %4905 = vst [vmem:[%s640 + $0x30] sm:$0xff] %v4709
          %4906 = vst [vmem:[%s640 + $0x38] sm:$0xff] %v4847
          %4907 = vst [vmem:[%s640 + $0x40] sm:$0xff] %v4712
          %4908 = vst [vmem:[%s640 + $0x48] sm:$0xff] %v4850
          %4909 = vst [vmem:[%s640 + $0x50] sm:$0xff] %v4714
          %4910 = vst [vmem:[%s640 + $0x58] sm:$0xff] %v4852
          %4911 = vst [vmem:[%s640 + $0x60] sm:$0xff] %v4717
          %4912 = vst [vmem:[%s640 + $0x68] sm:$0xff] %v4855
          %4913 = vst [vmem:[%s640 + $0x70] sm:$0xff] %v4719
          %4914 = vst [vmem:[%s640 + $0x78] sm:$0xff] %v4857
          %4915 = vst [vmem:[%s640 + $0x80] sm:$0xff] %v4722
          %4916 = vst [vmem:[%s640 + $0x88] sm:$0xff] %v4860
          %4917 = vst [vmem:[%s640 + $0x90] sm:$0xff] %v4724
          %4918 = vst [vmem:[%s640 + $0x98] sm:$0xff] %v4862
          %4919 = vst [vmem:[%s640 + $0xa0] sm:$0xff] %v4727
          %4920 = vst [vmem:[%s640 + $0xa8] sm:$0xff] %v4865
          %4921 = vst [vmem:[%s640 + $0xb0] sm:$0xff] %v4729
          %4922 = vst [vmem:[%s640 + $0xb8] sm:$0xff] %v4867
          %4923 = vst [vmem:[%s640 + $0xc0] sm:$0xff] %v4732
          %4924 = vst [vmem:[%s640 + $0xc8] sm:$0xff] %v4870
          %4925 = vst [vmem:[%s640 + $0xd0] sm:$0xff] %v4734
          %4926 = vst [vmem:[%s640 + $0xd8] sm:$0xff] %v4872
          %4927 = vst [vmem:[%s640 + $0xe0] sm:$0xff] %v4737
          %4928 = vst [vmem:[%s640 + $0xe8] sm:$0xff] %v4875
          %4929 = vst [vmem:[%s640 + $0xf0] sm:$0xff] %v4739
          %4930 = vst [vmem:[%s640 + $0xf8] sm:$0xff] %v4877
          %4931 = vst [vmem:[%s640 + $0x100] sm:$0xff] %v4742
          %4932 = vst [vmem:[%s640 + $0x108] sm:$0xff] %v4880
          %4933 = vst [vmem:[%s640 + $0x110] sm:$0xff] %v4744
          %4934 = vst [vmem:[%s640 + $0x118] sm:$0xff] %v4882
          %4935 = vst [vmem:[%s640 + $0x120] sm:$0xff] %v4747
          %4936 = vst [vmem:[%s640 + $0x128] sm:$0xff] %v4885
          %4937 = vst [vmem:[%s640 + $0x130] sm:$0xff] %v4749
          %4938 = vst [vmem:[%s640 + $0x138] sm:$0xff] %v4887
          %4939 = vst [vmem:[%s640 + $0x140] sm:$0xff] %v4752
          %4940 = vst [vmem:[%s640 + $0x148] sm:$0xff] %v4890
          %4941 = vst [vmem:[%s640 + $0x150] sm:$0xff] %v4754
          %4942 = vst [vmem:[%s640 + $0x158] sm:$0xff] %v4892
          %4943 = vst [vmem:[%s640 + $0x160] sm:$0xff] %v4757
          %4944 = vst [vmem:[%s640 + $0x168] sm:$0xff] %v4895
          %4945 = vst [vmem:[%s640 + $0x170] sm:$0xff] %v4759
          %4946 = vst [vmem:[%s640 + $0x178] sm:$0xff] %v4897
        $region104: #{tpu_custom_call.1} parent=67 // pred_fallthru
          _
        %s4947 = sand.u32 %s335, 1
        %s4948 = scalar_lea.sflag [#allocation7], %s4947
        %s4949 = sand.u32 %s335, 1
        %s4950 = smul.addr %s4949, 384
        %s4951 = scalar_lea.vmem [#allocation17], %s4950
        // Predicated region
        $region105: #{tpu_custom_call.1} parent=67 // pred_check
          %p4952 = pneg %p345
        $region106: #{tpu_custom_call.1} parent=67 // pred_check_branch
          %4954 = sbr.rel (%p4952) target = $region108
        $region107: #{tpu_custom_call.1} parent=67 // pred_region
          %s4955 = smul.u32 24, %s42
          %4957 = vsyncadd %s4948, 0
          %s4958 = smul.addr %s4955, 2
          %s4959 = smul.addr %s4958, 8
          %s4960 = scalar_lea.hbm %s12, %s4959
          %s4961 = sshll.u32 %s4951, 4
          %s4962 = int_to_ptr.vmem [resolvable:$true] %s4961
          %s4963 = sshll.u32 %s4960, 4
          %s4964 = int_to_ptr.hbm [resolvable:$true] %s4963
          %4969 = dma.vmem_to_hbm [thread:$0]  %s4962, 6144, %s4964, %s4948, 256, 256, 16
        $region108: #{tpu_custom_call.1} parent=67 // pred_fallthru
          _
      $region68: #{tpu_custom_call.1} parent=5 // pred_fallthru
        _
      %p4970 = scmp.le.s32.totalorder 2, %s33
      // Predicated region
      $region109: #{tpu_custom_call.1} parent=5 // pred_check
        %p4971 = pneg %p4970
      $region110: #{tpu_custom_call.1} parent=5 // pred_check_branch
        %4973 = sbr.rel (%p4971) target = $region112
      $region111: #{tpu_custom_call.1} parent=5 // pred_region
        %s4974 = ssub.s32 %s33, 2
        // Predicated region
        $region113: #{tpu_custom_call.1} parent=111 // pred_check
          %p4975 = pneg %p351
        $region114: #{tpu_custom_call.1} parent=111 // pred_check_branch
          %4977 = sbr.rel (%p4975) target = $region116
        $region115: #{tpu_custom_call.1} parent=111 // pred_region
          %s4978 = sand.u32 %s336, 1
          %s4979 = scalar_lea.sflag [#allocation7], %s4978
          %s4980 = sand.u32 %s336, 1
          %s4981 = smul.addr %s4980, 384
          %s4982 = scalar_lea.vmem [#allocation17], %s4981
          %4984 = dma.done %s4979, 6144
        $region116: #{tpu_custom_call.1} parent=111 // pred_fallthru
          _
      $region112: #{tpu_custom_call.1} parent=5 // pred_fallthru
        _
    $region6: #{tpu_custom_call.1} parent=1 // loop_footer
      %s37 = sadd.s32 1, %s33
    $region7: #{tpu_custom_call.1} parent=1 // loop_footer_branch
      %32 = sbr.rel target = $region3
    $region8: #{tpu_custom_call.1} parent=1 // loop_exit
      _
    %4985 = vsyncpa [#allocation6], 1
    %s4986 = scalar_lea.sflag [#allocation6], 1
    %4987 = vsyncpa %s4986, 1
    %4988 = vsyncpa [#allocation9], 1
    %s4989 = scalar_lea.sflag [#allocation9], 1
    %4990 = vsyncpa %s4989, 1
    %4991 = vsyncpa [#allocation12], 1
    %s4992 = scalar_lea.sflag [#allocation12], 1
    %4993 = vsyncpa %s4992, 1
    %4994 = vsyncpa [#allocation15], 1
    %s4995 = scalar_lea.sflag [#allocation15], 1
    %4996 = vsyncpa %s4995, 1
    %4997 = vsyncpa [#allocation7], 1
    %s4998 = scalar_lea.sflag [#allocation7], 1
    %4999 = vsyncpa %s4998, 1

</llo_original>
